<compile_context>
chip_gen: v7x
topology: tpu7x:2x2x1
jax: 0.10.0
libtpu: 0.0.40
codegen_flags: <defaults>
</compile_context>

<pallas_src>
import dataclasses

import jax
import jax.numpy as jnp
from jax.experimental import pallas as pl
from jax.experimental.pallas import tpu as pltpu


# --------------------------------------------------------------------------- #
# Kernel
# --------------------------------------------------------------------------- #
def _spectral_mix_kernel(xr_ref, xi_ref, wr_ref, wi_ref, o_ref):
    """Complex channel mix for one tile of Fourier modes (split real/imag).

    xr_ref, xi_ref: (TM, B, Ci)    real / imag of x_ft, mode axis leading
    wr_ref, wi_ref: (TM, Ci, Co)   real / imag of weights (not duplicated)
    o_ref:          (TM, B, 2*Co)  packed [or | oi] along lanes, float32
    """
    # f32 exactness mode keeps HIGHEST (matches complex64 reference); the
    # bf16 streaming mode uses a single native MXU pass with f32 accumulation.
    prec = (jax.lax.Precision.HIGHEST if xr_ref.dtype == jnp.float32
            else jax.lax.Precision.DEFAULT)

    def mm(a, b):
        return jnp.einsum("mbi,mio->mbo", a, b,
                          preferred_element_type=jnp.float32, precision=prec)

    xr, xi = xr_ref[...], xi_ref[...]
    wr, wi = wr_ref[...], wi_ref[...]
    o_r = mm(xr, wr) - mm(xi, wi)
    o_i = mm(xr, wi) + mm(xi, wr)
    o_ref[...] = jnp.concatenate([o_r, o_i], axis=-1)


# --------------------------------------------------------------------------- #
# Planning (tile / padding / VMEM budget) — compute once per configuration.
# --------------------------------------------------------------------------- #
@dataclasses.dataclass(frozen=True)
class SpectralPlan:
    batch: int
    c_in: int
    c_out: int
    modes: int
    b_pad: int
    ci_pad: int
    co_pad: int
    m_pad: int
    tile_m: int
    compute_dtype: object
    vmem_limit_bytes: int


def _round_up(x, m):
    return ((x + m - 1) // m) * m


def _cdiv(a, b):
    return -(-a // b)


def _vmem_capacity_bytes():
    try:
        return int(pltpu.get_tpu_info().vmem_capacity_bytes)
    except Exception:
        return 64 * 1024 * 1024  # conservative (v7x-sized VMEM)


def _block_vmem_bytes(shape, dtype):
    """VMEM bytes of one per-mode slice, including sublane/lane layout padding."""
    itemsize = jnp.dtype(dtype).itemsize
    sublane = 16 if itemsize == 2 else 8
    s = list(shape)
    s[-1] = _round_up(s[-1], 128)
    s[-2] = _round_up(s[-2], sublane)
    n = 1
    for d in s:
        n *= d
    return n * itemsize


def make_plan(batch, c_in, c_out, modes1, compute_dtype=jnp.bfloat16):
    b_pad = _round_up(batch, 8)                       # sublane-dense (TM, B, .) tiles
    ci_pad = _round_up(c_in, 8)
    # Output lane axis is 2*co_pad: pad small widths up so it is 128-dense.
    co_pad = _round_up(c_out, 64) if c_out < 64 else _round_up(c_out, 8)

    vmem_cap = _vmem_capacity_bytes()
    working_budget = int(vmem_cap * 0.6)              # double-buffered working set
    vmem_limit = int(vmem_cap * 0.8)                  # <=56 MiB v7x, ~102 MiB v5e/v6e

    per_mode = (2 * _block_vmem_bytes((1, b_pad, ci_pad), compute_dtype)      # xr, xi
                + 2 * _block_vmem_bytes((1, ci_pad, co_pad), compute_dtype)   # wr, wi
                + _block_vmem_bytes((1, b_pad, 2 * co_pad), jnp.float32))     # out
    tm_cap = max(1, working_budget // (2 * per_mode))  # x2: double buffering

    min_steps = 4                                      # keep the pipeline + megacore alive
    tile_m = int(max(1, min(tm_cap, _cdiv(modes1, min_steps))))
    grid_m = _cdiv(modes1, tile_m)
    if grid_m % 2:
        grid_m += 1                                    # even step count for v7x's 2 TCs
    m_pad = grid_m * tile_m

    return SpectralPlan(batch=batch, c_in=c_in, c_out=c_out, modes=modes1,
                        b_pad=b_pad, ci_pad=ci_pad, co_pad=co_pad,
                        m_pad=m_pad, tile_m=tile_m,
                        compute_dtype=compute_dtype,
                        vmem_limit_bytes=vmem_limit)


# --------------------------------------------------------------------------- #
# Weight packing — call ONCE per parameter set, reuse across forward calls.
# --------------------------------------------------------------------------- #
def pack_weights(plan, weights_r, weights_i):
    """(Ci, Co, M) real/imag -> two (M_pad, Ci_pad, Co_pad) tensors in compute_dtype."""
    ci, co, m = weights_r.shape

    def prep(w):
        w = jnp.pad(w, ((0, plan.ci_pad - ci),
                        (0, plan.co_pad - co),
                        (0, plan.m_pad - m)))
        return jnp.transpose(w, (2, 0, 1)).astype(plan.compute_dtype)

    return prep(weights_r), prep(weights_i)


# --------------------------------------------------------------------------- #
# Pallas call wrapper
# --------------------------------------------------------------------------- #
def spectral_mix(plan, xr, xi, wr, wi):
    """xr/xi: (M_pad, B_pad, Ci_pad),  wr/wi: (M_pad, Ci_pad, Co_pad)
       ->     (M_pad, B_pad, 2*Co_pad) float32 packed [or | oi]."""
    tm = plan.tile_m
    grid_m = plan.m_pad // tm

    x_spec = pl.BlockSpec((tm, plan.b_pad, plan.ci_pad), lambda m: (m, 0, 0))
    w_spec = pl.BlockSpec((tm, plan.ci_pad, plan.co_pad), lambda m: (m, 0, 0))
    o_spec = pl.BlockSpec((tm, plan.b_pad, 2 * plan.co_pad), lambda m: (m, 0, 0))

    grid_spec = pltpu.PrefetchScalarGridSpec(
        num_scalar_prefetch=0,
        grid=(grid_m,),
        in_specs=[x_spec, x_spec, w_spec, w_spec],
        out_specs=o_spec,
    )

    return pl.pallas_call(
        _spectral_mix_kernel,
        grid_spec=grid_spec,
        out_shape=jax.ShapeDtypeStruct(
            (plan.m_pad, plan.b_pad, 2 * plan.co_pad), jnp.float32),
        compiler_params=pltpu.CompilerParams(
            dimension_semantics=("parallel",),
            vmem_limit_bytes=plan.vmem_limit_bytes,
        ),
    )(xr, xi, wr, wi)


# --------------------------------------------------------------------------- #
# Forward pass (semantics of the PyTorch module)
# --------------------------------------------------------------------------- #
def spectral_conv1d(x, wr_packed, wi_packed, plan):
    """x: (B, C_in, N) f32;  wr/wi_packed from pack_weights -> (B, C_out, N) f32."""
    B, Ci, N = x.shape
    n_freq = N // 2 + 1

    # TODO(synk): rfft / irfft have no Pallas TPU primitive; kept in plain JAX.
    x_ft = jnp.fft.rfft(x, axis=-1)[:, :, :plan.modes]        # (B, Ci, M) complex64

    def prep(a):
        a = jnp.pad(a, ((0, plan.b_pad - B),
                        (0, plan.ci_pad - Ci),
                        (0, plan.m_pad - plan.modes)))
        return jnp.transpose(a, (2, 0, 1)).astype(plan.compute_dtype)

    xr = prep(jnp.real(x_ft))                                  # (M_pad, B_pad, Ci_pad)
    xi = prep(jnp.imag(x_ft))

    out = spectral_mix(plan, xr, xi, wr_packed, wi_packed)     # (M_pad, B_pad, 2*Co_pad)

    o_r = jnp.transpose(out[:plan.modes, :B, :plan.c_out], (1, 2, 0))
    o_i = jnp.transpose(
        out[:plan.modes, :B, plan.co_pad:plan.co_pad + plan.c_out], (1, 2, 0))

    out_ft = jnp.zeros((B, plan.c_out, n_freq), dtype=jnp.complex64)
    out_ft = out_ft.at[:, :, :plan.modes].set(jax.lax.complex(o_r, o_i))
    return jnp.fft.irfft(out_ft, n=N, axis=-1).astype(jnp.float32)


# --------------------------------------------------------------------------- #
# Pure-JAX reference mirroring the PyTorch forward
# --------------------------------------------------------------------------- #
def reference(x, weights_r, weights_i, modes1):
    N = x.shape[-1]
    x_ft = jnp.fft.rfft(x, axis=-1)
    w = (weights_r + 1j * weights_i).astype(jnp.complex64)
    out_low = jnp.einsum('bix,iox->box', x_ft[:, :, :modes1], w,
                         precision=jax.lax.Precision.HIGHEST)
    out_ft = jnp.zeros(
        (x.shape[0], weights_r.shape[1], N // 2 + 1), dtype=jnp.complex64)
    out_ft = out_ft.at[:, :, :modes1].set(out_low)
    return jnp.fft.irfft(out_ft, n=N, axis=-1)


if __name__ == "__main__":
    B, C_in, C_out, N, modes1 = 2, 4, 4, 16, 8

    key = jax.random.PRNGKey(0)
    kx, kwr, kwi = jax.random.split(key, 3)

    x = jax.random.normal(kx, (B, C_in, N), dtype=jnp.float32)

    # Mirrors: scale * torch.rand(in, out, modes1, dtype=cfloat)
    scale = 1.0 / (C_in * C_out)
    weights_r = scale * jax.random.uniform(kwr, (C_in, C_out, modes1),
                                           dtype=jnp.float32)
    weights_i = scale * jax.random.uniform(kwi, (C_in, C_out, modes1),
                                           dtype=jnp.float32)

    ref = reference(x, weights_r, weights_i, modes1)

    # 1) f32 exactness mode (matches the complex64 PyTorch semantics tightly).
    plan32 = make_plan(B, C_in, C_out, modes1, compute_dtype=jnp.float32)
    wr32, wi32 = pack_weights(plan32, weights_r, weights_i)   # packed once
    out32 = jax.block_until_ready(spectral_conv1d(x, wr32, wi32, plan32))
    assert out32.shape == (B, C_out, N)
    assert jnp.allclose(out32, ref, atol=1e-5, rtol=1e-5), "f32 mismatch vs reference"

    # 2) bf16 streaming mode (production perf path: half the HBM bytes,
    #    native MXU pass, f32 accumulation) — checked with bf16-level tolerance.
    plan16 = make_plan(B, C_in, C_out, modes1, compute_dtype=jnp.bfloat16)
    wr16, wi16 = pack_weights(plan16, weights_r, weights_i)   # packed once, reused per step
    out16 = jax.block_until_ready(spectral_conv1d(x, wr16, wi16, plan16))
    assert out16.shape == (B, C_out, N)
    assert jnp.allclose(out16, ref, atol=5e-2, rtol=5e-2), "bf16 mismatch vs reference"

    print("KERNEL_OK")
</pallas_src>

<mosaic_0001>
module attributes {stable_mosaic.version = 11 : i64} {
  func.func @_spectral_mix_kernel(%arg0: i32, %arg1: memref<2x8x8xf32, #tpu.memory_space<vmem>>, %arg2: memref<2x8x8xf32, #tpu.memory_space<vmem>>, %arg3: memref<2x8x64xf32, #tpu.memory_space<vmem>>, %arg4: memref<2x8x64xf32, #tpu.memory_space<vmem>>, %arg5: memref<2x8x128xf32, #tpu.memory_space<vmem>>) attributes {dimension_semantics = [#tpu.dimension_semantics<parallel>], iteration_bounds = array<i64: 4>, scalar_prefetch = 0 : i64, scratch_operands = 0 : i64, tpu.core_type = #tpu.core_type<tc>, window_params = [{transform_indices = @transform_0, window_bounds = array<i64: 2, 8, 8>}, {transform_indices = @transform_1, window_bounds = array<i64: 2, 8, 8>}, {transform_indices = @transform_2, window_bounds = array<i64: 2, 8, 64>}, {transform_indices = @transform_3, window_bounds = array<i64: 2, 8, 64>}, {transform_indices = @transform_4, window_bounds = array<i64: 2, 8, 128>}]} {
    %c0 = arith.constant 0 : index
    %c0_0 = arith.constant 0 : index
    %c0_1 = arith.constant 0 : index
    %0 = vector.load %arg1[%c0, %c0_0, %c0_1] : memref<2x8x8xf32, #tpu.memory_space<vmem>>, vector<2x8x8xf32>
    %c0_2 = arith.constant 0 : index
    %c0_3 = arith.constant 0 : index
    %c0_4 = arith.constant 0 : index
    %1 = vector.load %arg2[%c0_2, %c0_3, %c0_4] : memref<2x8x8xf32, #tpu.memory_space<vmem>>, vector<2x8x8xf32>
    %c0_5 = arith.constant 0 : index
    %c0_6 = arith.constant 0 : index
    %c0_7 = arith.constant 0 : index
    %2 = vector.load %arg3[%c0_5, %c0_6, %c0_7] : memref<2x8x64xf32, #tpu.memory_space<vmem>>, vector<2x8x64xf32>
    %c0_8 = arith.constant 0 : index
    %c0_9 = arith.constant 0 : index
    %c0_10 = arith.constant 0 : index
    %3 = vector.load %arg4[%c0_8, %c0_9, %c0_10] : memref<2x8x64xf32, #tpu.memory_space<vmem>>, vector<2x8x64xf32>
    "tpu.trace_start"() <{level = 10 : i32, message = "mbi,mio->mbo"}> : () -> ()
    %cst = arith.constant dense<0.000000e+00> : vector<2x8x64xf32>
    %4 = tpu.matmul %0, %2, %cst {dimension_numbers = #tpu.dot_dimension_numbers<[2], [1], [1], [2], [0, 0, 0, 1, 1, 2], [0], [0]>, precision = #tpu.contract_precision<fp32>} : vector<2x8x8xf32>, vector<2x8x64xf32>, vector<2x8x64xf32> -> vector<2x8x64xf32>
    %cst_11 = arith.constant dense<0.000000e+00> : vector<2x8x64xf32>
    %5 = tpu.matmul %1, %3, %cst_11 {dimension_numbers = #tpu.dot_dimension_numbers<[2], [1], [1], [2], [0, 0, 0, 1, 1, 2], [0], [0]>, precision = #tpu.contract_precision<fp32>} : vector<2x8x8xf32>, vector<2x8x64xf32>, vector<2x8x64xf32> -> vector<2x8x64xf32>
    "tpu.trace_stop"() : () -> ()
    %6 = arith.subf %4, %5 : vector<2x8x64xf32>
    "tpu.trace_start"() <{level = 10 : i32, message = "mbi,mio->mbo"}> : () -> ()
    %cst_12 = arith.constant dense<0.000000e+00> : vector<2x8x64xf32>
    %7 = tpu.matmul %0, %3, %cst_12 {dimension_numbers = #tpu.dot_dimension_numbers<[2], [1], [1], [2], [0, 0, 0, 1, 1, 2], [0], [0]>, precision = #tpu.contract_precision<fp32>} : vector<2x8x8xf32>, vector<2x8x64xf32>, vector<2x8x64xf32> -> vector<2x8x64xf32>
    %cst_13 = arith.constant dense<0.000000e+00> : vector<2x8x64xf32>
    %8 = tpu.matmul %1, %2, %cst_13 {dimension_numbers = #tpu.dot_dimension_numbers<[2], [1], [1], [2], [0, 0, 0, 1, 1, 2], [0], [0]>, precision = #tpu.contract_precision<fp32>} : vector<2x8x8xf32>, vector<2x8x64xf32>, vector<2x8x64xf32> -> vector<2x8x64xf32>
    "tpu.trace_stop"() : () -> ()
    %9 = arith.addf %7, %8 : vector<2x8x64xf32>
    %10 = tpu.concatenate %6, %9 in 2 : vector<2x8x64xf32>, vector<2x8x64xf32> -> vector<2x8x128xf32>
    %c0_14 = arith.constant 0 : index
    %c0_15 = arith.constant 0 : index
    %c0_16 = arith.constant 0 : index
    %11 = vector.load %arg5[%c0_14, %c0_15, %c0_16] : memref<2x8x128xf32, #tpu.memory_space<vmem>>, vector<2x8x128xf32>
    tpu.vector_store %arg5[%c0_14, %c0_15, %c0_16], %10 {strides = array<i32>} : memref<2x8x128xf32, #tpu.memory_space<vmem>>, vector<2x8x128xf32>,
    return
  }
  func.func @transform_0(%arg0: i32) -> (i32, i32, i32) {
    %c0_i32 = arith.constant 0 : i32
    %c0_i32_0 = arith.constant 0 : i32
    %c0_i32_1 = arith.constant 0 : i32
    return %arg0, %c0_i32, %c0_i32_0 : i32, i32, i32
  }
  func.func @transform_1(%arg0: i32) -> (i32, i32, i32) {
    %c0_i32 = arith.constant 0 : i32
    %c0_i32_0 = arith.constant 0 : i32
    %c0_i32_1 = arith.constant 0 : i32
    return %arg0, %c0_i32, %c0_i32_0 : i32, i32, i32
  }
  func.func @transform_2(%arg0: i32) -> (i32, i32, i32) {
    %c0_i32 = arith.constant 0 : i32
    %c0_i32_0 = arith.constant 0 : i32
    %c0_i32_1 = arith.constant 0 : i32
    return %arg0, %c0_i32, %c0_i32_0 : i32, i32, i32
  }
  func.func @transform_3(%arg0: i32) -> (i32, i32, i32) {
    %c0_i32 = arith.constant 0 : i32
    %c0_i32_0 = arith.constant 0 : i32
    %c0_i32_1 = arith.constant 0 : i32
    return %arg0, %c0_i32, %c0_i32_0 : i32, i32, i32
  }
  func.func @transform_4(%arg0: i32) -> (i32, i32, i32) {
    %c0_i32 = arith.constant 0 : i32
    %c0_i32_0 = arith.constant 0 : i32
    %c0_i32_1 = arith.constant 0 : i32
    return %arg0, %c0_i32, %c0_i32_0 : i32, i32, i32
  }
}

</mosaic_0001>

<llo_original>
// kernel: tpu_custom_call.1
$region0: #{tpu_custom_call.1}
  #allocation0 [shape = 'u32[]', space=smem, size = 0x4, offset = 0x4, fixed_abs, tag = 'smem constant byte address 0x4 - core index']
  #allocation1 [shape = 'u32[144,128]{1,0:T(1,128)}', space=vmem, size = 0x12000, scoped, tag = 'internal scratch']
  %s0 = inlined_call_operand.hbm [shape: f32[8,8,8], index: 0, kind: input, shape index: {}]
  %s1 = inlined_call_operand.hbm [shape: f32[8,8,8], index: 1, kind: input, shape index: {}]
  %s2 = inlined_call_operand.hbm [shape: f32[8,8,64], index: 2, kind: input, shape index: {}]
  %s3 = inlined_call_operand.hbm [shape: f32[8,8,64], index: 3, kind: input, shape index: {}]
  %s4 = inlined_call_operand.hbm [shape: f32[8,8,128], index: 4, kind: output, shape index: {}]
  %s5 = sld [smem:[#allocation0]]
  $region65: #{tpu_custom_call.1} parent=0
    _
  %s7 = ssub.s32 1, %s5
  %s8 = scalar_select 0, %s7, %s5
  $region1: #{tpu_custom_call.1} parent=0
    #allocation2 [shape = 'u8[16384]{0}', space=vmem, size = 0x4000, scoped, tag = 'input window, operand 0']
    #allocation3 [shape = 's32[2]{0}', space=sflag, size = 0x8, scoped, tag = 'scoped memory for tpu_custom_call.1']
    #allocation4 [shape = 's32[2]{0}', space=sflag, size = 0x8, scoped, tag = 'scoped memory for tpu_custom_call.1']
    #allocation5 [shape = 'u8[16384]{0}', space=vmem, size = 0x4000, scoped, tag = 'input window, operand 1']
    #allocation6 [shape = 's32[2]{0}', space=sflag, size = 0x8, scoped, tag = 'scoped memory for tpu_custom_call.1']
    #allocation7 [shape = 'u8[16384]{0}', space=vmem, size = 0x4000, scoped, tag = 'input window, operand 2']
    #allocation8 [shape = 'u8[16384]{0}', space=vmem, size = 0x4000, scoped, tag = 'input window, operand 3']
    #allocation9 [shape = 's32[2]{0}', space=sflag, size = 0x8, scoped, tag = 'scoped memory for tpu_custom_call.1']
    #allocation10 [shape = 'u8[16384]{0}', space=vmem, size = 0x4000, scoped, tag = 'output window, operand 0']
    %9 = vsyncpa [#allocation3], 0
    %s10 = scalar_lea.sflag [#allocation3], 1
    %11 = vsyncpa %s10, 0
    %12 = vsyncpa [#allocation6], 0
    %s13 = scalar_lea.sflag [#allocation6], 1
    %14 = vsyncpa %s13, 0
    %15 = vsyncpa [#allocation9], 0
    %s16 = scalar_lea.sflag [#allocation9], 1
    %17 = vsyncpa %s16, 0
    %18 = vsyncpa [#allocation4], 0
    %s19 = scalar_lea.sflag [#allocation4], 1
    %20 = vsyncpa %s19, 0
    loop: start=0, step=1, limit=6
    $region2: #{tpu_custom_call.1} parent=1 // loop_pre_header
      _
    $region3: #{tpu_custom_call.1} parent=1 // loop_header
      %s22 = sphi 0, %s26
      %p23 = scmp.ge.s32.totalorder %s22, 6
      %s32 = sphi 0, %s34
      %s35 = sphi 0, %s32
      %s36 = sphi 0, %s35
      %s52 = sphi 0, %s36
      %s58 = sphi 0, %s60
      %s61 = sphi 0, %s58
      %s62 = sphi 0, %s61
      %s78 = sphi 0, %s62
      %s84 = sphi 0, %s86
      %s87 = sphi 0, %s84
      %s88 = sphi 0, %s87
      %s104 = sphi 0, %s88
      %s110 = sphi 0, %s112
      %s113 = sphi 0, %s110
      %s114 = sphi 0, %s113
      %s130 = sphi 0, %s114
      %s136 = sphi 0, %s138
      %s139 = sphi 0, %s136
      %s140 = sphi 0, %s139
      %s156 = sphi 0, %s140
    $region4: #{tpu_custom_call.1} parent=1 // loop_header_branch
      %25 = sbr.rel (%p23) target = $region8
    $region5: #{tpu_custom_call.1} parent=1 // loop_body
      %s27 = ssub.s32 %s22, 1
      %s28 = ssub.s32 %s22, 2
      %s29 = sadd.s32 %s22, 1
      %s30 = ssub.s32 %s22, %s29
      %p31 = scmp.eq.s32.totalorder %s30, 0
      %s33 = sadd.s32 %s32, 1
      %s34 = scalar_select %p31, %s32, %s33
      %p37 = pneg %p31
      %p38 = scmp.eq.s32.totalorder %s22, 3
      %p39 = por %p37, %p38
      %p40 = scmp.ne.s32.totalorder %s32, %s35
      %p41 = scmp.eq.s32.totalorder %s22, 0
      %p42 = por %p40, %p41
      %p43 = scmp.ne.s32.totalorder %s32, %s35
      %p44 = scmp.eq.s32.totalorder %s27, 3
      %p45 = por %p43, %p44
      %p46 = scmp.ne.s32.totalorder %s35, %s36
      %p47 = scmp.eq.s32.totalorder %s27, 0
      %p48 = por %p46, %p47
      %p49 = scmp.ne.s32.totalorder %s35, %s36
      %p50 = scmp.eq.s32.totalorder %s28, 3
      %p51 = por %p49, %p50
      %p53 = scmp.ne.s32.totalorder %s36, %s52
      %p54 = scmp.eq.s32.totalorder %s28, 0
      %p55 = por %p53, %p54
      %s56 = ssub.s32 %s22, %s29
      %p57 = scmp.eq.s32.totalorder %s56, 0
      %s59 = sadd.s32 %s58, 1
      %s60 = scalar_select %p57, %s58, %s59
      %p63 = pneg %p57
      %p64 = scmp.eq.s32.totalorder %s22, 3
      %p65 = por %p63, %p64
      %p66 = scmp.ne.s32.totalorder %s58, %s61
      %p67 = scmp.eq.s32.totalorder %s22, 0
      %p68 = por %p66, %p67
      %p69 = scmp.ne.s32.totalorder %s58, %s61
      %p70 = scmp.eq.s32.totalorder %s27, 3
      %p71 = por %p69, %p70
      %p72 = scmp.ne.s32.totalorder %s61, %s62
      %p73 = scmp.eq.s32.totalorder %s27, 0
      %p74 = por %p72, %p73
      %p75 = scmp.ne.s32.totalorder %s61, %s62
      %p76 = scmp.eq.s32.totalorder %s28, 3
      %p77 = por %p75, %p76
      %p79 = scmp.ne.s32.totalorder %s62, %s78
      %p80 = scmp.eq.s32.totalorder %s28, 0
      %p81 = por %p79, %p80
      %s82 = ssub.s32 %s22, %s29
      %p83 = scmp.eq.s32.totalorder %s82, 0
      %s85 = sadd.s32 %s84, 1
      %s86 = scalar_select %p83, %s84, %s85
      %p89 = pneg %p83
      %p90 = scmp.eq.s32.totalorder %s22, 3
      %p91 = por %p89, %p90
      %p92 = scmp.ne.s32.totalorder %s84, %s87
      %p93 = scmp.eq.s32.totalorder %s22, 0
      %p94 = por %p92, %p93
      %p95 = scmp.ne.s32.totalorder %s84, %s87
      %p96 = scmp.eq.s32.totalorder %s27, 3
      %p97 = por %p95, %p96
      %p98 = scmp.ne.s32.totalorder %s87, %s88
      %p99 = scmp.eq.s32.totalorder %s27, 0
      %p100 = por %p98, %p99
      %p101 = scmp.ne.s32.totalorder %s87, %s88
      %p102 = scmp.eq.s32.totalorder %s28, 3
      %p103 = por %p101, %p102
      %p105 = scmp.ne.s32.totalorder %s88, %s104
      %p106 = scmp.eq.s32.totalorder %s28, 0
      %p107 = por %p105, %p106
      %s108 = ssub.s32 %s22, %s29
      %p109 = scmp.eq.s32.totalorder %s108, 0
      %s111 = sadd.s32 %s110, 1
      %s112 = scalar_select %p109, %s110, %s111
      %p115 = pneg %p109
      %p116 = scmp.eq.s32.totalorder %s22, 3
      %p117 = por %p115, %p116
      %p118 = scmp.ne.s32.totalorder %s110, %s113
      %p119 = scmp.eq.s32.totalorder %s22, 0
      %p120 = por %p118, %p119
      %p121 = scmp.ne.s32.totalorder %s110, %s113
      %p122 = scmp.eq.s32.totalorder %s27, 3
      %p123 = por %p121, %p122
      %p124 = scmp.ne.s32.totalorder %s113, %s114
      %p125 = scmp.eq.s32.totalorder %s27, 0
      %p126 = por %p124, %p125
      %p127 = scmp.ne.s32.totalorder %s113, %s114
      %p128 = scmp.eq.s32.totalorder %s28, 3
      %p129 = por %p127, %p128
      %p131 = scmp.ne.s32.totalorder %s114, %s130
      %p132 = scmp.eq.s32.totalorder %s28, 0
      %p133 = por %p131, %p132
      %s134 = ssub.s32 %s22, %s29
      %p135 = scmp.eq.s32.totalorder %s134, 0
      %s137 = sadd.s32 %s136, 1
      %s138 = scalar_select %p135, %s136, %s137
      %p141 = pneg %p135
      %p142 = scmp.eq.s32.totalorder %s22, 3
      %p143 = por %p141, %p142
      %p144 = scmp.ne.s32.totalorder %s136, %s139
      %p145 = scmp.eq.s32.totalorder %s22, 0
      %p146 = por %p144, %p145
      %p147 = scmp.ne.s32.totalorder %s136, %s139
      %p148 = scmp.eq.s32.totalorder %s27, 3
      %p149 = por %p147, %p148
      %p150 = scmp.ne.s32.totalorder %s139, %s140
      %p151 = scmp.eq.s32.totalorder %s27, 0
      %p152 = por %p150, %p151
      %p153 = scmp.ne.s32.totalorder %s139, %s140
      %p154 = scmp.eq.s32.totalorder %s28, 3
      %p155 = por %p153, %p154
      %p157 = scmp.ne.s32.totalorder %s140, %s156
      %p158 = scmp.eq.s32.totalorder %s28, 0
      %p159 = por %p157, %p158
      %p160 = scmp.le.s32.totalorder 1, %s22
      %p161 = scmp.lt.s32.totalorder %s22, 5
      %p162 = pnand %p160, %p161
      %p163 = pneg %p162
      // Predicated region
      $region9: #{tpu_custom_call.1} parent=5 // pred_check
        _
      $region10: #{tpu_custom_call.1} parent=5 // pred_check_branch
        %165 = sbr.rel (%p162) target = $region12
      $region11: #{tpu_custom_call.1} parent=5 // pred_region
        %s166 = ssub.s32 %s22, 1
      $region12: #{tpu_custom_call.1} parent=5 // pred_fallthru
        _
      %p167 = scmp.lt.s32.totalorder %s22, 4
      // Predicated region
      $region13: #{tpu_custom_call.1} parent=5 // pred_check
        %p168 = pneg %p167
      $region14: #{tpu_custom_call.1} parent=5 // pred_check_branch
        %170 = sbr.rel (%p168) target = $region16
      $region15: #{tpu_custom_call.1} parent=5 // pred_region
        // Predicated region
        $region17: #{tpu_custom_call.1} parent=15 // pred_check
          %p171 = pneg %p42
        $region18: #{tpu_custom_call.1} parent=15 // pred_check_branch
          %173 = sbr.rel (%p171) target = $region20
        $region19: #{tpu_custom_call.1} parent=15 // pred_region
          %s174 = sand.u32 %s32, 1
          %s175 = scalar_lea.sflag [#allocation3], %s174
          %s176 = sand.u32 %s32, 1
          %s177 = smul.addr %s176, 16
          %s178 = scalar_lea.vmem [#allocation2], %s177
          %s179 = smul.u32 2, %s22
          %s181 = ssub.s32 256, 256
          %182 = vsyncadd %s175, %s181
          %s183 = smul.addr %s179, 128
          %s184 = scalar_lea.hbm %s0, %s183
          %s185 = sshll.u32 %s178, 4
          %s186 = int_to_ptr.vmem [resolvable:$true] %s185
          %191 = dma.hbm_to_vmem [thread:$0]  %s184, 256, %s186, %s175, 128, 128, 8
        $region20: #{tpu_custom_call.1} parent=15 // pred_fallthru
          _
        // Predicated region
        $region21: #{tpu_custom_call.1} parent=15 // pred_check
          %p192 = pneg %p68
        $region22: #{tpu_custom_call.1} parent=15 // pred_check_branch
          %194 = sbr.rel (%p192) target = $region24
        $region23: #{tpu_custom_call.1} parent=15 // pred_region
          %s195 = sand.u32 %s22, 1
          %s196 = scalar_lea.sflag [#allocation6], %s195
          %s197 = sand.u32 %s58, 1
          %s198 = smul.addr %s197, 16
          %s199 = scalar_lea.vmem [#allocation5], %s198
          %s200 = smul.u32 2, %s22
          %s202 = ssub.s32 256, 256
          %203 = vsyncadd %s196, %s202
          %s204 = smul.addr %s200, 128
          %s205 = scalar_lea.hbm %s1, %s204
          %s206 = sshll.u32 %s199, 4
          %s207 = int_to_ptr.vmem [resolvable:$true] %s206
          %212 = dma.hbm_to_vmem [thread:$0]  %s205, 256, %s207, %s196, 128, 128, 8
        $region24: #{tpu_custom_call.1} parent=15 // pred_fallthru
          _
        // Predicated region
        $region25: #{tpu_custom_call.1} parent=15 // pred_check
          %p213 = pneg %p94
        $region26: #{tpu_custom_call.1} parent=15 // pred_check_branch
          %215 = sbr.rel (%p213) target = $region28
        $region27: #{tpu_custom_call.1} parent=15 // pred_region
          %s216 = sand.u32 %s22, 1
          %s217 = scalar_lea.sflag [#allocation6], %s216
          %s218 = sand.u32 %s84, 1
          %s219 = smul.addr %s218, 16
          %s220 = scalar_lea.vmem [#allocation7], %s219
          %s221 = smul.u32 2, %s22
          %s223 = ssub.s32 256, 256
          %224 = vsyncadd %s217, %s223
          %s225 = smul.addr %s221, 128
          %s226 = scalar_lea.hbm %s2, %s225
          %s227 = sshll.u32 %s220, 4
          %s228 = int_to_ptr.vmem [resolvable:$true] %s227
          %233 = dma.hbm_to_vmem [thread:$0]  %s226, 256, %s228, %s217, 128, 128, 8
        $region28: #{tpu_custom_call.1} parent=15 // pred_fallthru
          _
        // Predicated region
        $region29: #{tpu_custom_call.1} parent=15 // pred_check
          %p234 = pneg %p120
        $region30: #{tpu_custom_call.1} parent=15 // pred_check_branch
          %236 = sbr.rel (%p234) target = $region32
        $region31: #{tpu_custom_call.1} parent=15 // pred_region
          %s237 = sand.u32 %s110, 1
          %s238 = scalar_lea.sflag [#allocation9], %s237
          %s239 = sand.u32 %s110, 1
          %s240 = smul.addr %s239, 16
          %s241 = scalar_lea.vmem [#allocation8], %s240
          %s242 = smul.u32 2, %s22
          %s244 = ssub.s32 256, 256
          %245 = vsyncadd %s238, %s244
          %s246 = smul.addr %s242, 128
          %s247 = scalar_lea.hbm %s3, %s246
          %s248 = sshll.u32 %s241, 4
          %s249 = int_to_ptr.vmem [resolvable:$true] %s248
          %254 = dma.hbm_to_vmem [thread:$0]  %s247, 256, %s249, %s238, 128, 128, 8
        $region32: #{tpu_custom_call.1} parent=15 // pred_fallthru
          _
      $region16: #{tpu_custom_call.1} parent=5 // pred_fallthru
        _
      %p255 = scmp.le.s32.totalorder 1, %s22
      %p256 = scmp.lt.s32.totalorder %s22, 5
      %p257 = pnand %p255, %p256
      %p258 = pneg %p257
      // Predicated region
      $region33: #{tpu_custom_call.1} parent=5 // pred_check
        _
      $region34: #{tpu_custom_call.1} parent=5 // pred_check_branch
        %260 = sbr.rel (%p257) target = $region36
      $region35: #{tpu_custom_call.1} parent=5 // pred_region
        %s261 = ssub.s32 %s22, 1
        %s262 = sand.u32 %s35, 1
        %s263 = scalar_lea.sflag [#allocation3], %s262
        %s264 = sand.u32 %s35, 1
        %s265 = smul.addr %s264, 16
        %s266 = scalar_lea.vmem [#allocation2], %s265
        // Predicated region
        $region37: #{tpu_custom_call.1} parent=35 // pred_check
          %p267 = pneg %p48
        $region38: #{tpu_custom_call.1} parent=35 // pred_check_branch
          %269 = sbr.rel (%p267) target = $region40
        $region39: #{tpu_custom_call.1} parent=35 // pred_region
          %270 = dma.done %s263, 256
        $region40: #{tpu_custom_call.1} parent=35 // pred_fallthru
          _
        %s271 = sand.u32 %s27, 1
        %s272 = scalar_lea.sflag [#allocation6], %s271
        %s273 = sand.u32 %s61, 1
        %s274 = smul.addr %s273, 16
        %s275 = scalar_lea.vmem [#allocation5], %s274
        // Predicated region
        $region41: #{tpu_custom_call.1} parent=35 // pred_check
          %p276 = pneg %p74
        $region42: #{tpu_custom_call.1} parent=35 // pred_check_branch
          %278 = sbr.rel (%p276) target = $region44
        $region43: #{tpu_custom_call.1} parent=35 // pred_region
          %279 = dma.done %s272, 256
        $region44: #{tpu_custom_call.1} parent=35 // pred_fallthru
          _
        %s280 = sand.u32 %s27, 1
        %s281 = scalar_lea.sflag [#allocation6], %s280
        %s282 = sand.u32 %s87, 1
        %s283 = smul.addr %s282, 16
        %s284 = scalar_lea.vmem [#allocation7], %s283
        // Predicated region
        $region45: #{tpu_custom_call.1} parent=35 // pred_check
          %p285 = pneg %p100
        $region46: #{tpu_custom_call.1} parent=35 // pred_check_branch
          %287 = sbr.rel (%p285) target = $region48
        $region47: #{tpu_custom_call.1} parent=35 // pred_region
          %288 = dma.done %s281, 256
        $region48: #{tpu_custom_call.1} parent=35 // pred_fallthru
          _
        %s289 = sand.u32 %s113, 1
        %s290 = scalar_lea.sflag [#allocation9], %s289
        %s291 = sand.u32 %s113, 1
        %s292 = smul.addr %s291, 16
        %s293 = scalar_lea.vmem [#allocation8], %s292
        // Predicated region
        $region49: #{tpu_custom_call.1} parent=35 // pred_check
          %p294 = pneg %p126
        $region50: #{tpu_custom_call.1} parent=35 // pred_check_branch
          %296 = sbr.rel (%p294) target = $region52
        $region51: #{tpu_custom_call.1} parent=35 // pred_region
          %297 = dma.done %s290, 256
        $region52: #{tpu_custom_call.1} parent=35 // pred_fallthru
          _
        %s298 = sand.u32 %s35, 1
        %s299 = scalar_lea.sflag [#allocation3], %s298
        %s300 = sand.u32 %s35, 1
        %s301 = smul.addr %s300, 16
        %s302 = scalar_lea.vmem [#allocation2], %s301
        %p303 = pneg %p48
        %p304 = pneg %p45
        %s305 = sand.u32 %s27, 1
        %s306 = scalar_lea.sflag [#allocation6], %s305
        %s307 = sand.u32 %s61, 1
        %s308 = smul.addr %s307, 16
        %s309 = scalar_lea.vmem [#allocation5], %s308
        %p310 = pneg %p74
        %p311 = pneg %p71
        %s312 = sand.u32 %s27, 1
        %s313 = scalar_lea.sflag [#allocation6], %s312
        %s314 = sand.u32 %s87, 1
        %s315 = smul.addr %s314, 16
        %s316 = scalar_lea.vmem [#allocation7], %s315
        %p317 = pneg %p100
        %p318 = pneg %p97
        %s319 = sand.u32 %s113, 1
        %s320 = scalar_lea.sflag [#allocation9], %s319
        %s321 = sand.u32 %s113, 1
        %s322 = smul.addr %s321, 16
        %s323 = scalar_lea.vmem [#allocation8], %s322
        %p324 = pneg %p126
        %p325 = pneg %p123
        %p326 = pneg %p152
        %p327 = pneg %p149
        %s328 = sand.u32 %s139, 1
        %s329 = scalar_lea.sflag [#allocation4], %s328
        %s330 = sand.u32 %s139, 1
        %s331 = smul.addr %s330, 16
        %s332 = scalar_lea.vmem [#allocation10], %s331
        %s333 = smul.u32 2, %s27
        %s334 = smul.u32 2, %s27
        %s335 = smul.u32 2, %s27
        %s336 = smul.u32 2, %s27
        %s337 = smul.u32 2, %s27
        %v338 = vld [vmem:[%s266] sm:$0xff]
        %v339 = vld [vmem:[%s266 + $0x8] sm:$0xff]
        %v340 = vld [vmem:[%s275] sm:$0xff]
        %v341 = vld [vmem:[%s275 + $0x8] sm:$0xff]
        %v342 = vld [vmem:[%s284] sm:$0xff]
        %v343 = vld [vmem:[%s284 + $0x8] sm:$0xff]
        %v344 = vld [vmem:[%s293] sm:$0xff]
        %v345 = vld [vmem:[%s293 + $0x8] sm:$0xff]
        %vm346 = vcmask 64512
        %v348 = vsel %vm346, %v338, 0
        %350 = vmatprep.subr.mxu0 0.0
        %v351 = vand.u32 %v342, 4294901760
        %352 = vmatpush1.msra.mxu0 %v351
        %353 = vmatprep.subr.mxu0 0.0
        %354 = vmatpush1.msra.mxu0 0.0
        %355 = vmatprep.subr.mxu0 0.0
        %356 = vmatpush1.msra.mxu0 0.0
        %357 = vmatprep.subr.mxu0 0.0
        %358 = vmatpush1.msra.mxu0 0.0
        %359 = vmatprep.subr.mxu0 0.0
        %360 = vmatpush1.msra.mxu0 0.0
        %361 = vmatprep.subr.mxu0 0.0
        %362 = vmatpush1.msra.mxu0 0.0
        %363 = vmatprep.subr.mxu0 0.0
        %364 = vmatpush1.msra.mxu0 0.0
        %365 = vmatprep.subr.mxu0 0.0
        %366 = vmatpush1.msra.mxu0 0.0
        %367 = vmatprep.subr.mxu0 0.0
        %368 = vmatpush1.msra.mxu0 0.0
        %369 = vmatprep.subr.mxu0 0.0
        %370 = vmatpush1.msra.mxu0 0.0
        %371 = vmatprep.subr.mxu0 0.0
        %372 = vmatpush1.msra.mxu0 0.0
        %373 = vmatprep.subr.mxu0 0.0
        %374 = vmatpush1.msra.mxu0 0.0
        %375 = vmatprep.subr.mxu0 0.0
        %376 = vmatpush1.msra.mxu0 0.0
        %377 = vmatprep.subr.mxu0 0.0
        %378 = vmatpush1.msra.mxu0 0.0
        %379 = vmatprep.subr.mxu0 0.0
        %380 = vmatpush1.msra.mxu0 0.0
        %381 = vmatprep.subr.mxu0 0.0
        %382 = vmatpush1.msra.mxu0 0.0
        %383 = vmatprep.subr.mxu0 0.0
        %384 = vmatpush1.msra.mxu0 0.0
        %385 = vmatprep.subr.mxu0 0.0
        %386 = vmatpush1.msra.mxu0 0.0
        %387 = vmatprep.subr.mxu0 0.0
        %388 = vmatpush1.msra.mxu0 0.0
        %389 = vmatprep.subr.mxu0 0.0
        %390 = vmatpush1.msra.mxu0 0.0
        %391 = vmatprep.subr.mxu0 0.0
        %392 = vmatpush1.msra.mxu0 0.0
        %393 = vmatprep.subr.mxu0 0.0
        %394 = vmatpush1.msra.mxu0 0.0
        %395 = vmatprep.subr.mxu0 0.0
        %396 = vmatpush1.msra.mxu0 0.0
        %397 = vmatprep.subr.mxu0 0.0
        %398 = vmatpush1.msra.mxu0 0.0
        %399 = vmatprep.subr.mxu0 0.0
        %400 = vmatpush1.msra.mxu0 0.0
        %401 = vmatprep.subr.mxu0 0.0
        %402 = vmatpush1.msra.mxu0 0.0
        %403 = vmatprep.subr.mxu0 0.0
        %404 = vmatpush1.msra.mxu0 0.0
        %405 = vmatprep.subr.mxu0 0.0
        %406 = vmatpush1.msra.mxu0 0.0
        %407 = vmatprep.subr.mxu0 0.0
        %408 = vmatpush1.msra.mxu0 0.0
        %409 = vmatprep.subr.mxu0 0.0
        %410 = vmatpush1.msra.mxu0 0.0
        %411 = vmatprep.subr.mxu0 0.0
        %412 = vmatpush1.msra.mxu0 0.0
        %413 = vmatprep.subr.mxu0 0.0
        %414 = vmatpush1.msra.mxu0 0.0
        %415 = vmatprep.mubr.f32.mxu0 0.0
        %v416 = vand.u32 %v348, 4294901760
        %v417 = vsub.f32 %v348, %v416
        %v418 = vand.u32 %v417, 4294901760
        %v419 = vsub.f32 %v417, %v418
        %v420 = vand.u32 %v419, 4294901760
        %421 = vmatmul.mubr.f32.gmra.mrb[0].mxu0 %v420
        %v422 = vpop.f32.mrb[0].mxu0
        %v423 = vadd.f32 0.0, %v422
        %v424 = vpop.f32.mrb[0].mxu0
        %425 = vdwg.mxu0
        %426 = vmatprep.subr.mxu0 0.0
        %v427 = vand.u32 %v342, 4294901760
        %v428 = vsub.f32 %v342, %v427
        %v429 = vand.u32 %v428, 4294901760
        %v430 = vsub.f32 %v428, %v429
        %v431 = vand.u32 %v430, 4294901760
        %432 = vmatpush1.msra.mxu0 %v431
        %433 = vmatprep.subr.mxu0 0.0
        %434 = vmatpush1.msra.mxu0 0.0
        %435 = vmatprep.subr.mxu0 0.0
        %436 = vmatpush1.msra.mxu0 0.0
        %437 = vmatprep.subr.mxu0 0.0
        %438 = vmatpush1.msra.mxu0 0.0
        %439 = vmatprep.subr.mxu0 0.0
        %440 = vmatpush1.msra.mxu0 0.0
        %441 = vmatprep.subr.mxu0 0.0
        %442 = vmatpush1.msra.mxu0 0.0
        %443 = vmatprep.subr.mxu0 0.0
        %444 = vmatpush1.msra.mxu0 0.0
        %445 = vmatprep.subr.mxu0 0.0
        %446 = vmatpush1.msra.mxu0 0.0
        %447 = vmatprep.subr.mxu0 0.0
        %448 = vmatpush1.msra.mxu0 0.0
        %449 = vmatprep.subr.mxu0 0.0
        %450 = vmatpush1.msra.mxu0 0.0
        %451 = vmatprep.subr.mxu0 0.0
        %452 = vmatpush1.msra.mxu0 0.0
        %453 = vmatprep.subr.mxu0 0.0
        %454 = vmatpush1.msra.mxu0 0.0
        %455 = vmatprep.subr.mxu0 0.0
        %456 = vmatpush1.msra.mxu0 0.0
        %457 = vmatprep.subr.mxu0 0.0
        %458 = vmatpush1.msra.mxu0 0.0
        %459 = vmatprep.subr.mxu0 0.0
        %460 = vmatpush1.msra.mxu0 0.0
        %461 = vmatprep.subr.mxu0 0.0
        %462 = vmatpush1.msra.mxu0 0.0
        %463 = vmatprep.subr.mxu0 0.0
        %464 = vmatpush1.msra.mxu0 0.0
        %465 = vmatprep.subr.mxu0 0.0
        %466 = vmatpush1.msra.mxu0 0.0
        %467 = vmatprep.subr.mxu0 0.0
        %468 = vmatpush1.msra.mxu0 0.0
        %469 = vmatprep.subr.mxu0 0.0
        %470 = vmatpush1.msra.mxu0 0.0
        %471 = vmatprep.subr.mxu0 0.0
        %472 = vmatpush1.msra.mxu0 0.0
        %473 = vmatprep.subr.mxu0 0.0
        %474 = vmatpush1.msra.mxu0 0.0
        %475 = vmatprep.subr.mxu0 0.0
        %476 = vmatpush1.msra.mxu0 0.0
        %477 = vmatprep.subr.mxu0 0.0
        %478 = vmatpush1.msra.mxu0 0.0
        %479 = vmatprep.subr.mxu0 0.0
        %480 = vmatpush1.msra.mxu0 0.0
        %481 = vmatprep.subr.mxu0 0.0
        %482 = vmatpush1.msra.mxu0 0.0
        %483 = vmatprep.subr.mxu0 0.0
        %484 = vmatpush1.msra.mxu0 0.0
        %485 = vmatprep.subr.mxu0 0.0
        %486 = vmatpush1.msra.mxu0 0.0
        %487 = vmatprep.subr.mxu0 0.0
        %488 = vmatpush1.msra.mxu0 0.0
        %489 = vmatprep.subr.mxu0 0.0
        %490 = vmatpush1.msra.mxu0 0.0
        %491 = vmatprep.subr.mxu0 0.0
        %492 = vmatpush1.msra.mxu0 0.0
        %493 = vmatprep.subr.mxu0 0.0
        %494 = vmatpush1.msra.mxu0 0.0
        %495 = vmatprep.mubr.f32.mxu0 0.0
        %v496 = vand.u32 %v348, 4294901760
        %497 = vmatmul.mubr.f32.gmra.mrb[0].mxu0 %v496
        %v498 = vpop.f32.mrb[0].mxu0
        %v499 = vadd.f32 %v423, %v498
        %v500 = vpop.f32.mrb[0].mxu0
        %501 = vdwg.mxu0
        %502 = vmatprep.subr.mxu0 0.0
        %v503 = vand.u32 %v342, 4294901760
        %v504 = vsub.f32 %v342, %v503
        %505 = vmatpush1.msra.mxu0 %v504
        %506 = vmatprep.subr.mxu0 0.0
        %507 = vmatpush1.msra.mxu0 0.0
        %508 = vmatprep.subr.mxu0 0.0
        %509 = vmatpush1.msra.mxu0 0.0
        %510 = vmatprep.subr.mxu0 0.0
        %511 = vmatpush1.msra.mxu0 0.0
        %512 = vmatprep.subr.mxu0 0.0
        %513 = vmatpush1.msra.mxu0 0.0
        %514 = vmatprep.subr.mxu0 0.0
        %515 = vmatpush1.msra.mxu0 0.0
        %516 = vmatprep.subr.mxu0 0.0
        %517 = vmatpush1.msra.mxu0 0.0
        %518 = vmatprep.subr.mxu0 0.0
        %519 = vmatpush1.msra.mxu0 0.0
        %520 = vmatprep.subr.mxu0 0.0
        %521 = vmatpush1.msra.mxu0 0.0
        %522 = vmatprep.subr.mxu0 0.0
        %523 = vmatpush1.msra.mxu0 0.0
        %524 = vmatprep.subr.mxu0 0.0
        %525 = vmatpush1.msra.mxu0 0.0
        %526 = vmatprep.subr.mxu0 0.0
        %527 = vmatpush1.msra.mxu0 0.0
        %528 = vmatprep.subr.mxu0 0.0
        %529 = vmatpush1.msra.mxu0 0.0
        %530 = vmatprep.subr.mxu0 0.0
        %531 = vmatpush1.msra.mxu0 0.0
        %532 = vmatprep.subr.mxu0 0.0
        %533 = vmatpush1.msra.mxu0 0.0
        %534 = vmatprep.subr.mxu0 0.0
        %535 = vmatpush1.msra.mxu0 0.0
        %536 = vmatprep.subr.mxu0 0.0
        %537 = vmatpush1.msra.mxu0 0.0
        %538 = vmatprep.subr.mxu0 0.0
        %539 = vmatpush1.msra.mxu0 0.0
        %540 = vmatprep.subr.mxu0 0.0
        %541 = vmatpush1.msra.mxu0 0.0
        %542 = vmatprep.subr.mxu0 0.0
        %543 = vmatpush1.msra.mxu0 0.0
        %544 = vmatprep.subr.mxu0 0.0
        %545 = vmatpush1.msra.mxu0 0.0
        %546 = vmatprep.subr.mxu0 0.0
        %547 = vmatpush1.msra.mxu0 0.0
        %548 = vmatprep.subr.mxu0 0.0
        %549 = vmatpush1.msra.mxu0 0.0
        %550 = vmatprep.subr.mxu0 0.0
        %551 = vmatpush1.msra.mxu0 0.0
        %552 = vmatprep.subr.mxu0 0.0
        %553 = vmatpush1.msra.mxu0 0.0
        %554 = vmatprep.subr.mxu0 0.0
        %555 = vmatpush1.msra.mxu0 0.0
        %556 = vmatprep.subr.mxu0 0.0
        %557 = vmatpush1.msra.mxu0 0.0
        %558 = vmatprep.subr.mxu0 0.0
        %559 = vmatpush1.msra.mxu0 0.0
        %560 = vmatprep.subr.mxu0 0.0
        %561 = vmatpush1.msra.mxu0 0.0
        %562 = vmatprep.subr.mxu0 0.0
        %563 = vmatpush1.msra.mxu0 0.0
        %564 = vmatprep.subr.mxu0 0.0
        %565 = vmatpush1.msra.mxu0 0.0
        %566 = vmatprep.subr.mxu0 0.0
        %567 = vmatpush1.msra.mxu0 0.0
        %568 = vmatprep.mubr.f32.mxu0 0.0
        %v569 = vand.u32 %v348, 4294901760
        %v570 = vsub.f32 %v348, %v569
        %571 = vmatmul.mubr.f32.gmra.mrb[0].mxu0 %v570
        %v572 = vpop.f32.mrb[0].mxu0
        %v573 = vadd.f32 %v499, %v572
        %v574 = vpop.f32.mrb[0].mxu0
        %575 = vdwg.mxu0
        %576 = vmatprep.subr.mxu0 0.0
        %v577 = vand.u32 %v342, 4294901760
        %578 = vmatpush1.msra.mxu0 %v577
        %579 = vmatprep.subr.mxu0 0.0
        %580 = vmatpush1.msra.mxu0 0.0
        %581 = vmatprep.subr.mxu0 0.0
        %582 = vmatpush1.msra.mxu0 0.0
        %583 = vmatprep.subr.mxu0 0.0
        %584 = vmatpush1.msra.mxu0 0.0
        %585 = vmatprep.subr.mxu0 0.0
        %586 = vmatpush1.msra.mxu0 0.0
        %587 = vmatprep.subr.mxu0 0.0
        %588 = vmatpush1.msra.mxu0 0.0
        %589 = vmatprep.subr.mxu0 0.0
        %590 = vmatpush1.msra.mxu0 0.0
        %591 = vmatprep.subr.mxu0 0.0
        %592 = vmatpush1.msra.mxu0 0.0
        %593 = vmatprep.subr.mxu0 0.0
        %594 = vmatpush1.msra.mxu0 0.0
        %595 = vmatprep.subr.mxu0 0.0
        %596 = vmatpush1.msra.mxu0 0.0
        %597 = vmatprep.subr.mxu0 0.0
        %598 = vmatpush1.msra.mxu0 0.0
        %599 = vmatprep.subr.mxu0 0.0
        %600 = vmatpush1.msra.mxu0 0.0
        %601 = vmatprep.subr.mxu0 0.0
        %602 = vmatpush1.msra.mxu0 0.0
        %603 = vmatprep.subr.mxu0 0.0
        %604 = vmatpush1.msra.mxu0 0.0
        %605 = vmatprep.subr.mxu0 0.0
        %606 = vmatpush1.msra.mxu0 0.0
        %607 = vmatprep.subr.mxu0 0.0
        %608 = vmatpush1.msra.mxu0 0.0
        %609 = vmatprep.subr.mxu0 0.0
        %610 = vmatpush1.msra.mxu0 0.0
        %611 = vmatprep.subr.mxu0 0.0
        %612 = vmatpush1.msra.mxu0 0.0
        %613 = vmatprep.subr.mxu0 0.0
        %614 = vmatpush1.msra.mxu0 0.0
        %615 = vmatprep.subr.mxu0 0.0
        %616 = vmatpush1.msra.mxu0 0.0
        %617 = vmatprep.subr.mxu0 0.0
        %618 = vmatpush1.msra.mxu0 0.0
        %619 = vmatprep.subr.mxu0 0.0
        %620 = vmatpush1.msra.mxu0 0.0
        %621 = vmatprep.subr.mxu0 0.0
        %622 = vmatpush1.msra.mxu0 0.0
        %623 = vmatprep.subr.mxu0 0.0
        %624 = vmatpush1.msra.mxu0 0.0
        %625 = vmatprep.subr.mxu0 0.0
        %626 = vmatpush1.msra.mxu0 0.0
        %627 = vmatprep.subr.mxu0 0.0
        %628 = vmatpush1.msra.mxu0 0.0
        %629 = vmatprep.subr.mxu0 0.0
        %630 = vmatpush1.msra.mxu0 0.0
        %631 = vmatprep.subr.mxu0 0.0
        %632 = vmatpush1.msra.mxu0 0.0
        %633 = vmatprep.subr.mxu0 0.0
        %634 = vmatpush1.msra.mxu0 0.0
        %635 = vmatprep.subr.mxu0 0.0
        %636 = vmatpush1.msra.mxu0 0.0
        %637 = vmatprep.subr.mxu0 0.0
        %638 = vmatpush1.msra.mxu0 0.0
        %639 = vmatprep.subr.mxu0 0.0
        %640 = vmatpush1.msra.mxu0 0.0
        %641 = vmatprep.mubr.f32.mxu0 0.0
        %v642 = vand.u32 %v348, 4294901760
        %v643 = vsub.f32 %v348, %v642
        %v644 = vand.u32 %v643, 4294901760
        %645 = vmatmul.mubr.f32.gmra.mrb[0].mxu0 %v644
        %v646 = vpop.f32.mrb[0].mxu0
        %v647 = vadd.f32 %v573, %v646
        %v648 = vpop.f32.mrb[0].mxu0
        %649 = vdwg.mxu0
        %650 = vmatprep.subr.mxu0 0.0
        %v651 = vand.u32 %v342, 4294901760
        %v652 = vsub.f32 %v342, %v651
        %v653 = vand.u32 %v652, 4294901760
        %654 = vmatpush1.msra.mxu0 %v653
        %655 = vmatprep.subr.mxu0 0.0
        %656 = vmatpush1.msra.mxu0 0.0
        %657 = vmatprep.subr.mxu0 0.0
        %658 = vmatpush1.msra.mxu0 0.0
        %659 = vmatprep.subr.mxu0 0.0
        %660 = vmatpush1.msra.mxu0 0.0
        %661 = vmatprep.subr.mxu0 0.0
        %662 = vmatpush1.msra.mxu0 0.0
        %663 = vmatprep.subr.mxu0 0.0
        %664 = vmatpush1.msra.mxu0 0.0
        %665 = vmatprep.subr.mxu0 0.0
        %666 = vmatpush1.msra.mxu0 0.0
        %667 = vmatprep.subr.mxu0 0.0
        %668 = vmatpush1.msra.mxu0 0.0
        %669 = vmatprep.subr.mxu0 0.0
        %670 = vmatpush1.msra.mxu0 0.0
        %671 = vmatprep.subr.mxu0 0.0
        %672 = vmatpush1.msra.mxu0 0.0
        %673 = vmatprep.subr.mxu0 0.0
        %674 = vmatpush1.msra.mxu0 0.0
        %675 = vmatprep.subr.mxu0 0.0
        %676 = vmatpush1.msra.mxu0 0.0
        %677 = vmatprep.subr.mxu0 0.0
        %678 = vmatpush1.msra.mxu0 0.0
        %679 = vmatprep.subr.mxu0 0.0
        %680 = vmatpush1.msra.mxu0 0.0
        %681 = vmatprep.subr.mxu0 0.0
        %682 = vmatpush1.msra.mxu0 0.0
        %683 = vmatprep.subr.mxu0 0.0
        %684 = vmatpush1.msra.mxu0 0.0
        %685 = vmatprep.subr.mxu0 0.0
        %686 = vmatpush1.msra.mxu0 0.0
        %687 = vmatprep.subr.mxu0 0.0
        %688 = vmatpush1.msra.mxu0 0.0
        %689 = vmatprep.subr.mxu0 0.0
        %690 = vmatpush1.msra.mxu0 0.0
        %691 = vmatprep.subr.mxu0 0.0
        %692 = vmatpush1.msra.mxu0 0.0
        %693 = vmatprep.subr.mxu0 0.0
        %694 = vmatpush1.msra.mxu0 0.0
        %695 = vmatprep.subr.mxu0 0.0
        %696 = vmatpush1.msra.mxu0 0.0
        %697 = vmatprep.subr.mxu0 0.0
        %698 = vmatpush1.msra.mxu0 0.0
        %699 = vmatprep.subr.mxu0 0.0
        %700 = vmatpush1.msra.mxu0 0.0
        %701 = vmatprep.subr.mxu0 0.0
        %702 = vmatpush1.msra.mxu0 0.0
        %703 = vmatprep.subr.mxu0 0.0
        %704 = vmatpush1.msra.mxu0 0.0
        %705 = vmatprep.subr.mxu0 0.0
        %706 = vmatpush1.msra.mxu0 0.0
        %707 = vmatprep.subr.mxu0 0.0
        %708 = vmatpush1.msra.mxu0 0.0
        %709 = vmatprep.subr.mxu0 0.0
        %710 = vmatpush1.msra.mxu0 0.0
        %711 = vmatprep.subr.mxu0 0.0
        %712 = vmatpush1.msra.mxu0 0.0
        %713 = vmatprep.subr.mxu0 0.0
        %714 = vmatpush1.msra.mxu0 0.0
        %715 = vmatprep.subr.mxu0 0.0
        %716 = vmatpush1.msra.mxu0 0.0
        %717 = vmatprep.mubr.f32.mxu0 0.0
        %v718 = vand.u32 %v348, 4294901760
        %719 = vmatmul.mubr.f32.gmra.mrb[0].mxu0 %v718
        %v720 = vpop.f32.mrb[0].mxu0
        %v721 = vadd.f32 %v647, %v720
        %v722 = vpop.f32.mrb[0].mxu0
        %723 = vdwg.mxu0
        %724 = vmatprep.subr.mxu0 0.0
        %v725 = vand.u32 %v342, 4294901760
        %726 = vmatpush1.msra.mxu0 %v725
        %727 = vmatprep.subr.mxu0 0.0
        %728 = vmatpush1.msra.mxu0 0.0
        %729 = vmatprep.subr.mxu0 0.0
        %730 = vmatpush1.msra.mxu0 0.0
        %731 = vmatprep.subr.mxu0 0.0
        %732 = vmatpush1.msra.mxu0 0.0
        %733 = vmatprep.subr.mxu0 0.0
        %734 = vmatpush1.msra.mxu0 0.0
        %735 = vmatprep.subr.mxu0 0.0
        %736 = vmatpush1.msra.mxu0 0.0
        %737 = vmatprep.subr.mxu0 0.0
        %738 = vmatpush1.msra.mxu0 0.0
        %739 = vmatprep.subr.mxu0 0.0
        %740 = vmatpush1.msra.mxu0 0.0
        %741 = vmatprep.subr.mxu0 0.0
        %742 = vmatpush1.msra.mxu0 0.0
        %743 = vmatprep.subr.mxu0 0.0
        %744 = vmatpush1.msra.mxu0 0.0
        %745 = vmatprep.subr.mxu0 0.0
        %746 = vmatpush1.msra.mxu0 0.0
        %747 = vmatprep.subr.mxu0 0.0
        %748 = vmatpush1.msra.mxu0 0.0
        %749 = vmatprep.subr.mxu0 0.0
        %750 = vmatpush1.msra.mxu0 0.0
        %751 = vmatprep.subr.mxu0 0.0
        %752 = vmatpush1.msra.mxu0 0.0
        %753 = vmatprep.subr.mxu0 0.0
        %754 = vmatpush1.msra.mxu0 0.0
        %755 = vmatprep.subr.mxu0 0.0
        %756 = vmatpush1.msra.mxu0 0.0
        %757 = vmatprep.subr.mxu0 0.0
        %758 = vmatpush1.msra.mxu0 0.0
        %759 = vmatprep.subr.mxu0 0.0
        %760 = vmatpush1.msra.mxu0 0.0
        %761 = vmatprep.subr.mxu0 0.0
        %762 = vmatpush1.msra.mxu0 0.0
        %763 = vmatprep.subr.mxu0 0.0
        %764 = vmatpush1.msra.mxu0 0.0
        %765 = vmatprep.subr.mxu0 0.0
        %766 = vmatpush1.msra.mxu0 0.0
        %767 = vmatprep.subr.mxu0 0.0
        %768 = vmatpush1.msra.mxu0 0.0
        %769 = vmatprep.subr.mxu0 0.0
        %770 = vmatpush1.msra.mxu0 0.0
        %771 = vmatprep.subr.mxu0 0.0
        %772 = vmatpush1.msra.mxu0 0.0
        %773 = vmatprep.subr.mxu0 0.0
        %774 = vmatpush1.msra.mxu0 0.0
        %775 = vmatprep.subr.mxu0 0.0
        %776 = vmatpush1.msra.mxu0 0.0
        %777 = vmatprep.subr.mxu0 0.0
        %778 = vmatpush1.msra.mxu0 0.0
        %779 = vmatprep.subr.mxu0 0.0
        %780 = vmatpush1.msra.mxu0 0.0
        %781 = vmatprep.subr.mxu0 0.0
        %782 = vmatpush1.msra.mxu0 0.0
        %783 = vmatprep.subr.mxu0 0.0
        %784 = vmatpush1.msra.mxu0 0.0
        %785 = vmatprep.subr.mxu0 0.0
        %786 = vmatpush1.msra.mxu0 0.0
        %787 = vmatprep.subr.mxu0 0.0
        %788 = vmatpush1.msra.mxu0 0.0
        %789 = vmatprep.mubr.f32.mxu0 0.0
        %v790 = vand.u32 %v348, 4294901760
        %791 = vmatmul.mubr.f32.gmra.mrb[0].mxu0 %v790
        %v792 = vpop.f32.mrb[0].mxu0
        %v793 = vadd.f32 %v721, %v792
        %v794 = vpop.f32.mrb[0].mxu0
        %795 = vdwg.mxu0
        %v797 = vsel %vm346, %v339, 0
        %799 = vmatprep.subr.mxu0 0.0
        %v800 = vand.u32 %v343, 4294901760
        %801 = vmatpush1.msra.mxu0 %v800
        %802 = vmatprep.subr.mxu0 0.0
        %803 = vmatpush1.msra.mxu0 0.0
        %804 = vmatprep.subr.mxu0 0.0
        %805 = vmatpush1.msra.mxu0 0.0
        %806 = vmatprep.subr.mxu0 0.0
        %807 = vmatpush1.msra.mxu0 0.0
        %808 = vmatprep.subr.mxu0 0.0
        %809 = vmatpush1.msra.mxu0 0.0
        %810 = vmatprep.subr.mxu0 0.0
        %811 = vmatpush1.msra.mxu0 0.0
        %812 = vmatprep.subr.mxu0 0.0
        %813 = vmatpush1.msra.mxu0 0.0
        %814 = vmatprep.subr.mxu0 0.0
        %815 = vmatpush1.msra.mxu0 0.0
        %816 = vmatprep.subr.mxu0 0.0
        %817 = vmatpush1.msra.mxu0 0.0
        %818 = vmatprep.subr.mxu0 0.0
        %819 = vmatpush1.msra.mxu0 0.0
        %820 = vmatprep.subr.mxu0 0.0
        %821 = vmatpush1.msra.mxu0 0.0
        %822 = vmatprep.subr.mxu0 0.0
        %823 = vmatpush1.msra.mxu0 0.0
        %824 = vmatprep.subr.mxu0 0.0
        %825 = vmatpush1.msra.mxu0 0.0
        %826 = vmatprep.subr.mxu0 0.0
        %827 = vmatpush1.msra.mxu0 0.0
        %828 = vmatprep.subr.mxu0 0.0
        %829 = vmatpush1.msra.mxu0 0.0
        %830 = vmatprep.subr.mxu0 0.0
        %831 = vmatpush1.msra.mxu0 0.0
        %832 = vmatprep.subr.mxu0 0.0
        %833 = vmatpush1.msra.mxu0 0.0
        %834 = vmatprep.subr.mxu0 0.0
        %835 = vmatpush1.msra.mxu0 0.0
        %836 = vmatprep.subr.mxu0 0.0
        %837 = vmatpush1.msra.mxu0 0.0
        %838 = vmatprep.subr.mxu0 0.0
        %839 = vmatpush1.msra.mxu0 0.0
        %840 = vmatprep.subr.mxu0 0.0
        %841 = vmatpush1.msra.mxu0 0.0
        %842 = vmatprep.subr.mxu0 0.0
        %843 = vmatpush1.msra.mxu0 0.0
        %844 = vmatprep.subr.mxu0 0.0
        %845 = vmatpush1.msra.mxu0 0.0
        %846 = vmatprep.subr.mxu0 0.0
        %847 = vmatpush1.msra.mxu0 0.0
        %848 = vmatprep.subr.mxu0 0.0
        %849 = vmatpush1.msra.mxu0 0.0
        %850 = vmatprep.subr.mxu0 0.0
        %851 = vmatpush1.msra.mxu0 0.0
        %852 = vmatprep.subr.mxu0 0.0
        %853 = vmatpush1.msra.mxu0 0.0
        %854 = vmatprep.subr.mxu0 0.0
        %855 = vmatpush1.msra.mxu0 0.0
        %856 = vmatprep.subr.mxu0 0.0
        %857 = vmatpush1.msra.mxu0 0.0
        %858 = vmatprep.subr.mxu0 0.0
        %859 = vmatpush1.msra.mxu0 0.0
        %860 = vmatprep.subr.mxu0 0.0
        %861 = vmatpush1.msra.mxu0 0.0
        %862 = vmatprep.subr.mxu0 0.0
        %863 = vmatpush1.msra.mxu0 0.0
        %864 = vmatprep.mubr.f32.mxu0 0.0
        %v865 = vand.u32 %v797, 4294901760
        %v866 = vsub.f32 %v797, %v865
        %v867 = vand.u32 %v866, 4294901760
        %v868 = vsub.f32 %v866, %v867
        %v869 = vand.u32 %v868, 4294901760
        %870 = vmatmul.mubr.f32.gmra.mrb[0].mxu0 %v869
        %v871 = vpop.f32.mrb[0].mxu0
        %v872 = vadd.f32 0.0, %v871
        %v873 = vpop.f32.mrb[0].mxu0
        %874 = vdwg.mxu0
        %875 = vmatprep.subr.mxu0 0.0
        %v876 = vand.u32 %v343, 4294901760
        %v877 = vsub.f32 %v343, %v876
        %v878 = vand.u32 %v877, 4294901760
        %v879 = vsub.f32 %v877, %v878
        %v880 = vand.u32 %v879, 4294901760
        %881 = vmatpush1.msra.mxu0 %v880
        %882 = vmatprep.subr.mxu0 0.0
        %883 = vmatpush1.msra.mxu0 0.0
        %884 = vmatprep.subr.mxu0 0.0
        %885 = vmatpush1.msra.mxu0 0.0
        %886 = vmatprep.subr.mxu0 0.0
        %887 = vmatpush1.msra.mxu0 0.0
        %888 = vmatprep.subr.mxu0 0.0
        %889 = vmatpush1.msra.mxu0 0.0
        %890 = vmatprep.subr.mxu0 0.0
        %891 = vmatpush1.msra.mxu0 0.0
        %892 = vmatprep.subr.mxu0 0.0
        %893 = vmatpush1.msra.mxu0 0.0
        %894 = vmatprep.subr.mxu0 0.0
        %895 = vmatpush1.msra.mxu0 0.0
        %896 = vmatprep.subr.mxu0 0.0
        %897 = vmatpush1.msra.mxu0 0.0
        %898 = vmatprep.subr.mxu0 0.0
        %899 = vmatpush1.msra.mxu0 0.0
        %900 = vmatprep.subr.mxu0 0.0
        %901 = vmatpush1.msra.mxu0 0.0
        %902 = vmatprep.subr.mxu0 0.0
        %903 = vmatpush1.msra.mxu0 0.0
        %904 = vmatprep.subr.mxu0 0.0
        %905 = vmatpush1.msra.mxu0 0.0
        %906 = vmatprep.subr.mxu0 0.0
        %907 = vmatpush1.msra.mxu0 0.0
        %908 = vmatprep.subr.mxu0 0.0
        %909 = vmatpush1.msra.mxu0 0.0
        %910 = vmatprep.subr.mxu0 0.0
        %911 = vmatpush1.msra.mxu0 0.0
        %912 = vmatprep.subr.mxu0 0.0
        %913 = vmatpush1.msra.mxu0 0.0
        %914 = vmatprep.subr.mxu0 0.0
        %915 = vmatpush1.msra.mxu0 0.0
        %916 = vmatprep.subr.mxu0 0.0
        %917 = vmatpush1.msra.mxu0 0.0
        %918 = vmatprep.subr.mxu0 0.0
        %919 = vmatpush1.msra.mxu0 0.0
        %920 = vmatprep.subr.mxu0 0.0
        %921 = vmatpush1.msra.mxu0 0.0
        %922 = vmatprep.subr.mxu0 0.0
        %923 = vmatpush1.msra.mxu0 0.0
        %924 = vmatprep.subr.mxu0 0.0
        %925 = vmatpush1.msra.mxu0 0.0
        %926 = vmatprep.subr.mxu0 0.0
        %927 = vmatpush1.msra.mxu0 0.0
        %928 = vmatprep.subr.mxu0 0.0
        %929 = vmatpush1.msra.mxu0 0.0
        %930 = vmatprep.subr.mxu0 0.0
        %931 = vmatpush1.msra.mxu0 0.0
        %932 = vmatprep.subr.mxu0 0.0
        %933 = vmatpush1.msra.mxu0 0.0
        %934 = vmatprep.subr.mxu0 0.0
        %935 = vmatpush1.msra.mxu0 0.0
        %936 = vmatprep.subr.mxu0 0.0
        %937 = vmatpush1.msra.mxu0 0.0
        %938 = vmatprep.subr.mxu0 0.0
        %939 = vmatpush1.msra.mxu0 0.0
        %940 = vmatprep.subr.mxu0 0.0
        %941 = vmatpush1.msra.mxu0 0.0
        %942 = vmatprep.subr.mxu0 0.0
        %943 = vmatpush1.msra.mxu0 0.0
        %944 = vmatprep.mubr.f32.mxu0 0.0
        %v945 = vand.u32 %v797, 4294901760
        %946 = vmatmul.mubr.f32.gmra.mrb[0].mxu0 %v945
        %v947 = vpop.f32.mrb[0].mxu0
        %v948 = vadd.f32 %v872, %v947
        %v949 = vpop.f32.mrb[0].mxu0
        %950 = vdwg.mxu0
        %951 = vmatprep.subr.mxu0 0.0
        %v952 = vand.u32 %v343, 4294901760
        %v953 = vsub.f32 %v343, %v952
        %954 = vmatpush1.msra.mxu0 %v953
        %955 = vmatprep.subr.mxu0 0.0
        %956 = vmatpush1.msra.mxu0 0.0
        %957 = vmatprep.subr.mxu0 0.0
        %958 = vmatpush1.msra.mxu0 0.0
        %959 = vmatprep.subr.mxu0 0.0
        %960 = vmatpush1.msra.mxu0 0.0
        %961 = vmatprep.subr.mxu0 0.0
        %962 = vmatpush1.msra.mxu0 0.0
        %963 = vmatprep.subr.mxu0 0.0
        %964 = vmatpush1.msra.mxu0 0.0
        %965 = vmatprep.subr.mxu0 0.0
        %966 = vmatpush1.msra.mxu0 0.0
        %967 = vmatprep.subr.mxu0 0.0
        %968 = vmatpush1.msra.mxu0 0.0
        %969 = vmatprep.subr.mxu0 0.0
        %970 = vmatpush1.msra.mxu0 0.0
        %971 = vmatprep.subr.mxu0 0.0
        %972 = vmatpush1.msra.mxu0 0.0
        %973 = vmatprep.subr.mxu0 0.0
        %974 = vmatpush1.msra.mxu0 0.0
        %975 = vmatprep.subr.mxu0 0.0
        %976 = vmatpush1.msra.mxu0 0.0
        %977 = vmatprep.subr.mxu0 0.0
        %978 = vmatpush1.msra.mxu0 0.0
        %979 = vmatprep.subr.mxu0 0.0
        %980 = vmatpush1.msra.mxu0 0.0
        %981 = vmatprep.subr.mxu0 0.0
        %982 = vmatpush1.msra.mxu0 0.0
        %983 = vmatprep.subr.mxu0 0.0
        %984 = vmatpush1.msra.mxu0 0.0
        %985 = vmatprep.subr.mxu0 0.0
        %986 = vmatpush1.msra.mxu0 0.0
        %987 = vmatprep.subr.mxu0 0.0
        %988 = vmatpush1.msra.mxu0 0.0
        %989 = vmatprep.subr.mxu0 0.0
        %990 = vmatpush1.msra.mxu0 0.0
        %991 = vmatprep.subr.mxu0 0.0
        %992 = vmatpush1.msra.mxu0 0.0
        %993 = vmatprep.subr.mxu0 0.0
        %994 = vmatpush1.msra.mxu0 0.0
        %995 = vmatprep.subr.mxu0 0.0
        %996 = vmatpush1.msra.mxu0 0.0
        %997 = vmatprep.subr.mxu0 0.0
        %998 = vmatpush1.msra.mxu0 0.0
        %999 = vmatprep.subr.mxu0 0.0
        %1000 = vmatpush1.msra.mxu0 0.0
        %1001 = vmatprep.subr.mxu0 0.0
        %1002 = vmatpush1.msra.mxu0 0.0
        %1003 = vmatprep.subr.mxu0 0.0
        %1004 = vmatpush1.msra.mxu0 0.0
        %1005 = vmatprep.subr.mxu0 0.0
        %1006 = vmatpush1.msra.mxu0 0.0
        %1007 = vmatprep.subr.mxu0 0.0
        %1008 = vmatpush1.msra.mxu0 0.0
        %1009 = vmatprep.subr.mxu0 0.0
        %1010 = vmatpush1.msra.mxu0 0.0
        %1011 = vmatprep.subr.mxu0 0.0
        %1012 = vmatpush1.msra.mxu0 0.0
        %1013 = vmatprep.subr.mxu0 0.0
        %1014 = vmatpush1.msra.mxu0 0.0
        %1015 = vmatprep.subr.mxu0 0.0
        %1016 = vmatpush1.msra.mxu0 0.0
        %1017 = vmatprep.mubr.f32.mxu0 0.0
        %v1018 = vand.u32 %v797, 4294901760
        %v1019 = vsub.f32 %v797, %v1018
        %1020 = vmatmul.mubr.f32.gmra.mrb[0].mxu0 %v1019
        %v1021 = vpop.f32.mrb[0].mxu0
        %v1022 = vadd.f32 %v948, %v1021
        %v1023 = vpop.f32.mrb[0].mxu0
        %1024 = vdwg.mxu0
        %1025 = vmatprep.subr.mxu0 0.0
        %v1026 = vand.u32 %v343, 4294901760
        %1027 = vmatpush1.msra.mxu0 %v1026
        %1028 = vmatprep.subr.mxu0 0.0
        %1029 = vmatpush1.msra.mxu0 0.0
        %1030 = vmatprep.subr.mxu0 0.0
        %1031 = vmatpush1.msra.mxu0 0.0
        %1032 = vmatprep.subr.mxu0 0.0
        %1033 = vmatpush1.msra.mxu0 0.0
        %1034 = vmatprep.subr.mxu0 0.0
        %1035 = vmatpush1.msra.mxu0 0.0
        %1036 = vmatprep.subr.mxu0 0.0
        %1037 = vmatpush1.msra.mxu0 0.0
        %1038 = vmatprep.subr.mxu0 0.0
        %1039 = vmatpush1.msra.mxu0 0.0
        %1040 = vmatprep.subr.mxu0 0.0
        %1041 = vmatpush1.msra.mxu0 0.0
        %1042 = vmatprep.subr.mxu0 0.0
        %1043 = vmatpush1.msra.mxu0 0.0
        %1044 = vmatprep.subr.mxu0 0.0
        %1045 = vmatpush1.msra.mxu0 0.0
        %1046 = vmatprep.subr.mxu0 0.0
        %1047 = vmatpush1.msra.mxu0 0.0
        %1048 = vmatprep.subr.mxu0 0.0
        %1049 = vmatpush1.msra.mxu0 0.0
        %1050 = vmatprep.subr.mxu0 0.0
        %1051 = vmatpush1.msra.mxu0 0.0
        %1052 = vmatprep.subr.mxu0 0.0
        %1053 = vmatpush1.msra.mxu0 0.0
        %1054 = vmatprep.subr.mxu0 0.0
        %1055 = vmatpush1.msra.mxu0 0.0
        %1056 = vmatprep.subr.mxu0 0.0
        %1057 = vmatpush1.msra.mxu0 0.0
        %1058 = vmatprep.subr.mxu0 0.0
        %1059 = vmatpush1.msra.mxu0 0.0
        %1060 = vmatprep.subr.mxu0 0.0
        %1061 = vmatpush1.msra.mxu0 0.0
        %1062 = vmatprep.subr.mxu0 0.0
        %1063 = vmatpush1.msra.mxu0 0.0
        %1064 = vmatprep.subr.mxu0 0.0
        %1065 = vmatpush1.msra.mxu0 0.0
        %1066 = vmatprep.subr.mxu0 0.0
        %1067 = vmatpush1.msra.mxu0 0.0
        %1068 = vmatprep.subr.mxu0 0.0
        %1069 = vmatpush1.msra.mxu0 0.0
        %1070 = vmatprep.subr.mxu0 0.0
        %1071 = vmatpush1.msra.mxu0 0.0
        %1072 = vmatprep.subr.mxu0 0.0
        %1073 = vmatpush1.msra.mxu0 0.0
        %1074 = vmatprep.subr.mxu0 0.0
        %1075 = vmatpush1.msra.mxu0 0.0
        %1076 = vmatprep.subr.mxu0 0.0
        %1077 = vmatpush1.msra.mxu0 0.0
        %1078 = vmatprep.subr.mxu0 0.0
        %1079 = vmatpush1.msra.mxu0 0.0
        %1080 = vmatprep.subr.mxu0 0.0
        %1081 = vmatpush1.msra.mxu0 0.0
        %1082 = vmatprep.subr.mxu0 0.0
        %1083 = vmatpush1.msra.mxu0 0.0
        %1084 = vmatprep.subr.mxu0 0.0
        %1085 = vmatpush1.msra.mxu0 0.0
        %1086 = vmatprep.subr.mxu0 0.0
        %1087 = vmatpush1.msra.mxu0 0.0
        %1088 = vmatprep.subr.mxu0 0.0
        %1089 = vmatpush1.msra.mxu0 0.0
        %1090 = vmatprep.mubr.f32.mxu0 0.0
        %v1091 = vand.u32 %v797, 4294901760
        %v1092 = vsub.f32 %v797, %v1091
        %v1093 = vand.u32 %v1092, 4294901760
        %1094 = vmatmul.mubr.f32.gmra.mrb[0].mxu0 %v1093
        %v1095 = vpop.f32.mrb[0].mxu0
        %v1096 = vadd.f32 %v1022, %v1095
        %v1097 = vpop.f32.mrb[0].mxu0
        %1098 = vdwg.mxu0
        %1099 = vmatprep.subr.mxu0 0.0
        %v1100 = vand.u32 %v343, 4294901760
        %v1101 = vsub.f32 %v343, %v1100
        %v1102 = vand.u32 %v1101, 4294901760
        %1103 = vmatpush1.msra.mxu0 %v1102
        %1104 = vmatprep.subr.mxu0 0.0
        %1105 = vmatpush1.msra.mxu0 0.0
        %1106 = vmatprep.subr.mxu0 0.0
        %1107 = vmatpush1.msra.mxu0 0.0
        %1108 = vmatprep.subr.mxu0 0.0
        %1109 = vmatpush1.msra.mxu0 0.0
        %1110 = vmatprep.subr.mxu0 0.0
        %1111 = vmatpush1.msra.mxu0 0.0
        %1112 = vmatprep.subr.mxu0 0.0
        %1113 = vmatpush1.msra.mxu0 0.0
        %1114 = vmatprep.subr.mxu0 0.0
        %1115 = vmatpush1.msra.mxu0 0.0
        %1116 = vmatprep.subr.mxu0 0.0
        %1117 = vmatpush1.msra.mxu0 0.0
        %1118 = vmatprep.subr.mxu0 0.0
        %1119 = vmatpush1.msra.mxu0 0.0
        %1120 = vmatprep.subr.mxu0 0.0
        %1121 = vmatpush1.msra.mxu0 0.0
        %1122 = vmatprep.subr.mxu0 0.0
        %1123 = vmatpush1.msra.mxu0 0.0
        %1124 = vmatprep.subr.mxu0 0.0
        %1125 = vmatpush1.msra.mxu0 0.0
        %1126 = vmatprep.subr.mxu0 0.0
        %1127 = vmatpush1.msra.mxu0 0.0
        %1128 = vmatprep.subr.mxu0 0.0
        %1129 = vmatpush1.msra.mxu0 0.0
        %1130 = vmatprep.subr.mxu0 0.0
        %1131 = vmatpush1.msra.mxu0 0.0
        %1132 = vmatprep.subr.mxu0 0.0
        %1133 = vmatpush1.msra.mxu0 0.0
        %1134 = vmatprep.subr.mxu0 0.0
        %1135 = vmatpush1.msra.mxu0 0.0
        %1136 = vmatprep.subr.mxu0 0.0
        %1137 = vmatpush1.msra.mxu0 0.0
        %1138 = vmatprep.subr.mxu0 0.0
        %1139 = vmatpush1.msra.mxu0 0.0
        %1140 = vmatprep.subr.mxu0 0.0
        %1141 = vmatpush1.msra.mxu0 0.0
        %1142 = vmatprep.subr.mxu0 0.0
        %1143 = vmatpush1.msra.mxu0 0.0
        %1144 = vmatprep.subr.mxu0 0.0
        %1145 = vmatpush1.msra.mxu0 0.0
        %1146 = vmatprep.subr.mxu0 0.0
        %1147 = vmatpush1.msra.mxu0 0.0
        %1148 = vmatprep.subr.mxu0 0.0
        %1149 = vmatpush1.msra.mxu0 0.0
        %1150 = vmatprep.subr.mxu0 0.0
        %1151 = vmatpush1.msra.mxu0 0.0
        %1152 = vmatprep.subr.mxu0 0.0
        %1153 = vmatpush1.msra.mxu0 0.0
        %1154 = vmatprep.subr.mxu0 0.0
        %1155 = vmatpush1.msra.mxu0 0.0
        %1156 = vmatprep.subr.mxu0 0.0
        %1157 = vmatpush1.msra.mxu0 0.0
        %1158 = vmatprep.subr.mxu0 0.0
        %1159 = vmatpush1.msra.mxu0 0.0
        %1160 = vmatprep.subr.mxu0 0.0
        %1161 = vmatpush1.msra.mxu0 0.0
        %1162 = vmatprep.subr.mxu0 0.0
        %1163 = vmatpush1.msra.mxu0 0.0
        %1164 = vmatprep.subr.mxu0 0.0
        %1165 = vmatpush1.msra.mxu0 0.0
        %1166 = vmatprep.mubr.f32.mxu0 0.0
        %v1167 = vand.u32 %v797, 4294901760
        %1168 = vmatmul.mubr.f32.gmra.mrb[0].mxu0 %v1167
        %v1169 = vpop.f32.mrb[0].mxu0
        %v1170 = vadd.f32 %v1096, %v1169
        %v1171 = vpop.f32.mrb[0].mxu0
        %1172 = vdwg.mxu0
        %1173 = vmatprep.subr.mxu0 0.0
        %v1174 = vand.u32 %v343, 4294901760
        %1175 = vmatpush1.msra.mxu0 %v1174
        %1176 = vmatprep.subr.mxu0 0.0
        %1177 = vmatpush1.msra.mxu0 0.0
        %1178 = vmatprep.subr.mxu0 0.0
        %1179 = vmatpush1.msra.mxu0 0.0
        %1180 = vmatprep.subr.mxu0 0.0
        %1181 = vmatpush1.msra.mxu0 0.0
        %1182 = vmatprep.subr.mxu0 0.0
        %1183 = vmatpush1.msra.mxu0 0.0
        %1184 = vmatprep.subr.mxu0 0.0
        %1185 = vmatpush1.msra.mxu0 0.0
        %1186 = vmatprep.subr.mxu0 0.0
        %1187 = vmatpush1.msra.mxu0 0.0
        %1188 = vmatprep.subr.mxu0 0.0
        %1189 = vmatpush1.msra.mxu0 0.0
        %1190 = vmatprep.subr.mxu0 0.0
        %1191 = vmatpush1.msra.mxu0 0.0
        %1192 = vmatprep.subr.mxu0 0.0
        %1193 = vmatpush1.msra.mxu0 0.0
        %1194 = vmatprep.subr.mxu0 0.0
        %1195 = vmatpush1.msra.mxu0 0.0
        %1196 = vmatprep.subr.mxu0 0.0
        %1197 = vmatpush1.msra.mxu0 0.0
        %1198 = vmatprep.subr.mxu0 0.0
        %1199 = vmatpush1.msra.mxu0 0.0
        %1200 = vmatprep.subr.mxu0 0.0
        %1201 = vmatpush1.msra.mxu0 0.0
        %1202 = vmatprep.subr.mxu0 0.0
        %1203 = vmatpush1.msra.mxu0 0.0
        %1204 = vmatprep.subr.mxu0 0.0
        %1205 = vmatpush1.msra.mxu0 0.0
        %1206 = vmatprep.subr.mxu0 0.0
        %1207 = vmatpush1.msra.mxu0 0.0
        %1208 = vmatprep.subr.mxu0 0.0
        %1209 = vmatpush1.msra.mxu0 0.0
        %1210 = vmatprep.subr.mxu0 0.0
        %1211 = vmatpush1.msra.mxu0 0.0
        %1212 = vmatprep.subr.mxu0 0.0
        %1213 = vmatpush1.msra.mxu0 0.0
        %1214 = vmatprep.subr.mxu0 0.0
        %1215 = vmatpush1.msra.mxu0 0.0
        %1216 = vmatprep.subr.mxu0 0.0
        %1217 = vmatpush1.msra.mxu0 0.0
        %1218 = vmatprep.subr.mxu0 0.0
        %1219 = vmatpush1.msra.mxu0 0.0
        %1220 = vmatprep.subr.mxu0 0.0
        %1221 = vmatpush1.msra.mxu0 0.0
        %1222 = vmatprep.subr.mxu0 0.0
        %1223 = vmatpush1.msra.mxu0 0.0
        %1224 = vmatprep.subr.mxu0 0.0
        %1225 = vmatpush1.msra.mxu0 0.0
        %1226 = vmatprep.subr.mxu0 0.0
        %1227 = vmatpush1.msra.mxu0 0.0
        %1228 = vmatprep.subr.mxu0 0.0
        %1229 = vmatpush1.msra.mxu0 0.0
        %1230 = vmatprep.subr.mxu0 0.0
        %1231 = vmatpush1.msra.mxu0 0.0
        %1232 = vmatprep.subr.mxu0 0.0
        %1233 = vmatpush1.msra.mxu0 0.0
        %1234 = vmatprep.subr.mxu0 0.0
        %1235 = vmatpush1.msra.mxu0 0.0
        %1236 = vmatprep.subr.mxu0 0.0
        %1237 = vmatpush1.msra.mxu0 0.0
        %1238 = vmatprep.mubr.f32.mxu0 0.0
        %v1239 = vand.u32 %v797, 4294901760
        %1240 = vmatmul.mubr.f32.gmra.mrb[0].mxu0 %v1239
        %v1241 = vpop.f32.mrb[0].mxu0
        %v1242 = vadd.f32 %v1170, %v1241
        %v1243 = vpop.f32.mrb[0].mxu0
        %1244 = vdwg.mxu0
        %v1246 = vsel %vm346, %v340, 0
        %1248 = vmatprep.subr.mxu0 0.0
        %v1249 = vand.u32 %v344, 4294901760
        %1250 = vmatpush1.msra.mxu0 %v1249
        %1251 = vmatprep.subr.mxu0 0.0
        %1252 = vmatpush1.msra.mxu0 0.0
        %1253 = vmatprep.subr.mxu0 0.0
        %1254 = vmatpush1.msra.mxu0 0.0
        %1255 = vmatprep.subr.mxu0 0.0
        %1256 = vmatpush1.msra.mxu0 0.0
        %1257 = vmatprep.subr.mxu0 0.0
        %1258 = vmatpush1.msra.mxu0 0.0
        %1259 = vmatprep.subr.mxu0 0.0
        %1260 = vmatpush1.msra.mxu0 0.0
        %1261 = vmatprep.subr.mxu0 0.0
        %1262 = vmatpush1.msra.mxu0 0.0
        %1263 = vmatprep.subr.mxu0 0.0
        %1264 = vmatpush1.msra.mxu0 0.0
        %1265 = vmatprep.subr.mxu0 0.0
        %1266 = vmatpush1.msra.mxu0 0.0
        %1267 = vmatprep.subr.mxu0 0.0
        %1268 = vmatpush1.msra.mxu0 0.0
        %1269 = vmatprep.subr.mxu0 0.0
        %1270 = vmatpush1.msra.mxu0 0.0
        %1271 = vmatprep.subr.mxu0 0.0
        %1272 = vmatpush1.msra.mxu0 0.0
        %1273 = vmatprep.subr.mxu0 0.0
        %1274 = vmatpush1.msra.mxu0 0.0
        %1275 = vmatprep.subr.mxu0 0.0
        %1276 = vmatpush1.msra.mxu0 0.0
        %1277 = vmatprep.subr.mxu0 0.0
        %1278 = vmatpush1.msra.mxu0 0.0
        %1279 = vmatprep.subr.mxu0 0.0
        %1280 = vmatpush1.msra.mxu0 0.0
        %1281 = vmatprep.subr.mxu0 0.0
        %1282 = vmatpush1.msra.mxu0 0.0
        %1283 = vmatprep.subr.mxu0 0.0
        %1284 = vmatpush1.msra.mxu0 0.0
        %1285 = vmatprep.subr.mxu0 0.0
        %1286 = vmatpush1.msra.mxu0 0.0
        %1287 = vmatprep.subr.mxu0 0.0
        %1288 = vmatpush1.msra.mxu0 0.0
        %1289 = vmatprep.subr.mxu0 0.0
        %1290 = vmatpush1.msra.mxu0 0.0
        %1291 = vmatprep.subr.mxu0 0.0
        %1292 = vmatpush1.msra.mxu0 0.0
        %1293 = vmatprep.subr.mxu0 0.0
        %1294 = vmatpush1.msra.mxu0 0.0
        %1295 = vmatprep.subr.mxu0 0.0
        %1296 = vmatpush1.msra.mxu0 0.0
        %1297 = vmatprep.subr.mxu0 0.0
        %1298 = vmatpush1.msra.mxu0 0.0
        %1299 = vmatprep.subr.mxu0 0.0
        %1300 = vmatpush1.msra.mxu0 0.0
        %1301 = vmatprep.subr.mxu0 0.0
        %1302 = vmatpush1.msra.mxu0 0.0
        %1303 = vmatprep.subr.mxu0 0.0
        %1304 = vmatpush1.msra.mxu0 0.0
        %1305 = vmatprep.subr.mxu0 0.0
        %1306 = vmatpush1.msra.mxu0 0.0
        %1307 = vmatprep.subr.mxu0 0.0
        %1308 = vmatpush1.msra.mxu0 0.0
        %1309 = vmatprep.subr.mxu0 0.0
        %1310 = vmatpush1.msra.mxu0 0.0
        %1311 = vmatprep.subr.mxu0 0.0
        %1312 = vmatpush1.msra.mxu0 0.0
        %1313 = vmatprep.mubr.f32.mxu0 0.0
        %v1314 = vand.u32 %v1246, 4294901760
        %v1315 = vsub.f32 %v1246, %v1314
        %v1316 = vand.u32 %v1315, 4294901760
        %v1317 = vsub.f32 %v1315, %v1316
        %v1318 = vand.u32 %v1317, 4294901760
        %1319 = vmatmul.mubr.f32.gmra.mrb[0].mxu0 %v1318
        %v1320 = vpop.f32.mrb[0].mxu0
        %v1321 = vadd.f32 0.0, %v1320
        %v1322 = vpop.f32.mrb[0].mxu0
        %1323 = vdwg.mxu0
        %1324 = vmatprep.subr.mxu0 0.0
        %v1325 = vand.u32 %v344, 4294901760
        %v1326 = vsub.f32 %v344, %v1325
        %v1327 = vand.u32 %v1326, 4294901760
        %v1328 = vsub.f32 %v1326, %v1327
        %v1329 = vand.u32 %v1328, 4294901760
        %1330 = vmatpush1.msra.mxu0 %v1329
        %1331 = vmatprep.subr.mxu0 0.0
        %1332 = vmatpush1.msra.mxu0 0.0
        %1333 = vmatprep.subr.mxu0 0.0
        %1334 = vmatpush1.msra.mxu0 0.0
        %1335 = vmatprep.subr.mxu0 0.0
        %1336 = vmatpush1.msra.mxu0 0.0
        %1337 = vmatprep.subr.mxu0 0.0
        %1338 = vmatpush1.msra.mxu0 0.0
        %1339 = vmatprep.subr.mxu0 0.0
        %1340 = vmatpush1.msra.mxu0 0.0
        %1341 = vmatprep.subr.mxu0 0.0
        %1342 = vmatpush1.msra.mxu0 0.0
        %1343 = vmatprep.subr.mxu0 0.0
        %1344 = vmatpush1.msra.mxu0 0.0
        %1345 = vmatprep.subr.mxu0 0.0
        %1346 = vmatpush1.msra.mxu0 0.0
        %1347 = vmatprep.subr.mxu0 0.0
        %1348 = vmatpush1.msra.mxu0 0.0
        %1349 = vmatprep.subr.mxu0 0.0
        %1350 = vmatpush1.msra.mxu0 0.0
        %1351 = vmatprep.subr.mxu0 0.0
        %1352 = vmatpush1.msra.mxu0 0.0
        %1353 = vmatprep.subr.mxu0 0.0
        %1354 = vmatpush1.msra.mxu0 0.0
        %1355 = vmatprep.subr.mxu0 0.0
        %1356 = vmatpush1.msra.mxu0 0.0
        %1357 = vmatprep.subr.mxu0 0.0
        %1358 = vmatpush1.msra.mxu0 0.0
        %1359 = vmatprep.subr.mxu0 0.0
        %1360 = vmatpush1.msra.mxu0 0.0
        %1361 = vmatprep.subr.mxu0 0.0
        %1362 = vmatpush1.msra.mxu0 0.0
        %1363 = vmatprep.subr.mxu0 0.0
        %1364 = vmatpush1.msra.mxu0 0.0
        %1365 = vmatprep.subr.mxu0 0.0
        %1366 = vmatpush1.msra.mxu0 0.0
        %1367 = vmatprep.subr.mxu0 0.0
        %1368 = vmatpush1.msra.mxu0 0.0
        %1369 = vmatprep.subr.mxu0 0.0
        %1370 = vmatpush1.msra.mxu0 0.0
        %1371 = vmatprep.subr.mxu0 0.0
        %1372 = vmatpush1.msra.mxu0 0.0
        %1373 = vmatprep.subr.mxu0 0.0
        %1374 = vmatpush1.msra.mxu0 0.0
        %1375 = vmatprep.subr.mxu0 0.0
        %1376 = vmatpush1.msra.mxu0 0.0
        %1377 = vmatprep.subr.mxu0 0.0
        %1378 = vmatpush1.msra.mxu0 0.0
        %1379 = vmatprep.subr.mxu0 0.0
        %1380 = vmatpush1.msra.mxu0 0.0
        %1381 = vmatprep.subr.mxu0 0.0
        %1382 = vmatpush1.msra.mxu0 0.0
        %1383 = vmatprep.subr.mxu0 0.0
        %1384 = vmatpush1.msra.mxu0 0.0
        %1385 = vmatprep.subr.mxu0 0.0
        %1386 = vmatpush1.msra.mxu0 0.0
        %1387 = vmatprep.subr.mxu0 0.0
        %1388 = vmatpush1.msra.mxu0 0.0
        %1389 = vmatprep.subr.mxu0 0.0
        %1390 = vmatpush1.msra.mxu0 0.0
        %1391 = vmatprep.subr.mxu0 0.0
        %1392 = vmatpush1.msra.mxu0 0.0
        %1393 = vmatprep.mubr.f32.mxu0 0.0
        %v1394 = vand.u32 %v1246, 4294901760
        %1395 = vmatmul.mubr.f32.gmra.mrb[0].mxu0 %v1394
        %v1396 = vpop.f32.mrb[0].mxu0
        %v1397 = vadd.f32 %v1321, %v1396
        %v1398 = vpop.f32.mrb[0].mxu0
        %1399 = vdwg.mxu0
        %1400 = vmatprep.subr.mxu0 0.0
        %v1401 = vand.u32 %v344, 4294901760
        %v1402 = vsub.f32 %v344, %v1401
        %1403 = vmatpush1.msra.mxu0 %v1402
        %1404 = vmatprep.subr.mxu0 0.0
        %1405 = vmatpush1.msra.mxu0 0.0
        %1406 = vmatprep.subr.mxu0 0.0
        %1407 = vmatpush1.msra.mxu0 0.0
        %1408 = vmatprep.subr.mxu0 0.0
        %1409 = vmatpush1.msra.mxu0 0.0
        %1410 = vmatprep.subr.mxu0 0.0
        %1411 = vmatpush1.msra.mxu0 0.0
        %1412 = vmatprep.subr.mxu0 0.0
        %1413 = vmatpush1.msra.mxu0 0.0
        %1414 = vmatprep.subr.mxu0 0.0
        %1415 = vmatpush1.msra.mxu0 0.0
        %1416 = vmatprep.subr.mxu0 0.0
        %1417 = vmatpush1.msra.mxu0 0.0
        %1418 = vmatprep.subr.mxu0 0.0
        %1419 = vmatpush1.msra.mxu0 0.0
        %1420 = vmatprep.subr.mxu0 0.0
        %1421 = vmatpush1.msra.mxu0 0.0
        %1422 = vmatprep.subr.mxu0 0.0
        %1423 = vmatpush1.msra.mxu0 0.0
        %1424 = vmatprep.subr.mxu0 0.0
        %1425 = vmatpush1.msra.mxu0 0.0
        %1426 = vmatprep.subr.mxu0 0.0
        %1427 = vmatpush1.msra.mxu0 0.0
        %1428 = vmatprep.subr.mxu0 0.0
        %1429 = vmatpush1.msra.mxu0 0.0
        %1430 = vmatprep.subr.mxu0 0.0
        %1431 = vmatpush1.msra.mxu0 0.0
        %1432 = vmatprep.subr.mxu0 0.0
        %1433 = vmatpush1.msra.mxu0 0.0
        %1434 = vmatprep.subr.mxu0 0.0
        %1435 = vmatpush1.msra.mxu0 0.0
        %1436 = vmatprep.subr.mxu0 0.0
        %1437 = vmatpush1.msra.mxu0 0.0
        %1438 = vmatprep.subr.mxu0 0.0
        %1439 = vmatpush1.msra.mxu0 0.0
        %1440 = vmatprep.subr.mxu0 0.0
        %1441 = vmatpush1.msra.mxu0 0.0
        %1442 = vmatprep.subr.mxu0 0.0
        %1443 = vmatpush1.msra.mxu0 0.0
        %1444 = vmatprep.subr.mxu0 0.0
        %1445 = vmatpush1.msra.mxu0 0.0
        %1446 = vmatprep.subr.mxu0 0.0
        %1447 = vmatpush1.msra.mxu0 0.0
        %1448 = vmatprep.subr.mxu0 0.0
        %1449 = vmatpush1.msra.mxu0 0.0
        %1450 = vmatprep.subr.mxu0 0.0
        %1451 = vmatpush1.msra.mxu0 0.0
        %1452 = vmatprep.subr.mxu0 0.0
        %1453 = vmatpush1.msra.mxu0 0.0
        %1454 = vmatprep.subr.mxu0 0.0
        %1455 = vmatpush1.msra.mxu0 0.0
        %1456 = vmatprep.subr.mxu0 0.0
        %1457 = vmatpush1.msra.mxu0 0.0
        %1458 = vmatprep.subr.mxu0 0.0
        %1459 = vmatpush1.msra.mxu0 0.0
        %1460 = vmatprep.subr.mxu0 0.0
        %1461 = vmatpush1.msra.mxu0 0.0
        %1462 = vmatprep.subr.mxu0 0.0
        %1463 = vmatpush1.msra.mxu0 0.0
        %1464 = vmatprep.subr.mxu0 0.0
        %1465 = vmatpush1.msra.mxu0 0.0
        %1466 = vmatprep.mubr.f32.mxu0 0.0
        %v1467 = vand.u32 %v1246, 4294901760
        %v1468 = vsub.f32 %v1246, %v1467
        %1469 = vmatmul.mubr.f32.gmra.mrb[0].mxu0 %v1468
        %v1470 = vpop.f32.mrb[0].mxu0
        %v1471 = vadd.f32 %v1397, %v1470
        %v1472 = vpop.f32.mrb[0].mxu0
        %1473 = vdwg.mxu0
        %1474 = vmatprep.subr.mxu0 0.0
        %v1475 = vand.u32 %v344, 4294901760
        %1476 = vmatpush1.msra.mxu0 %v1475
        %1477 = vmatprep.subr.mxu0 0.0
        %1478 = vmatpush1.msra.mxu0 0.0
        %1479 = vmatprep.subr.mxu0 0.0
        %1480 = vmatpush1.msra.mxu0 0.0
        %1481 = vmatprep.subr.mxu0 0.0
        %1482 = vmatpush1.msra.mxu0 0.0
        %1483 = vmatprep.subr.mxu0 0.0
        %1484 = vmatpush1.msra.mxu0 0.0
        %1485 = vmatprep.subr.mxu0 0.0
        %1486 = vmatpush1.msra.mxu0 0.0
        %1487 = vmatprep.subr.mxu0 0.0
        %1488 = vmatpush1.msra.mxu0 0.0
        %1489 = vmatprep.subr.mxu0 0.0
        %1490 = vmatpush1.msra.mxu0 0.0
        %1491 = vmatprep.subr.mxu0 0.0
        %1492 = vmatpush1.msra.mxu0 0.0
        %1493 = vmatprep.subr.mxu0 0.0
        %1494 = vmatpush1.msra.mxu0 0.0
        %1495 = vmatprep.subr.mxu0 0.0
        %1496 = vmatpush1.msra.mxu0 0.0
        %1497 = vmatprep.subr.mxu0 0.0
        %1498 = vmatpush1.msra.mxu0 0.0
        %1499 = vmatprep.subr.mxu0 0.0
        %1500 = vmatpush1.msra.mxu0 0.0
        %1501 = vmatprep.subr.mxu0 0.0
        %1502 = vmatpush1.msra.mxu0 0.0
        %1503 = vmatprep.subr.mxu0 0.0
        %1504 = vmatpush1.msra.mxu0 0.0
        %1505 = vmatprep.subr.mxu0 0.0
        %1506 = vmatpush1.msra.mxu0 0.0
        %1507 = vmatprep.subr.mxu0 0.0
        %1508 = vmatpush1.msra.mxu0 0.0
        %1509 = vmatprep.subr.mxu0 0.0
        %1510 = vmatpush1.msra.mxu0 0.0
        %1511 = vmatprep.subr.mxu0 0.0
        %1512 = vmatpush1.msra.mxu0 0.0
        %1513 = vmatprep.subr.mxu0 0.0
        %1514 = vmatpush1.msra.mxu0 0.0
        %1515 = vmatprep.subr.mxu0 0.0
        %1516 = vmatpush1.msra.mxu0 0.0
        %1517 = vmatprep.subr.mxu0 0.0
        %1518 = vmatpush1.msra.mxu0 0.0
        %1519 = vmatprep.subr.mxu0 0.0
        %1520 = vmatpush1.msra.mxu0 0.0
        %1521 = vmatprep.subr.mxu0 0.0
        %1522 = vmatpush1.msra.mxu0 0.0
        %1523 = vmatprep.subr.mxu0 0.0
        %1524 = vmatpush1.msra.mxu0 0.0
        %1525 = vmatprep.subr.mxu0 0.0
        %1526 = vmatpush1.msra.mxu0 0.0
        %1527 = vmatprep.subr.mxu0 0.0
        %1528 = vmatpush1.msra.mxu0 0.0
        %1529 = vmatprep.subr.mxu0 0.0
        %1530 = vmatpush1.msra.mxu0 0.0
        %1531 = vmatprep.subr.mxu0 0.0
        %1532 = vmatpush1.msra.mxu0 0.0
        %1533 = vmatprep.subr.mxu0 0.0
        %1534 = vmatpush1.msra.mxu0 0.0
        %1535 = vmatprep.subr.mxu0 0.0
        %1536 = vmatpush1.msra.mxu0 0.0
        %1537 = vmatprep.subr.mxu0 0.0
        %1538 = vmatpush1.msra.mxu0 0.0
        %1539 = vmatprep.mubr.f32.mxu0 0.0
        %v1540 = vand.u32 %v1246, 4294901760
        %v1541 = vsub.f32 %v1246, %v1540
        %v1542 = vand.u32 %v1541, 4294901760
        %1543 = vmatmul.mubr.f32.gmra.mrb[0].mxu0 %v1542
        %v1544 = vpop.f32.mrb[0].mxu0
        %v1545 = vadd.f32 %v1471, %v1544
        %v1546 = vpop.f32.mrb[0].mxu0
        %1547 = vdwg.mxu0
        %1548 = vmatprep.subr.mxu0 0.0
        %v1549 = vand.u32 %v344, 4294901760
        %v1550 = vsub.f32 %v344, %v1549
        %v1551 = vand.u32 %v1550, 4294901760
        %1552 = vmatpush1.msra.mxu0 %v1551
        %1553 = vmatprep.subr.mxu0 0.0
        %1554 = vmatpush1.msra.mxu0 0.0
        %1555 = vmatprep.subr.mxu0 0.0
        %1556 = vmatpush1.msra.mxu0 0.0
        %1557 = vmatprep.subr.mxu0 0.0
        %1558 = vmatpush1.msra.mxu0 0.0
        %1559 = vmatprep.subr.mxu0 0.0
        %1560 = vmatpush1.msra.mxu0 0.0
        %1561 = vmatprep.subr.mxu0 0.0
        %1562 = vmatpush1.msra.mxu0 0.0
        %1563 = vmatprep.subr.mxu0 0.0
        %1564 = vmatpush1.msra.mxu0 0.0
        %1565 = vmatprep.subr.mxu0 0.0
        %1566 = vmatpush1.msra.mxu0 0.0
        %1567 = vmatprep.subr.mxu0 0.0
        %1568 = vmatpush1.msra.mxu0 0.0
        %1569 = vmatprep.subr.mxu0 0.0
        %1570 = vmatpush1.msra.mxu0 0.0
        %1571 = vmatprep.subr.mxu0 0.0
        %1572 = vmatpush1.msra.mxu0 0.0
        %1573 = vmatprep.subr.mxu0 0.0
        %1574 = vmatpush1.msra.mxu0 0.0
        %1575 = vmatprep.subr.mxu0 0.0
        %1576 = vmatpush1.msra.mxu0 0.0
        %1577 = vmatprep.subr.mxu0 0.0
        %1578 = vmatpush1.msra.mxu0 0.0
        %1579 = vmatprep.subr.mxu0 0.0
        %1580 = vmatpush1.msra.mxu0 0.0
        %1581 = vmatprep.subr.mxu0 0.0
        %1582 = vmatpush1.msra.mxu0 0.0
        %1583 = vmatprep.subr.mxu0 0.0
        %1584 = vmatpush1.msra.mxu0 0.0
        %1585 = vmatprep.subr.mxu0 0.0
        %1586 = vmatpush1.msra.mxu0 0.0
        %1587 = vmatprep.subr.mxu0 0.0
        %1588 = vmatpush1.msra.mxu0 0.0
        %1589 = vmatprep.subr.mxu0 0.0
        %1590 = vmatpush1.msra.mxu0 0.0
        %1591 = vmatprep.subr.mxu0 0.0
        %1592 = vmatpush1.msra.mxu0 0.0
        %1593 = vmatprep.subr.mxu0 0.0
        %1594 = vmatpush1.msra.mxu0 0.0
        %1595 = vmatprep.subr.mxu0 0.0
        %1596 = vmatpush1.msra.mxu0 0.0
        %1597 = vmatprep.subr.mxu0 0.0
        %1598 = vmatpush1.msra.mxu0 0.0
        %1599 = vmatprep.subr.mxu0 0.0
        %1600 = vmatpush1.msra.mxu0 0.0
        %1601 = vmatprep.subr.mxu0 0.0
        %1602 = vmatpush1.msra.mxu0 0.0
        %1603 = vmatprep.subr.mxu0 0.0
        %1604 = vmatpush1.msra.mxu0 0.0
        %1605 = vmatprep.subr.mxu0 0.0
        %1606 = vmatpush1.msra.mxu0 0.0
        %1607 = vmatprep.subr.mxu0 0.0
        %1608 = vmatpush1.msra.mxu0 0.0
        %1609 = vmatprep.subr.mxu0 0.0
        %1610 = vmatpush1.msra.mxu0 0.0
        %1611 = vmatprep.subr.mxu0 0.0
        %1612 = vmatpush1.msra.mxu0 0.0
        %1613 = vmatprep.subr.mxu0 0.0
        %1614 = vmatpush1.msra.mxu0 0.0
        %1615 = vmatprep.mubr.f32.mxu0 0.0
        %v1616 = vand.u32 %v1246, 4294901760
        %1617 = vmatmul.mubr.f32.gmra.mrb[0].mxu0 %v1616
        %v1618 = vpop.f32.mrb[0].mxu0
        %v1619 = vadd.f32 %v1545, %v1618
        %v1620 = vpop.f32.mrb[0].mxu0
        %1621 = vdwg.mxu0
        %1622 = vmatprep.subr.mxu0 0.0
        %v1623 = vand.u32 %v344, 4294901760
        %1624 = vmatpush1.msra.mxu0 %v1623
        %1625 = vmatprep.subr.mxu0 0.0
        %1626 = vmatpush1.msra.mxu0 0.0
        %1627 = vmatprep.subr.mxu0 0.0
        %1628 = vmatpush1.msra.mxu0 0.0
        %1629 = vmatprep.subr.mxu0 0.0
        %1630 = vmatpush1.msra.mxu0 0.0
        %1631 = vmatprep.subr.mxu0 0.0
        %1632 = vmatpush1.msra.mxu0 0.0
        %1633 = vmatprep.subr.mxu0 0.0
        %1634 = vmatpush1.msra.mxu0 0.0
        %1635 = vmatprep.subr.mxu0 0.0
        %1636 = vmatpush1.msra.mxu0 0.0
        %1637 = vmatprep.subr.mxu0 0.0
        %1638 = vmatpush1.msra.mxu0 0.0
        %1639 = vmatprep.subr.mxu0 0.0
        %1640 = vmatpush1.msra.mxu0 0.0
        %1641 = vmatprep.subr.mxu0 0.0
        %1642 = vmatpush1.msra.mxu0 0.0
        %1643 = vmatprep.subr.mxu0 0.0
        %1644 = vmatpush1.msra.mxu0 0.0
        %1645 = vmatprep.subr.mxu0 0.0
        %1646 = vmatpush1.msra.mxu0 0.0
        %1647 = vmatprep.subr.mxu0 0.0
        %1648 = vmatpush1.msra.mxu0 0.0
        %1649 = vmatprep.subr.mxu0 0.0
        %1650 = vmatpush1.msra.mxu0 0.0
        %1651 = vmatprep.subr.mxu0 0.0
        %1652 = vmatpush1.msra.mxu0 0.0
        %1653 = vmatprep.subr.mxu0 0.0
        %1654 = vmatpush1.msra.mxu0 0.0
        %1655 = vmatprep.subr.mxu0 0.0
        %1656 = vmatpush1.msra.mxu0 0.0
        %1657 = vmatprep.subr.mxu0 0.0
        %1658 = vmatpush1.msra.mxu0 0.0
        %1659 = vmatprep.subr.mxu0 0.0
        %1660 = vmatpush1.msra.mxu0 0.0
        %1661 = vmatprep.subr.mxu0 0.0
        %1662 = vmatpush1.msra.mxu0 0.0
        %1663 = vmatprep.subr.mxu0 0.0
        %1664 = vmatpush1.msra.mxu0 0.0
        %1665 = vmatprep.subr.mxu0 0.0
        %1666 = vmatpush1.msra.mxu0 0.0
        %1667 = vmatprep.subr.mxu0 0.0
        %1668 = vmatpush1.msra.mxu0 0.0
        %1669 = vmatprep.subr.mxu0 0.0
        %1670 = vmatpush1.msra.mxu0 0.0
        %1671 = vmatprep.subr.mxu0 0.0
        %1672 = vmatpush1.msra.mxu0 0.0
        %1673 = vmatprep.subr.mxu0 0.0
        %1674 = vmatpush1.msra.mxu0 0.0
        %1675 = vmatprep.subr.mxu0 0.0
        %1676 = vmatpush1.msra.mxu0 0.0
        %1677 = vmatprep.subr.mxu0 0.0
        %1678 = vmatpush1.msra.mxu0 0.0
        %1679 = vmatprep.subr.mxu0 0.0
        %1680 = vmatpush1.msra.mxu0 0.0
        %1681 = vmatprep.subr.mxu0 0.0
        %1682 = vmatpush1.msra.mxu0 0.0
        %1683 = vmatprep.subr.mxu0 0.0
        %1684 = vmatpush1.msra.mxu0 0.0
        %1685 = vmatprep.subr.mxu0 0.0
        %1686 = vmatpush1.msra.mxu0 0.0
        %1687 = vmatprep.mubr.f32.mxu0 0.0
        %v1688 = vand.u32 %v1246, 4294901760
        %1689 = vmatmul.mubr.f32.gmra.mrb[0].mxu0 %v1688
        %v1690 = vpop.f32.mrb[0].mxu0
        %v1691 = vadd.f32 %v1619, %v1690
        %v1692 = vpop.f32.mrb[0].mxu0
        %1693 = vdwg.mxu0
        %v1695 = vsel %vm346, %v341, 0
        %1697 = vmatprep.subr.mxu0 0.0
        %v1698 = vand.u32 %v345, 4294901760
        %1699 = vmatpush1.msra.mxu0 %v1698
        %1700 = vmatprep.subr.mxu0 0.0
        %1701 = vmatpush1.msra.mxu0 0.0
        %1702 = vmatprep.subr.mxu0 0.0
        %1703 = vmatpush1.msra.mxu0 0.0
        %1704 = vmatprep.subr.mxu0 0.0
        %1705 = vmatpush1.msra.mxu0 0.0
        %1706 = vmatprep.subr.mxu0 0.0
        %1707 = vmatpush1.msra.mxu0 0.0
        %1708 = vmatprep.subr.mxu0 0.0
        %1709 = vmatpush1.msra.mxu0 0.0
        %1710 = vmatprep.subr.mxu0 0.0
        %1711 = vmatpush1.msra.mxu0 0.0
        %1712 = vmatprep.subr.mxu0 0.0
        %1713 = vmatpush1.msra.mxu0 0.0
        %1714 = vmatprep.subr.mxu0 0.0
        %1715 = vmatpush1.msra.mxu0 0.0
        %1716 = vmatprep.subr.mxu0 0.0
        %1717 = vmatpush1.msra.mxu0 0.0
        %1718 = vmatprep.subr.mxu0 0.0
        %1719 = vmatpush1.msra.mxu0 0.0
        %1720 = vmatprep.subr.mxu0 0.0
        %1721 = vmatpush1.msra.mxu0 0.0
        %1722 = vmatprep.subr.mxu0 0.0
        %1723 = vmatpush1.msra.mxu0 0.0
        %1724 = vmatprep.subr.mxu0 0.0
        %1725 = vmatpush1.msra.mxu0 0.0
        %1726 = vmatprep.subr.mxu0 0.0
        %1727 = vmatpush1.msra.mxu0 0.0
        %1728 = vmatprep.subr.mxu0 0.0
        %1729 = vmatpush1.msra.mxu0 0.0
        %1730 = vmatprep.subr.mxu0 0.0
        %1731 = vmatpush1.msra.mxu0 0.0
        %1732 = vmatprep.subr.mxu0 0.0
        %1733 = vmatpush1.msra.mxu0 0.0
        %1734 = vmatprep.subr.mxu0 0.0
        %1735 = vmatpush1.msra.mxu0 0.0
        %1736 = vmatprep.subr.mxu0 0.0
        %1737 = vmatpush1.msra.mxu0 0.0
        %1738 = vmatprep.subr.mxu0 0.0
        %1739 = vmatpush1.msra.mxu0 0.0
        %1740 = vmatprep.subr.mxu0 0.0
        %1741 = vmatpush1.msra.mxu0 0.0
        %1742 = vmatprep.subr.mxu0 0.0
        %1743 = vmatpush1.msra.mxu0 0.0
        %1744 = vmatprep.subr.mxu0 0.0
        %1745 = vmatpush1.msra.mxu0 0.0
        %1746 = vmatprep.subr.mxu0 0.0
        %1747 = vmatpush1.msra.mxu0 0.0
        %1748 = vmatprep.subr.mxu0 0.0
        %1749 = vmatpush1.msra.mxu0 0.0
        %1750 = vmatprep.subr.mxu0 0.0
        %1751 = vmatpush1.msra.mxu0 0.0
        %1752 = vmatprep.subr.mxu0 0.0
        %1753 = vmatpush1.msra.mxu0 0.0
        %1754 = vmatprep.subr.mxu0 0.0
        %1755 = vmatpush1.msra.mxu0 0.0
        %1756 = vmatprep.subr.mxu0 0.0
        %1757 = vmatpush1.msra.mxu0 0.0
        %1758 = vmatprep.subr.mxu0 0.0
        %1759 = vmatpush1.msra.mxu0 0.0
        %1760 = vmatprep.subr.mxu0 0.0
        %1761 = vmatpush1.msra.mxu0 0.0
        %1762 = vmatprep.mubr.f32.mxu0 0.0
        %v1763 = vand.u32 %v1695, 4294901760
        %v1764 = vsub.f32 %v1695, %v1763
        %v1765 = vand.u32 %v1764, 4294901760
        %v1766 = vsub.f32 %v1764, %v1765
        %v1767 = vand.u32 %v1766, 4294901760
        %1768 = vmatmul.mubr.f32.gmra.mrb[0].mxu0 %v1767
        %v1769 = vpop.f32.mrb[0].mxu0
        %v1770 = vadd.f32 0.0, %v1769
        %v1771 = vpop.f32.mrb[0].mxu0
        %1772 = vdwg.mxu0
        %1773 = vmatprep.subr.mxu0 0.0
        %v1774 = vand.u32 %v345, 4294901760
        %v1775 = vsub.f32 %v345, %v1774
        %v1776 = vand.u32 %v1775, 4294901760
        %v1777 = vsub.f32 %v1775, %v1776
        %v1778 = vand.u32 %v1777, 4294901760
        %1779 = vmatpush1.msra.mxu0 %v1778
        %1780 = vmatprep.subr.mxu0 0.0
        %1781 = vmatpush1.msra.mxu0 0.0
        %1782 = vmatprep.subr.mxu0 0.0
        %1783 = vmatpush1.msra.mxu0 0.0
        %1784 = vmatprep.subr.mxu0 0.0
        %1785 = vmatpush1.msra.mxu0 0.0
        %1786 = vmatprep.subr.mxu0 0.0
        %1787 = vmatpush1.msra.mxu0 0.0
        %1788 = vmatprep.subr.mxu0 0.0
        %1789 = vmatpush1.msra.mxu0 0.0
        %1790 = vmatprep.subr.mxu0 0.0
        %1791 = vmatpush1.msra.mxu0 0.0
        %1792 = vmatprep.subr.mxu0 0.0
        %1793 = vmatpush1.msra.mxu0 0.0
        %1794 = vmatprep.subr.mxu0 0.0
        %1795 = vmatpush1.msra.mxu0 0.0
        %1796 = vmatprep.subr.mxu0 0.0
        %1797 = vmatpush1.msra.mxu0 0.0
        %1798 = vmatprep.subr.mxu0 0.0
        %1799 = vmatpush1.msra.mxu0 0.0
        %1800 = vmatprep.subr.mxu0 0.0
        %1801 = vmatpush1.msra.mxu0 0.0
        %1802 = vmatprep.subr.mxu0 0.0
        %1803 = vmatpush1.msra.mxu0 0.0
        %1804 = vmatprep.subr.mxu0 0.0
        %1805 = vmatpush1.msra.mxu0 0.0
        %1806 = vmatprep.subr.mxu0 0.0
        %1807 = vmatpush1.msra.mxu0 0.0
        %1808 = vmatprep.subr.mxu0 0.0
        %1809 = vmatpush1.msra.mxu0 0.0
        %1810 = vmatprep.subr.mxu0 0.0
        %1811 = vmatpush1.msra.mxu0 0.0
        %1812 = vmatprep.subr.mxu0 0.0
        %1813 = vmatpush1.msra.mxu0 0.0
        %1814 = vmatprep.subr.mxu0 0.0
        %1815 = vmatpush1.msra.mxu0 0.0
        %1816 = vmatprep.subr.mxu0 0.0
        %1817 = vmatpush1.msra.mxu0 0.0
        %1818 = vmatprep.subr.mxu0 0.0
        %1819 = vmatpush1.msra.mxu0 0.0
        %1820 = vmatprep.subr.mxu0 0.0
        %1821 = vmatpush1.msra.mxu0 0.0
        %1822 = vmatprep.subr.mxu0 0.0
        %1823 = vmatpush1.msra.mxu0 0.0
        %1824 = vmatprep.subr.mxu0 0.0
        %1825 = vmatpush1.msra.mxu0 0.0
        %1826 = vmatprep.subr.mxu0 0.0
        %1827 = vmatpush1.msra.mxu0 0.0
        %1828 = vmatprep.subr.mxu0 0.0
        %1829 = vmatpush1.msra.mxu0 0.0
        %1830 = vmatprep.subr.mxu0 0.0
        %1831 = vmatpush1.msra.mxu0 0.0
        %1832 = vmatprep.subr.mxu0 0.0
        %1833 = vmatpush1.msra.mxu0 0.0
        %1834 = vmatprep.subr.mxu0 0.0
        %1835 = vmatpush1.msra.mxu0 0.0
        %1836 = vmatprep.subr.mxu0 0.0
        %1837 = vmatpush1.msra.mxu0 0.0
        %1838 = vmatprep.subr.mxu0 0.0
        %1839 = vmatpush1.msra.mxu0 0.0
        %1840 = vmatprep.subr.mxu0 0.0
        %1841 = vmatpush1.msra.mxu0 0.0
        %1842 = vmatprep.mubr.f32.mxu0 0.0
        %v1843 = vand.u32 %v1695, 4294901760
        %1844 = vmatmul.mubr.f32.gmra.mrb[0].mxu0 %v1843
        %v1845 = vpop.f32.mrb[0].mxu0
        %v1846 = vadd.f32 %v1770, %v1845
        %v1847 = vpop.f32.mrb[0].mxu0
        %1848 = vdwg.mxu0
        %1849 = vmatprep.subr.mxu0 0.0
        %v1850 = vand.u32 %v345, 4294901760
        %v1851 = vsub.f32 %v345, %v1850
        %1852 = vmatpush1.msra.mxu0 %v1851
        %1853 = vmatprep.subr.mxu0 0.0
        %1854 = vmatpush1.msra.mxu0 0.0
        %1855 = vmatprep.subr.mxu0 0.0
        %1856 = vmatpush1.msra.mxu0 0.0
        %1857 = vmatprep.subr.mxu0 0.0
        %1858 = vmatpush1.msra.mxu0 0.0
        %1859 = vmatprep.subr.mxu0 0.0
        %1860 = vmatpush1.msra.mxu0 0.0
        %1861 = vmatprep.subr.mxu0 0.0
        %1862 = vmatpush1.msra.mxu0 0.0
        %1863 = vmatprep.subr.mxu0 0.0
        %1864 = vmatpush1.msra.mxu0 0.0
        %1865 = vmatprep.subr.mxu0 0.0
        %1866 = vmatpush1.msra.mxu0 0.0
        %1867 = vmatprep.subr.mxu0 0.0
        %1868 = vmatpush1.msra.mxu0 0.0
        %1869 = vmatprep.subr.mxu0 0.0
        %1870 = vmatpush1.msra.mxu0 0.0
        %1871 = vmatprep.subr.mxu0 0.0
        %1872 = vmatpush1.msra.mxu0 0.0
        %1873 = vmatprep.subr.mxu0 0.0
        %1874 = vmatpush1.msra.mxu0 0.0
        %1875 = vmatprep.subr.mxu0 0.0
        %1876 = vmatpush1.msra.mxu0 0.0
        %1877 = vmatprep.subr.mxu0 0.0
        %1878 = vmatpush1.msra.mxu0 0.0
        %1879 = vmatprep.subr.mxu0 0.0
        %1880 = vmatpush1.msra.mxu0 0.0
        %1881 = vmatprep.subr.mxu0 0.0
        %1882 = vmatpush1.msra.mxu0 0.0
        %1883 = vmatprep.subr.mxu0 0.0
        %1884 = vmatpush1.msra.mxu0 0.0
        %1885 = vmatprep.subr.mxu0 0.0
        %1886 = vmatpush1.msra.mxu0 0.0
        %1887 = vmatprep.subr.mxu0 0.0
        %1888 = vmatpush1.msra.mxu0 0.0
        %1889 = vmatprep.subr.mxu0 0.0
        %1890 = vmatpush1.msra.mxu0 0.0
        %1891 = vmatprep.subr.mxu0 0.0
        %1892 = vmatpush1.msra.mxu0 0.0
        %1893 = vmatprep.subr.mxu0 0.0
        %1894 = vmatpush1.msra.mxu0 0.0
        %1895 = vmatprep.subr.mxu0 0.0
        %1896 = vmatpush1.msra.mxu0 0.0
        %1897 = vmatprep.subr.mxu0 0.0
        %1898 = vmatpush1.msra.mxu0 0.0
        %1899 = vmatprep.subr.mxu0 0.0
        %1900 = vmatpush1.msra.mxu0 0.0
        %1901 = vmatprep.subr.mxu0 0.0
        %1902 = vmatpush1.msra.mxu0 0.0
        %1903 = vmatprep.subr.mxu0 0.0
        %1904 = vmatpush1.msra.mxu0 0.0
        %1905 = vmatprep.subr.mxu0 0.0
        %1906 = vmatpush1.msra.mxu0 0.0
        %1907 = vmatprep.subr.mxu0 0.0
        %1908 = vmatpush1.msra.mxu0 0.0
        %1909 = vmatprep.subr.mxu0 0.0
        %1910 = vmatpush1.msra.mxu0 0.0
        %1911 = vmatprep.subr.mxu0 0.0
        %1912 = vmatpush1.msra.mxu0 0.0
        %1913 = vmatprep.subr.mxu0 0.0
        %1914 = vmatpush1.msra.mxu0 0.0
        %1915 = vmatprep.mubr.f32.mxu0 0.0
        %v1916 = vand.u32 %v1695, 4294901760
        %v1917 = vsub.f32 %v1695, %v1916
        %1918 = vmatmul.mubr.f32.gmra.mrb[0].mxu0 %v1917
        %v1919 = vpop.f32.mrb[0].mxu0
        %v1920 = vadd.f32 %v1846, %v1919
        %v1921 = vpop.f32.mrb[0].mxu0
        %1922 = vdwg.mxu0
        %1923 = vmatprep.subr.mxu0 0.0
        %v1924 = vand.u32 %v345, 4294901760
        %1925 = vmatpush1.msra.mxu0 %v1924
        %1926 = vmatprep.subr.mxu0 0.0
        %1927 = vmatpush1.msra.mxu0 0.0
        %1928 = vmatprep.subr.mxu0 0.0
        %1929 = vmatpush1.msra.mxu0 0.0
        %1930 = vmatprep.subr.mxu0 0.0
        %1931 = vmatpush1.msra.mxu0 0.0
        %1932 = vmatprep.subr.mxu0 0.0
        %1933 = vmatpush1.msra.mxu0 0.0
        %1934 = vmatprep.subr.mxu0 0.0
        %1935 = vmatpush1.msra.mxu0 0.0
        %1936 = vmatprep.subr.mxu0 0.0
        %1937 = vmatpush1.msra.mxu0 0.0
        %1938 = vmatprep.subr.mxu0 0.0
        %1939 = vmatpush1.msra.mxu0 0.0
        %1940 = vmatprep.subr.mxu0 0.0
        %1941 = vmatpush1.msra.mxu0 0.0
        %1942 = vmatprep.subr.mxu0 0.0
        %1943 = vmatpush1.msra.mxu0 0.0
        %1944 = vmatprep.subr.mxu0 0.0
        %1945 = vmatpush1.msra.mxu0 0.0
        %1946 = vmatprep.subr.mxu0 0.0
        %1947 = vmatpush1.msra.mxu0 0.0
        %1948 = vmatprep.subr.mxu0 0.0
        %1949 = vmatpush1.msra.mxu0 0.0
        %1950 = vmatprep.subr.mxu0 0.0
        %1951 = vmatpush1.msra.mxu0 0.0
        %1952 = vmatprep.subr.mxu0 0.0
        %1953 = vmatpush1.msra.mxu0 0.0
        %1954 = vmatprep.subr.mxu0 0.0
        %1955 = vmatpush1.msra.mxu0 0.0
        %1956 = vmatprep.subr.mxu0 0.0
        %1957 = vmatpush1.msra.mxu0 0.0
        %1958 = vmatprep.subr.mxu0 0.0
        %1959 = vmatpush1.msra.mxu0 0.0
        %1960 = vmatprep.subr.mxu0 0.0
        %1961 = vmatpush1.msra.mxu0 0.0
        %1962 = vmatprep.subr.mxu0 0.0
        %1963 = vmatpush1.msra.mxu0 0.0
        %1964 = vmatprep.subr.mxu0 0.0
        %1965 = vmatpush1.msra.mxu0 0.0
        %1966 = vmatprep.subr.mxu0 0.0
        %1967 = vmatpush1.msra.mxu0 0.0
        %1968 = vmatprep.subr.mxu0 0.0
        %1969 = vmatpush1.msra.mxu0 0.0
        %1970 = vmatprep.subr.mxu0 0.0
        %1971 = vmatpush1.msra.mxu0 0.0
        %1972 = vmatprep.subr.mxu0 0.0
        %1973 = vmatpush1.msra.mxu0 0.0
        %1974 = vmatprep.subr.mxu0 0.0
        %1975 = vmatpush1.msra.mxu0 0.0
        %1976 = vmatprep.subr.mxu0 0.0
        %1977 = vmatpush1.msra.mxu0 0.0
        %1978 = vmatprep.subr.mxu0 0.0
        %1979 = vmatpush1.msra.mxu0 0.0
        %1980 = vmatprep.subr.mxu0 0.0
        %1981 = vmatpush1.msra.mxu0 0.0
        %1982 = vmatprep.subr.mxu0 0.0
        %1983 = vmatpush1.msra.mxu0 0.0
        %1984 = vmatprep.subr.mxu0 0.0
        %1985 = vmatpush1.msra.mxu0 0.0
        %1986 = vmatprep.subr.mxu0 0.0
        %1987 = vmatpush1.msra.mxu0 0.0
        %1988 = vmatprep.mubr.f32.mxu0 0.0
        %v1989 = vand.u32 %v1695, 4294901760
        %v1990 = vsub.f32 %v1695, %v1989
        %v1991 = vand.u32 %v1990, 4294901760
        %1992 = vmatmul.mubr.f32.gmra.mrb[0].mxu0 %v1991
        %v1993 = vpop.f32.mrb[0].mxu0
        %v1994 = vadd.f32 %v1920, %v1993
        %v1995 = vpop.f32.mrb[0].mxu0
        %1996 = vdwg.mxu0
        %1997 = vmatprep.subr.mxu0 0.0
        %v1998 = vand.u32 %v345, 4294901760
        %v1999 = vsub.f32 %v345, %v1998
        %v2000 = vand.u32 %v1999, 4294901760
        %2001 = vmatpush1.msra.mxu0 %v2000
        %2002 = vmatprep.subr.mxu0 0.0
        %2003 = vmatpush1.msra.mxu0 0.0
        %2004 = vmatprep.subr.mxu0 0.0
        %2005 = vmatpush1.msra.mxu0 0.0
        %2006 = vmatprep.subr.mxu0 0.0
        %2007 = vmatpush1.msra.mxu0 0.0
        %2008 = vmatprep.subr.mxu0 0.0
        %2009 = vmatpush1.msra.mxu0 0.0
        %2010 = vmatprep.subr.mxu0 0.0
        %2011 = vmatpush1.msra.mxu0 0.0
        %2012 = vmatprep.subr.mxu0 0.0
        %2013 = vmatpush1.msra.mxu0 0.0
        %2014 = vmatprep.subr.mxu0 0.0
        %2015 = vmatpush1.msra.mxu0 0.0
        %2016 = vmatprep.subr.mxu0 0.0
        %2017 = vmatpush1.msra.mxu0 0.0
        %2018 = vmatprep.subr.mxu0 0.0
        %2019 = vmatpush1.msra.mxu0 0.0
        %2020 = vmatprep.subr.mxu0 0.0
        %2021 = vmatpush1.msra.mxu0 0.0
        %2022 = vmatprep.subr.mxu0 0.0
        %2023 = vmatpush1.msra.mxu0 0.0
        %2024 = vmatprep.subr.mxu0 0.0
        %2025 = vmatpush1.msra.mxu0 0.0
        %2026 = vmatprep.subr.mxu0 0.0
        %2027 = vmatpush1.msra.mxu0 0.0
        %2028 = vmatprep.subr.mxu0 0.0
        %2029 = vmatpush1.msra.mxu0 0.0
        %2030 = vmatprep.subr.mxu0 0.0
        %2031 = vmatpush1.msra.mxu0 0.0
        %2032 = vmatprep.subr.mxu0 0.0
        %2033 = vmatpush1.msra.mxu0 0.0
        %2034 = vmatprep.subr.mxu0 0.0
        %2035 = vmatpush1.msra.mxu0 0.0
        %2036 = vmatprep.subr.mxu0 0.0
        %2037 = vmatpush1.msra.mxu0 0.0
        %2038 = vmatprep.subr.mxu0 0.0
        %2039 = vmatpush1.msra.mxu0 0.0
        %2040 = vmatprep.subr.mxu0 0.0
        %2041 = vmatpush1.msra.mxu0 0.0
        %2042 = vmatprep.subr.mxu0 0.0
        %2043 = vmatpush1.msra.mxu0 0.0
        %2044 = vmatprep.subr.mxu0 0.0
        %2045 = vmatpush1.msra.mxu0 0.0
        %2046 = vmatprep.subr.mxu0 0.0
        %2047 = vmatpush1.msra.mxu0 0.0
        %2048 = vmatprep.subr.mxu0 0.0
        %2049 = vmatpush1.msra.mxu0 0.0
        %2050 = vmatprep.subr.mxu0 0.0
        %2051 = vmatpush1.msra.mxu0 0.0
        %2052 = vmatprep.subr.mxu0 0.0
        %2053 = vmatpush1.msra.mxu0 0.0
        %2054 = vmatprep.subr.mxu0 0.0
        %2055 = vmatpush1.msra.mxu0 0.0
        %2056 = vmatprep.subr.mxu0 0.0
        %2057 = vmatpush1.msra.mxu0 0.0
        %2058 = vmatprep.subr.mxu0 0.0
        %2059 = vmatpush1.msra.mxu0 0.0
        %2060 = vmatprep.subr.mxu0 0.0
        %2061 = vmatpush1.msra.mxu0 0.0
        %2062 = vmatprep.subr.mxu0 0.0
        %2063 = vmatpush1.msra.mxu0 0.0
        %2064 = vmatprep.mubr.f32.mxu0 0.0
        %v2065 = vand.u32 %v1695, 4294901760
        %2066 = vmatmul.mubr.f32.gmra.mrb[0].mxu0 %v2065
        %v2067 = vpop.f32.mrb[0].mxu0
        %v2068 = vadd.f32 %v1994, %v2067
        %v2069 = vpop.f32.mrb[0].mxu0
        %2070 = vdwg.mxu0
        %2071 = vmatprep.subr.mxu0 0.0
        %v2072 = vand.u32 %v345, 4294901760
        %2073 = vmatpush1.msra.mxu0 %v2072
        %2074 = vmatprep.subr.mxu0 0.0
        %2075 = vmatpush1.msra.mxu0 0.0
        %2076 = vmatprep.subr.mxu0 0.0
        %2077 = vmatpush1.msra.mxu0 0.0
        %2078 = vmatprep.subr.mxu0 0.0
        %2079 = vmatpush1.msra.mxu0 0.0
        %2080 = vmatprep.subr.mxu0 0.0
        %2081 = vmatpush1.msra.mxu0 0.0
        %2082 = vmatprep.subr.mxu0 0.0
        %2083 = vmatpush1.msra.mxu0 0.0
        %2084 = vmatprep.subr.mxu0 0.0
        %2085 = vmatpush1.msra.mxu0 0.0
        %2086 = vmatprep.subr.mxu0 0.0
        %2087 = vmatpush1.msra.mxu0 0.0
        %2088 = vmatprep.subr.mxu0 0.0
        %2089 = vmatpush1.msra.mxu0 0.0
        %2090 = vmatprep.subr.mxu0 0.0
        %2091 = vmatpush1.msra.mxu0 0.0
        %2092 = vmatprep.subr.mxu0 0.0
        %2093 = vmatpush1.msra.mxu0 0.0
        %2094 = vmatprep.subr.mxu0 0.0
        %2095 = vmatpush1.msra.mxu0 0.0
        %2096 = vmatprep.subr.mxu0 0.0
        %2097 = vmatpush1.msra.mxu0 0.0
        %2098 = vmatprep.subr.mxu0 0.0
        %2099 = vmatpush1.msra.mxu0 0.0
        %2100 = vmatprep.subr.mxu0 0.0
        %2101 = vmatpush1.msra.mxu0 0.0
        %2102 = vmatprep.subr.mxu0 0.0
        %2103 = vmatpush1.msra.mxu0 0.0
        %2104 = vmatprep.subr.mxu0 0.0
        %2105 = vmatpush1.msra.mxu0 0.0
        %2106 = vmatprep.subr.mxu0 0.0
        %2107 = vmatpush1.msra.mxu0 0.0
        %2108 = vmatprep.subr.mxu0 0.0
        %2109 = vmatpush1.msra.mxu0 0.0
        %2110 = vmatprep.subr.mxu0 0.0
        %2111 = vmatpush1.msra.mxu0 0.0
        %2112 = vmatprep.subr.mxu0 0.0
        %2113 = vmatpush1.msra.mxu0 0.0
        %2114 = vmatprep.subr.mxu0 0.0
        %2115 = vmatpush1.msra.mxu0 0.0
        %2116 = vmatprep.subr.mxu0 0.0
        %2117 = vmatpush1.msra.mxu0 0.0
        %2118 = vmatprep.subr.mxu0 0.0
        %2119 = vmatpush1.msra.mxu0 0.0
        %2120 = vmatprep.subr.mxu0 0.0
        %2121 = vmatpush1.msra.mxu0 0.0
        %2122 = vmatprep.subr.mxu0 0.0
        %2123 = vmatpush1.msra.mxu0 0.0
        %2124 = vmatprep.subr.mxu0 0.0
        %2125 = vmatpush1.msra.mxu0 0.0
        %2126 = vmatprep.subr.mxu0 0.0
        %2127 = vmatpush1.msra.mxu0 0.0
        %2128 = vmatprep.subr.mxu0 0.0
        %2129 = vmatpush1.msra.mxu0 0.0
        %2130 = vmatprep.subr.mxu0 0.0
        %2131 = vmatpush1.msra.mxu0 0.0
        %2132 = vmatprep.subr.mxu0 0.0
        %2133 = vmatpush1.msra.mxu0 0.0
        %2134 = vmatprep.subr.mxu0 0.0
        %2135 = vmatpush1.msra.mxu0 0.0
        %2136 = vmatprep.mubr.f32.mxu0 0.0
        %v2137 = vand.u32 %v1695, 4294901760
        %2138 = vmatmul.mubr.f32.gmra.mrb[0].mxu0 %v2137
        %v2139 = vpop.f32.mrb[0].mxu0
        %v2140 = vadd.f32 %v2068, %v2139
        %v2141 = vpop.f32.mrb[0].mxu0
        %2142 = vdwg.mxu0
        %v2143 = vsub.f32 %v793, %v1691
        %v2144 = vsub.f32 %v1242, %v2140
        %2145 = vmatprep.subr.mxu0 0.0
        %v2146 = vand.u32 %v342, 4294901760
        %2147 = vmatpush1.msra.mxu0 %v2146
        %2148 = vmatprep.subr.mxu0 0.0
        %2149 = vmatpush1.msra.mxu0 0.0
        %2150 = vmatprep.subr.mxu0 0.0
        %2151 = vmatpush1.msra.mxu0 0.0
        %2152 = vmatprep.subr.mxu0 0.0
        %2153 = vmatpush1.msra.mxu0 0.0
        %2154 = vmatprep.subr.mxu0 0.0
        %2155 = vmatpush1.msra.mxu0 0.0
        %2156 = vmatprep.subr.mxu0 0.0
        %2157 = vmatpush1.msra.mxu0 0.0
        %2158 = vmatprep.subr.mxu0 0.0
        %2159 = vmatpush1.msra.mxu0 0.0
        %2160 = vmatprep.subr.mxu0 0.0
        %2161 = vmatpush1.msra.mxu0 0.0
        %2162 = vmatprep.subr.mxu0 0.0
        %2163 = vmatpush1.msra.mxu0 0.0
        %2164 = vmatprep.subr.mxu0 0.0
        %2165 = vmatpush1.msra.mxu0 0.0
        %2166 = vmatprep.subr.mxu0 0.0
        %2167 = vmatpush1.msra.mxu0 0.0
        %2168 = vmatprep.subr.mxu0 0.0
        %2169 = vmatpush1.msra.mxu0 0.0
        %2170 = vmatprep.subr.mxu0 0.0
        %2171 = vmatpush1.msra.mxu0 0.0
        %2172 = vmatprep.subr.mxu0 0.0
        %2173 = vmatpush1.msra.mxu0 0.0
        %2174 = vmatprep.subr.mxu0 0.0
        %2175 = vmatpush1.msra.mxu0 0.0
        %2176 = vmatprep.subr.mxu0 0.0
        %2177 = vmatpush1.msra.mxu0 0.0
        %2178 = vmatprep.subr.mxu0 0.0
        %2179 = vmatpush1.msra.mxu0 0.0
        %2180 = vmatprep.subr.mxu0 0.0
        %2181 = vmatpush1.msra.mxu0 0.0
        %2182 = vmatprep.subr.mxu0 0.0
        %2183 = vmatpush1.msra.mxu0 0.0
        %2184 = vmatprep.subr.mxu0 0.0
        %2185 = vmatpush1.msra.mxu0 0.0
        %2186 = vmatprep.subr.mxu0 0.0
        %2187 = vmatpush1.msra.mxu0 0.0
        %2188 = vmatprep.subr.mxu0 0.0
        %2189 = vmatpush1.msra.mxu0 0.0
        %2190 = vmatprep.subr.mxu0 0.0
        %2191 = vmatpush1.msra.mxu0 0.0
        %2192 = vmatprep.subr.mxu0 0.0
        %2193 = vmatpush1.msra.mxu0 0.0
        %2194 = vmatprep.subr.mxu0 0.0
        %2195 = vmatpush1.msra.mxu0 0.0
        %2196 = vmatprep.subr.mxu0 0.0
        %2197 = vmatpush1.msra.mxu0 0.0
        %2198 = vmatprep.subr.mxu0 0.0
        %2199 = vmatpush1.msra.mxu0 0.0
        %2200 = vmatprep.subr.mxu0 0.0
        %2201 = vmatpush1.msra.mxu0 0.0
        %2202 = vmatprep.subr.mxu0 0.0
        %2203 = vmatpush1.msra.mxu0 0.0
        %2204 = vmatprep.subr.mxu0 0.0
        %2205 = vmatpush1.msra.mxu0 0.0
        %2206 = vmatprep.subr.mxu0 0.0
        %2207 = vmatpush1.msra.mxu0 0.0
        %2208 = vmatprep.subr.mxu0 0.0
        %2209 = vmatpush1.msra.mxu0 0.0
        %2210 = vmatprep.mubr.f32.mxu0 0.0
        %v2211 = vand.u32 %v1246, 4294901760
        %v2212 = vsub.f32 %v1246, %v2211
        %v2213 = vand.u32 %v2212, 4294901760
        %v2214 = vsub.f32 %v2212, %v2213
        %v2215 = vand.u32 %v2214, 4294901760
        %2216 = vmatmul.mubr.f32.gmra.mrb[0].mxu0 %v2215
        %v2217 = vpop.f32.mrb[0].mxu0
        %v2218 = vadd.f32 0.0, %v2217
        %v2219 = vpop.f32.mrb[0].mxu0
        %2220 = vdwg.mxu0
        %2221 = vmatprep.subr.mxu0 0.0
        %v2222 = vand.u32 %v342, 4294901760
        %v2223 = vsub.f32 %v342, %v2222
        %v2224 = vand.u32 %v2223, 4294901760
        %v2225 = vsub.f32 %v2223, %v2224
        %v2226 = vand.u32 %v2225, 4294901760
        %2227 = vmatpush1.msra.mxu0 %v2226
        %2228 = vmatprep.subr.mxu0 0.0
        %2229 = vmatpush1.msra.mxu0 0.0
        %2230 = vmatprep.subr.mxu0 0.0
        %2231 = vmatpush1.msra.mxu0 0.0
        %2232 = vmatprep.subr.mxu0 0.0
        %2233 = vmatpush1.msra.mxu0 0.0
        %2234 = vmatprep.subr.mxu0 0.0
        %2235 = vmatpush1.msra.mxu0 0.0
        %2236 = vmatprep.subr.mxu0 0.0
        %2237 = vmatpush1.msra.mxu0 0.0
        %2238 = vmatprep.subr.mxu0 0.0
        %2239 = vmatpush1.msra.mxu0 0.0
        %2240 = vmatprep.subr.mxu0 0.0
        %2241 = vmatpush1.msra.mxu0 0.0
        %2242 = vmatprep.subr.mxu0 0.0
        %2243 = vmatpush1.msra.mxu0 0.0
        %2244 = vmatprep.subr.mxu0 0.0
        %2245 = vmatpush1.msra.mxu0 0.0
        %2246 = vmatprep.subr.mxu0 0.0
        %2247 = vmatpush1.msra.mxu0 0.0
        %2248 = vmatprep.subr.mxu0 0.0
        %2249 = vmatpush1.msra.mxu0 0.0
        %2250 = vmatprep.subr.mxu0 0.0
        %2251 = vmatpush1.msra.mxu0 0.0
        %2252 = vmatprep.subr.mxu0 0.0
        %2253 = vmatpush1.msra.mxu0 0.0
        %2254 = vmatprep.subr.mxu0 0.0
        %2255 = vmatpush1.msra.mxu0 0.0
        %2256 = vmatprep.subr.mxu0 0.0
        %2257 = vmatpush1.msra.mxu0 0.0
        %2258 = vmatprep.subr.mxu0 0.0
        %2259 = vmatpush1.msra.mxu0 0.0
        %2260 = vmatprep.subr.mxu0 0.0
        %2261 = vmatpush1.msra.mxu0 0.0
        %2262 = vmatprep.subr.mxu0 0.0
        %2263 = vmatpush1.msra.mxu0 0.0
        %2264 = vmatprep.subr.mxu0 0.0
        %2265 = vmatpush1.msra.mxu0 0.0
        %2266 = vmatprep.subr.mxu0 0.0
        %2267 = vmatpush1.msra.mxu0 0.0
        %2268 = vmatprep.subr.mxu0 0.0
        %2269 = vmatpush1.msra.mxu0 0.0
        %2270 = vmatprep.subr.mxu0 0.0
        %2271 = vmatpush1.msra.mxu0 0.0
        %2272 = vmatprep.subr.mxu0 0.0
        %2273 = vmatpush1.msra.mxu0 0.0
        %2274 = vmatprep.subr.mxu0 0.0
        %2275 = vmatpush1.msra.mxu0 0.0
        %2276 = vmatprep.subr.mxu0 0.0
        %2277 = vmatpush1.msra.mxu0 0.0
        %2278 = vmatprep.subr.mxu0 0.0
        %2279 = vmatpush1.msra.mxu0 0.0
        %2280 = vmatprep.subr.mxu0 0.0
        %2281 = vmatpush1.msra.mxu0 0.0
        %2282 = vmatprep.subr.mxu0 0.0
        %2283 = vmatpush1.msra.mxu0 0.0
        %2284 = vmatprep.subr.mxu0 0.0
        %2285 = vmatpush1.msra.mxu0 0.0
        %2286 = vmatprep.subr.mxu0 0.0
        %2287 = vmatpush1.msra.mxu0 0.0
        %2288 = vmatprep.subr.mxu0 0.0
        %2289 = vmatpush1.msra.mxu0 0.0
        %2290 = vmatprep.mubr.f32.mxu0 0.0
        %v2291 = vand.u32 %v1246, 4294901760
        %2292 = vmatmul.mubr.f32.gmra.mrb[0].mxu0 %v2291
        %v2293 = vpop.f32.mrb[0].mxu0
        %v2294 = vadd.f32 %v2218, %v2293
        %v2295 = vpop.f32.mrb[0].mxu0
        %2296 = vdwg.mxu0
        %2297 = vmatprep.subr.mxu0 0.0
        %v2298 = vand.u32 %v342, 4294901760
        %v2299 = vsub.f32 %v342, %v2298
        %2300 = vmatpush1.msra.mxu0 %v2299
        %2301 = vmatprep.subr.mxu0 0.0
        %2302 = vmatpush1.msra.mxu0 0.0
        %2303 = vmatprep.subr.mxu0 0.0
        %2304 = vmatpush1.msra.mxu0 0.0
        %2305 = vmatprep.subr.mxu0 0.0
        %2306 = vmatpush1.msra.mxu0 0.0
        %2307 = vmatprep.subr.mxu0 0.0
        %2308 = vmatpush1.msra.mxu0 0.0
        %2309 = vmatprep.subr.mxu0 0.0
        %2310 = vmatpush1.msra.mxu0 0.0
        %2311 = vmatprep.subr.mxu0 0.0
        %2312 = vmatpush1.msra.mxu0 0.0
        %2313 = vmatprep.subr.mxu0 0.0
        %2314 = vmatpush1.msra.mxu0 0.0
        %2315 = vmatprep.subr.mxu0 0.0
        %2316 = vmatpush1.msra.mxu0 0.0
        %2317 = vmatprep.subr.mxu0 0.0
        %2318 = vmatpush1.msra.mxu0 0.0
        %2319 = vmatprep.subr.mxu0 0.0
        %2320 = vmatpush1.msra.mxu0 0.0
        %2321 = vmatprep.subr.mxu0 0.0
        %2322 = vmatpush1.msra.mxu0 0.0
        %2323 = vmatprep.subr.mxu0 0.0
        %2324 = vmatpush1.msra.mxu0 0.0
        %2325 = vmatprep.subr.mxu0 0.0
        %2326 = vmatpush1.msra.mxu0 0.0
        %2327 = vmatprep.subr.mxu0 0.0
        %2328 = vmatpush1.msra.mxu0 0.0
        %2329 = vmatprep.subr.mxu0 0.0
        %2330 = vmatpush1.msra.mxu0 0.0
        %2331 = vmatprep.subr.mxu0 0.0
        %2332 = vmatpush1.msra.mxu0 0.0
        %2333 = vmatprep.subr.mxu0 0.0
        %2334 = vmatpush1.msra.mxu0 0.0
        %2335 = vmatprep.subr.mxu0 0.0
        %2336 = vmatpush1.msra.mxu0 0.0
        %2337 = vmatprep.subr.mxu0 0.0
        %2338 = vmatpush1.msra.mxu0 0.0
        %2339 = vmatprep.subr.mxu0 0.0
        %2340 = vmatpush1.msra.mxu0 0.0
        %2341 = vmatprep.subr.mxu0 0.0
        %2342 = vmatpush1.msra.mxu0 0.0
        %2343 = vmatprep.subr.mxu0 0.0
        %2344 = vmatpush1.msra.mxu0 0.0
        %2345 = vmatprep.subr.mxu0 0.0
        %2346 = vmatpush1.msra.mxu0 0.0
        %2347 = vmatprep.subr.mxu0 0.0
        %2348 = vmatpush1.msra.mxu0 0.0
        %2349 = vmatprep.subr.mxu0 0.0
        %2350 = vmatpush1.msra.mxu0 0.0
        %2351 = vmatprep.subr.mxu0 0.0
        %2352 = vmatpush1.msra.mxu0 0.0
        %2353 = vmatprep.subr.mxu0 0.0
        %2354 = vmatpush1.msra.mxu0 0.0
        %2355 = vmatprep.subr.mxu0 0.0
        %2356 = vmatpush1.msra.mxu0 0.0
        %2357 = vmatprep.subr.mxu0 0.0
        %2358 = vmatpush1.msra.mxu0 0.0
        %2359 = vmatprep.subr.mxu0 0.0
        %2360 = vmatpush1.msra.mxu0 0.0
        %2361 = vmatprep.subr.mxu0 0.0
        %2362 = vmatpush1.msra.mxu0 0.0
        %2363 = vmatprep.mubr.f32.mxu0 0.0
        %v2364 = vand.u32 %v1246, 4294901760
        %v2365 = vsub.f32 %v1246, %v2364
        %2366 = vmatmul.mubr.f32.gmra.mrb[0].mxu0 %v2365
        %v2367 = vpop.f32.mrb[0].mxu0
        %v2368 = vadd.f32 %v2294, %v2367
        %v2369 = vpop.f32.mrb[0].mxu0
        %2370 = vdwg.mxu0
        %2371 = vmatprep.subr.mxu0 0.0
        %v2372 = vand.u32 %v342, 4294901760
        %2373 = vmatpush1.msra.mxu0 %v2372
        %2374 = vmatprep.subr.mxu0 0.0
        %2375 = vmatpush1.msra.mxu0 0.0
        %2376 = vmatprep.subr.mxu0 0.0
        %2377 = vmatpush1.msra.mxu0 0.0
        %2378 = vmatprep.subr.mxu0 0.0
        %2379 = vmatpush1.msra.mxu0 0.0
        %2380 = vmatprep.subr.mxu0 0.0
        %2381 = vmatpush1.msra.mxu0 0.0
        %2382 = vmatprep.subr.mxu0 0.0
        %2383 = vmatpush1.msra.mxu0 0.0
        %2384 = vmatprep.subr.mxu0 0.0
        %2385 = vmatpush1.msra.mxu0 0.0
        %2386 = vmatprep.subr.mxu0 0.0
        %2387 = vmatpush1.msra.mxu0 0.0
        %2388 = vmatprep.subr.mxu0 0.0
        %2389 = vmatpush1.msra.mxu0 0.0
        %2390 = vmatprep.subr.mxu0 0.0
        %2391 = vmatpush1.msra.mxu0 0.0
        %2392 = vmatprep.subr.mxu0 0.0
        %2393 = vmatpush1.msra.mxu0 0.0
        %2394 = vmatprep.subr.mxu0 0.0
        %2395 = vmatpush1.msra.mxu0 0.0
        %2396 = vmatprep.subr.mxu0 0.0
        %2397 = vmatpush1.msra.mxu0 0.0
        %2398 = vmatprep.subr.mxu0 0.0
        %2399 = vmatpush1.msra.mxu0 0.0
        %2400 = vmatprep.subr.mxu0 0.0
        %2401 = vmatpush1.msra.mxu0 0.0
        %2402 = vmatprep.subr.mxu0 0.0
        %2403 = vmatpush1.msra.mxu0 0.0
        %2404 = vmatprep.subr.mxu0 0.0
        %2405 = vmatpush1.msra.mxu0 0.0
        %2406 = vmatprep.subr.mxu0 0.0
        %2407 = vmatpush1.msra.mxu0 0.0
        %2408 = vmatprep.subr.mxu0 0.0
        %2409 = vmatpush1.msra.mxu0 0.0
        %2410 = vmatprep.subr.mxu0 0.0
        %2411 = vmatpush1.msra.mxu0 0.0
        %2412 = vmatprep.subr.mxu0 0.0
        %2413 = vmatpush1.msra.mxu0 0.0
        %2414 = vmatprep.subr.mxu0 0.0
        %2415 = vmatpush1.msra.mxu0 0.0
        %2416 = vmatprep.subr.mxu0 0.0
        %2417 = vmatpush1.msra.mxu0 0.0
        %2418 = vmatprep.subr.mxu0 0.0
        %2419 = vmatpush1.msra.mxu0 0.0
        %2420 = vmatprep.subr.mxu0 0.0
        %2421 = vmatpush1.msra.mxu0 0.0
        %2422 = vmatprep.subr.mxu0 0.0
        %2423 = vmatpush1.msra.mxu0 0.0
        %2424 = vmatprep.subr.mxu0 0.0
        %2425 = vmatpush1.msra.mxu0 0.0
        %2426 = vmatprep.subr.mxu0 0.0
        %2427 = vmatpush1.msra.mxu0 0.0
        %2428 = vmatprep.subr.mxu0 0.0
        %2429 = vmatpush1.msra.mxu0 0.0
        %2430 = vmatprep.subr.mxu0 0.0
        %2431 = vmatpush1.msra.mxu0 0.0
        %2432 = vmatprep.subr.mxu0 0.0
        %2433 = vmatpush1.msra.mxu0 0.0
        %2434 = vmatprep.subr.mxu0 0.0
        %2435 = vmatpush1.msra.mxu0 0.0
        %2436 = vmatprep.mubr.f32.mxu0 0.0
        %v2437 = vand.u32 %v1246, 4294901760
        %v2438 = vsub.f32 %v1246, %v2437
        %v2439 = vand.u32 %v2438, 4294901760
        %2440 = vmatmul.mubr.f32.gmra.mrb[0].mxu0 %v2439
        %v2441 = vpop.f32.mrb[0].mxu0
        %v2442 = vadd.f32 %v2368, %v2441
        %v2443 = vpop.f32.mrb[0].mxu0
        %2444 = vdwg.mxu0
        %2445 = vmatprep.subr.mxu0 0.0
        %v2446 = vand.u32 %v342, 4294901760
        %v2447 = vsub.f32 %v342, %v2446
        %v2448 = vand.u32 %v2447, 4294901760
        %2449 = vmatpush1.msra.mxu0 %v2448
        %2450 = vmatprep.subr.mxu0 0.0
        %2451 = vmatpush1.msra.mxu0 0.0
        %2452 = vmatprep.subr.mxu0 0.0
        %2453 = vmatpush1.msra.mxu0 0.0
        %2454 = vmatprep.subr.mxu0 0.0
        %2455 = vmatpush1.msra.mxu0 0.0
        %2456 = vmatprep.subr.mxu0 0.0
        %2457 = vmatpush1.msra.mxu0 0.0
        %2458 = vmatprep.subr.mxu0 0.0
        %2459 = vmatpush1.msra.mxu0 0.0
        %2460 = vmatprep.subr.mxu0 0.0
        %2461 = vmatpush1.msra.mxu0 0.0
        %2462 = vmatprep.subr.mxu0 0.0
        %2463 = vmatpush1.msra.mxu0 0.0
        %2464 = vmatprep.subr.mxu0 0.0
        %2465 = vmatpush1.msra.mxu0 0.0
        %2466 = vmatprep.subr.mxu0 0.0
        %2467 = vmatpush1.msra.mxu0 0.0
        %2468 = vmatprep.subr.mxu0 0.0
        %2469 = vmatpush1.msra.mxu0 0.0
        %2470 = vmatprep.subr.mxu0 0.0
        %2471 = vmatpush1.msra.mxu0 0.0
        %2472 = vmatprep.subr.mxu0 0.0
        %2473 = vmatpush1.msra.mxu0 0.0
        %2474 = vmatprep.subr.mxu0 0.0
        %2475 = vmatpush1.msra.mxu0 0.0
        %2476 = vmatprep.subr.mxu0 0.0
        %2477 = vmatpush1.msra.mxu0 0.0
        %2478 = vmatprep.subr.mxu0 0.0
        %2479 = vmatpush1.msra.mxu0 0.0
        %2480 = vmatprep.subr.mxu0 0.0
        %2481 = vmatpush1.msra.mxu0 0.0
        %2482 = vmatprep.subr.mxu0 0.0
        %2483 = vmatpush1.msra.mxu0 0.0
        %2484 = vmatprep.subr.mxu0 0.0
        %2485 = vmatpush1.msra.mxu0 0.0
        %2486 = vmatprep.subr.mxu0 0.0
        %2487 = vmatpush1.msra.mxu0 0.0
        %2488 = vmatprep.subr.mxu0 0.0
        %2489 = vmatpush1.msra.mxu0 0.0
        %2490 = vmatprep.subr.mxu0 0.0
        %2491 = vmatpush1.msra.mxu0 0.0
        %2492 = vmatprep.subr.mxu0 0.0
        %2493 = vmatpush1.msra.mxu0 0.0
        %2494 = vmatprep.subr.mxu0 0.0
        %2495 = vmatpush1.msra.mxu0 0.0
        %2496 = vmatprep.subr.mxu0 0.0
        %2497 = vmatpush1.msra.mxu0 0.0
        %2498 = vmatprep.subr.mxu0 0.0
        %2499 = vmatpush1.msra.mxu0 0.0
        %2500 = vmatprep.subr.mxu0 0.0
        %2501 = vmatpush1.msra.mxu0 0.0
        %2502 = vmatprep.subr.mxu0 0.0
        %2503 = vmatpush1.msra.mxu0 0.0
        %2504 = vmatprep.subr.mxu0 0.0
        %2505 = vmatpush1.msra.mxu0 0.0
        %2506 = vmatprep.subr.mxu0 0.0
        %2507 = vmatpush1.msra.mxu0 0.0
        %2508 = vmatprep.subr.mxu0 0.0
        %2509 = vmatpush1.msra.mxu0 0.0
        %2510 = vmatprep.subr.mxu0 0.0
        %2511 = vmatpush1.msra.mxu0 0.0
        %2512 = vmatprep.mubr.f32.mxu0 0.0
        %v2513 = vand.u32 %v1246, 4294901760
        %2514 = vmatmul.mubr.f32.gmra.mrb[0].mxu0 %v2513
        %v2515 = vpop.f32.mrb[0].mxu0
        %v2516 = vadd.f32 %v2442, %v2515
        %v2517 = vpop.f32.mrb[0].mxu0
        %2518 = vdwg.mxu0
        %2519 = vmatprep.subr.mxu0 0.0
        %v2520 = vand.u32 %v342, 4294901760
        %2521 = vmatpush1.msra.mxu0 %v2520
        %2522 = vmatprep.subr.mxu0 0.0
        %2523 = vmatpush1.msra.mxu0 0.0
        %2524 = vmatprep.subr.mxu0 0.0
        %2525 = vmatpush1.msra.mxu0 0.0
        %2526 = vmatprep.subr.mxu0 0.0
        %2527 = vmatpush1.msra.mxu0 0.0
        %2528 = vmatprep.subr.mxu0 0.0
        %2529 = vmatpush1.msra.mxu0 0.0
        %2530 = vmatprep.subr.mxu0 0.0
        %2531 = vmatpush1.msra.mxu0 0.0
        %2532 = vmatprep.subr.mxu0 0.0
        %2533 = vmatpush1.msra.mxu0 0.0
        %2534 = vmatprep.subr.mxu0 0.0
        %2535 = vmatpush1.msra.mxu0 0.0
        %2536 = vmatprep.subr.mxu0 0.0
        %2537 = vmatpush1.msra.mxu0 0.0
        %2538 = vmatprep.subr.mxu0 0.0
        %2539 = vmatpush1.msra.mxu0 0.0
        %2540 = vmatprep.subr.mxu0 0.0
        %2541 = vmatpush1.msra.mxu0 0.0
        %2542 = vmatprep.subr.mxu0 0.0
        %2543 = vmatpush1.msra.mxu0 0.0
        %2544 = vmatprep.subr.mxu0 0.0
        %2545 = vmatpush1.msra.mxu0 0.0
        %2546 = vmatprep.subr.mxu0 0.0
        %2547 = vmatpush1.msra.mxu0 0.0
        %2548 = vmatprep.subr.mxu0 0.0
        %2549 = vmatpush1.msra.mxu0 0.0
        %2550 = vmatprep.subr.mxu0 0.0
        %2551 = vmatpush1.msra.mxu0 0.0
        %2552 = vmatprep.subr.mxu0 0.0
        %2553 = vmatpush1.msra.mxu0 0.0
        %2554 = vmatprep.subr.mxu0 0.0
        %2555 = vmatpush1.msra.mxu0 0.0
        %2556 = vmatprep.subr.mxu0 0.0
        %2557 = vmatpush1.msra.mxu0 0.0
        %2558 = vmatprep.subr.mxu0 0.0
        %2559 = vmatpush1.msra.mxu0 0.0
        %2560 = vmatprep.subr.mxu0 0.0
        %2561 = vmatpush1.msra.mxu0 0.0
        %2562 = vmatprep.subr.mxu0 0.0
        %2563 = vmatpush1.msra.mxu0 0.0
        %2564 = vmatprep.subr.mxu0 0.0
        %2565 = vmatpush1.msra.mxu0 0.0
        %2566 = vmatprep.subr.mxu0 0.0
        %2567 = vmatpush1.msra.mxu0 0.0
        %2568 = vmatprep.subr.mxu0 0.0
        %2569 = vmatpush1.msra.mxu0 0.0
        %2570 = vmatprep.subr.mxu0 0.0
        %2571 = vmatpush1.msra.mxu0 0.0
        %2572 = vmatprep.subr.mxu0 0.0
        %2573 = vmatpush1.msra.mxu0 0.0
        %2574 = vmatprep.subr.mxu0 0.0
        %2575 = vmatpush1.msra.mxu0 0.0
        %2576 = vmatprep.subr.mxu0 0.0
        %2577 = vmatpush1.msra.mxu0 0.0
        %2578 = vmatprep.subr.mxu0 0.0
        %2579 = vmatpush1.msra.mxu0 0.0
        %2580 = vmatprep.subr.mxu0 0.0
        %2581 = vmatpush1.msra.mxu0 0.0
        %2582 = vmatprep.subr.mxu0 0.0
        %2583 = vmatpush1.msra.mxu0 0.0
        %2584 = vmatprep.mubr.f32.mxu0 0.0
        %v2585 = vand.u32 %v1246, 4294901760
        %2586 = vmatmul.mubr.f32.gmra.mrb[0].mxu0 %v2585
        %v2587 = vpop.f32.mrb[0].mxu0
        %v2588 = vadd.f32 %v2516, %v2587
        %v2589 = vpop.f32.mrb[0].mxu0
        %2590 = vdwg.mxu0
        %2591 = vmatprep.subr.mxu0 0.0
        %v2592 = vand.u32 %v343, 4294901760
        %2593 = vmatpush1.msra.mxu0 %v2592
        %2594 = vmatprep.subr.mxu0 0.0
        %2595 = vmatpush1.msra.mxu0 0.0
        %2596 = vmatprep.subr.mxu0 0.0
        %2597 = vmatpush1.msra.mxu0 0.0
        %2598 = vmatprep.subr.mxu0 0.0
        %2599 = vmatpush1.msra.mxu0 0.0
        %2600 = vmatprep.subr.mxu0 0.0
        %2601 = vmatpush1.msra.mxu0 0.0
        %2602 = vmatprep.subr.mxu0 0.0
        %2603 = vmatpush1.msra.mxu0 0.0
        %2604 = vmatprep.subr.mxu0 0.0
        %2605 = vmatpush1.msra.mxu0 0.0
        %2606 = vmatprep.subr.mxu0 0.0
        %2607 = vmatpush1.msra.mxu0 0.0
        %2608 = vmatprep.subr.mxu0 0.0
        %2609 = vmatpush1.msra.mxu0 0.0
        %2610 = vmatprep.subr.mxu0 0.0
        %2611 = vmatpush1.msra.mxu0 0.0
        %2612 = vmatprep.subr.mxu0 0.0
        %2613 = vmatpush1.msra.mxu0 0.0
        %2614 = vmatprep.subr.mxu0 0.0
        %2615 = vmatpush1.msra.mxu0 0.0
        %2616 = vmatprep.subr.mxu0 0.0
        %2617 = vmatpush1.msra.mxu0 0.0
        %2618 = vmatprep.subr.mxu0 0.0
        %2619 = vmatpush1.msra.mxu0 0.0
        %2620 = vmatprep.subr.mxu0 0.0
        %2621 = vmatpush1.msra.mxu0 0.0
        %2622 = vmatprep.subr.mxu0 0.0
        %2623 = vmatpush1.msra.mxu0 0.0
        %2624 = vmatprep.subr.mxu0 0.0
        %2625 = vmatpush1.msra.mxu0 0.0
        %2626 = vmatprep.subr.mxu0 0.0
        %2627 = vmatpush1.msra.mxu0 0.0
        %2628 = vmatprep.subr.mxu0 0.0
        %2629 = vmatpush1.msra.mxu0 0.0
        %2630 = vmatprep.subr.mxu0 0.0
        %2631 = vmatpush1.msra.mxu0 0.0
        %2632 = vmatprep.subr.mxu0 0.0
        %2633 = vmatpush1.msra.mxu0 0.0
        %2634 = vmatprep.subr.mxu0 0.0
        %2635 = vmatpush1.msra.mxu0 0.0
        %2636 = vmatprep.subr.mxu0 0.0
        %2637 = vmatpush1.msra.mxu0 0.0
        %2638 = vmatprep.subr.mxu0 0.0
        %2639 = vmatpush1.msra.mxu0 0.0
        %2640 = vmatprep.subr.mxu0 0.0
        %2641 = vmatpush1.msra.mxu0 0.0
        %2642 = vmatprep.subr.mxu0 0.0
        %2643 = vmatpush1.msra.mxu0 0.0
        %2644 = vmatprep.subr.mxu0 0.0
        %2645 = vmatpush1.msra.mxu0 0.0
        %2646 = vmatprep.subr.mxu0 0.0
        %2647 = vmatpush1.msra.mxu0 0.0
        %2648 = vmatprep.subr.mxu0 0.0
        %2649 = vmatpush1.msra.mxu0 0.0
        %2650 = vmatprep.subr.mxu0 0.0
        %2651 = vmatpush1.msra.mxu0 0.0
        %2652 = vmatprep.subr.mxu0 0.0
        %2653 = vmatpush1.msra.mxu0 0.0
        %2654 = vmatprep.subr.mxu0 0.0
        %2655 = vmatpush1.msra.mxu0 0.0
        %2656 = vmatprep.mubr.f32.mxu0 0.0
        %v2657 = vand.u32 %v1695, 4294901760
        %v2658 = vsub.f32 %v1695, %v2657
        %v2659 = vand.u32 %v2658, 4294901760
        %v2660 = vsub.f32 %v2658, %v2659
        %v2661 = vand.u32 %v2660, 4294901760
        %2662 = vmatmul.mubr.f32.gmra.mrb[0].mxu0 %v2661
        %v2663 = vpop.f32.mrb[0].mxu0
        %v2664 = vadd.f32 0.0, %v2663
        %v2665 = vpop.f32.mrb[0].mxu0
        %2666 = vdwg.mxu0
        %2667 = vmatprep.subr.mxu0 0.0
        %v2668 = vand.u32 %v343, 4294901760
        %v2669 = vsub.f32 %v343, %v2668
        %v2670 = vand.u32 %v2669, 4294901760
        %v2671 = vsub.f32 %v2669, %v2670
        %v2672 = vand.u32 %v2671, 4294901760
        %2673 = vmatpush1.msra.mxu0 %v2672
        %2674 = vmatprep.subr.mxu0 0.0
        %2675 = vmatpush1.msra.mxu0 0.0
        %2676 = vmatprep.subr.mxu0 0.0
        %2677 = vmatpush1.msra.mxu0 0.0
        %2678 = vmatprep.subr.mxu0 0.0
        %2679 = vmatpush1.msra.mxu0 0.0
        %2680 = vmatprep.subr.mxu0 0.0
        %2681 = vmatpush1.msra.mxu0 0.0
        %2682 = vmatprep.subr.mxu0 0.0
        %2683 = vmatpush1.msra.mxu0 0.0
        %2684 = vmatprep.subr.mxu0 0.0
        %2685 = vmatpush1.msra.mxu0 0.0
        %2686 = vmatprep.subr.mxu0 0.0
        %2687 = vmatpush1.msra.mxu0 0.0
        %2688 = vmatprep.subr.mxu0 0.0
        %2689 = vmatpush1.msra.mxu0 0.0
        %2690 = vmatprep.subr.mxu0 0.0
        %2691 = vmatpush1.msra.mxu0 0.0
        %2692 = vmatprep.subr.mxu0 0.0
        %2693 = vmatpush1.msra.mxu0 0.0
        %2694 = vmatprep.subr.mxu0 0.0
        %2695 = vmatpush1.msra.mxu0 0.0
        %2696 = vmatprep.subr.mxu0 0.0
        %2697 = vmatpush1.msra.mxu0 0.0
        %2698 = vmatprep.subr.mxu0 0.0
        %2699 = vmatpush1.msra.mxu0 0.0
        %2700 = vmatprep.subr.mxu0 0.0
        %2701 = vmatpush1.msra.mxu0 0.0
        %2702 = vmatprep.subr.mxu0 0.0
        %2703 = vmatpush1.msra.mxu0 0.0
        %2704 = vmatprep.subr.mxu0 0.0
        %2705 = vmatpush1.msra.mxu0 0.0
        %2706 = vmatprep.subr.mxu0 0.0
        %2707 = vmatpush1.msra.mxu0 0.0
        %2708 = vmatprep.subr.mxu0 0.0
        %2709 = vmatpush1.msra.mxu0 0.0
        %2710 = vmatprep.subr.mxu0 0.0
        %2711 = vmatpush1.msra.mxu0 0.0
        %2712 = vmatprep.subr.mxu0 0.0
        %2713 = vmatpush1.msra.mxu0 0.0
        %2714 = vmatprep.subr.mxu0 0.0
        %2715 = vmatpush1.msra.mxu0 0.0
        %2716 = vmatprep.subr.mxu0 0.0
        %2717 = vmatpush1.msra.mxu0 0.0
        %2718 = vmatprep.subr.mxu0 0.0
        %2719 = vmatpush1.msra.mxu0 0.0
        %2720 = vmatprep.subr.mxu0 0.0
        %2721 = vmatpush1.msra.mxu0 0.0
        %2722 = vmatprep.subr.mxu0 0.0
        %2723 = vmatpush1.msra.mxu0 0.0
        %2724 = vmatprep.subr.mxu0 0.0
        %2725 = vmatpush1.msra.mxu0 0.0
        %2726 = vmatprep.subr.mxu0 0.0
        %2727 = vmatpush1.msra.mxu0 0.0
        %2728 = vmatprep.subr.mxu0 0.0
        %2729 = vmatpush1.msra.mxu0 0.0
        %2730 = vmatprep.subr.mxu0 0.0
        %2731 = vmatpush1.msra.mxu0 0.0
        %2732 = vmatprep.subr.mxu0 0.0
        %2733 = vmatpush1.msra.mxu0 0.0
        %2734 = vmatprep.subr.mxu0 0.0
        %2735 = vmatpush1.msra.mxu0 0.0
        %2736 = vmatprep.mubr.f32.mxu0 0.0
        %v2737 = vand.u32 %v1695, 4294901760
        %2738 = vmatmul.mubr.f32.gmra.mrb[0].mxu0 %v2737
        %v2739 = vpop.f32.mrb[0].mxu0
        %v2740 = vadd.f32 %v2664, %v2739
        %v2741 = vpop.f32.mrb[0].mxu0
        %2742 = vdwg.mxu0
        %2743 = vmatprep.subr.mxu0 0.0
        %v2744 = vand.u32 %v343, 4294901760
        %v2745 = vsub.f32 %v343, %v2744
        %2746 = vmatpush1.msra.mxu0 %v2745
        %2747 = vmatprep.subr.mxu0 0.0
        %2748 = vmatpush1.msra.mxu0 0.0
        %2749 = vmatprep.subr.mxu0 0.0
        %2750 = vmatpush1.msra.mxu0 0.0
        %2751 = vmatprep.subr.mxu0 0.0
        %2752 = vmatpush1.msra.mxu0 0.0
        %2753 = vmatprep.subr.mxu0 0.0
        %2754 = vmatpush1.msra.mxu0 0.0
        %2755 = vmatprep.subr.mxu0 0.0
        %2756 = vmatpush1.msra.mxu0 0.0
        %2757 = vmatprep.subr.mxu0 0.0
        %2758 = vmatpush1.msra.mxu0 0.0
        %2759 = vmatprep.subr.mxu0 0.0
        %2760 = vmatpush1.msra.mxu0 0.0
        %2761 = vmatprep.subr.mxu0 0.0
        %2762 = vmatpush1.msra.mxu0 0.0
        %2763 = vmatprep.subr.mxu0 0.0
        %2764 = vmatpush1.msra.mxu0 0.0
        %2765 = vmatprep.subr.mxu0 0.0
        %2766 = vmatpush1.msra.mxu0 0.0
        %2767 = vmatprep.subr.mxu0 0.0
        %2768 = vmatpush1.msra.mxu0 0.0
        %2769 = vmatprep.subr.mxu0 0.0
        %2770 = vmatpush1.msra.mxu0 0.0
        %2771 = vmatprep.subr.mxu0 0.0
        %2772 = vmatpush1.msra.mxu0 0.0
        %2773 = vmatprep.subr.mxu0 0.0
        %2774 = vmatpush1.msra.mxu0 0.0
        %2775 = vmatprep.subr.mxu0 0.0
        %2776 = vmatpush1.msra.mxu0 0.0
        %2777 = vmatprep.subr.mxu0 0.0
        %2778 = vmatpush1.msra.mxu0 0.0
        %2779 = vmatprep.subr.mxu0 0.0
        %2780 = vmatpush1.msra.mxu0 0.0
        %2781 = vmatprep.subr.mxu0 0.0
        %2782 = vmatpush1.msra.mxu0 0.0
        %2783 = vmatprep.subr.mxu0 0.0
        %2784 = vmatpush1.msra.mxu0 0.0
        %2785 = vmatprep.subr.mxu0 0.0
        %2786 = vmatpush1.msra.mxu0 0.0
        %2787 = vmatprep.subr.mxu0 0.0
        %2788 = vmatpush1.msra.mxu0 0.0
        %2789 = vmatprep.subr.mxu0 0.0
        %2790 = vmatpush1.msra.mxu0 0.0
        %2791 = vmatprep.subr.mxu0 0.0
        %2792 = vmatpush1.msra.mxu0 0.0
        %2793 = vmatprep.subr.mxu0 0.0
        %2794 = vmatpush1.msra.mxu0 0.0
        %2795 = vmatprep.subr.mxu0 0.0
        %2796 = vmatpush1.msra.mxu0 0.0
        %2797 = vmatprep.subr.mxu0 0.0
        %2798 = vmatpush1.msra.mxu0 0.0
        %2799 = vmatprep.subr.mxu0 0.0
        %2800 = vmatpush1.msra.mxu0 0.0
        %2801 = vmatprep.subr.mxu0 0.0
        %2802 = vmatpush1.msra.mxu0 0.0
        %2803 = vmatprep.subr.mxu0 0.0
        %2804 = vmatpush1.msra.mxu0 0.0
        %2805 = vmatprep.subr.mxu0 0.0
        %2806 = vmatpush1.msra.mxu0 0.0
        %2807 = vmatprep.subr.mxu0 0.0
        %2808 = vmatpush1.msra.mxu0 0.0
        %2809 = vmatprep.mubr.f32.mxu0 0.0
        %v2810 = vand.u32 %v1695, 4294901760
        %v2811 = vsub.f32 %v1695, %v2810
        %2812 = vmatmul.mubr.f32.gmra.mrb[0].mxu0 %v2811
        %v2813 = vpop.f32.mrb[0].mxu0
        %v2814 = vadd.f32 %v2740, %v2813
        %v2815 = vpop.f32.mrb[0].mxu0
        %2816 = vdwg.mxu0
        %2817 = vmatprep.subr.mxu0 0.0
        %v2818 = vand.u32 %v343, 4294901760
        %2819 = vmatpush1.msra.mxu0 %v2818
        %2820 = vmatprep.subr.mxu0 0.0
        %2821 = vmatpush1.msra.mxu0 0.0
        %2822 = vmatprep.subr.mxu0 0.0
        %2823 = vmatpush1.msra.mxu0 0.0
        %2824 = vmatprep.subr.mxu0 0.0
        %2825 = vmatpush1.msra.mxu0 0.0
        %2826 = vmatprep.subr.mxu0 0.0
        %2827 = vmatpush1.msra.mxu0 0.0
        %2828 = vmatprep.subr.mxu0 0.0
        %2829 = vmatpush1.msra.mxu0 0.0
        %2830 = vmatprep.subr.mxu0 0.0
        %2831 = vmatpush1.msra.mxu0 0.0
        %2832 = vmatprep.subr.mxu0 0.0
        %2833 = vmatpush1.msra.mxu0 0.0
        %2834 = vmatprep.subr.mxu0 0.0
        %2835 = vmatpush1.msra.mxu0 0.0
        %2836 = vmatprep.subr.mxu0 0.0
        %2837 = vmatpush1.msra.mxu0 0.0
        %2838 = vmatprep.subr.mxu0 0.0
        %2839 = vmatpush1.msra.mxu0 0.0
        %2840 = vmatprep.subr.mxu0 0.0
        %2841 = vmatpush1.msra.mxu0 0.0
        %2842 = vmatprep.subr.mxu0 0.0
        %2843 = vmatpush1.msra.mxu0 0.0
        %2844 = vmatprep.subr.mxu0 0.0
        %2845 = vmatpush1.msra.mxu0 0.0
        %2846 = vmatprep.subr.mxu0 0.0
        %2847 = vmatpush1.msra.mxu0 0.0
        %2848 = vmatprep.subr.mxu0 0.0
        %2849 = vmatpush1.msra.mxu0 0.0
        %2850 = vmatprep.subr.mxu0 0.0
        %2851 = vmatpush1.msra.mxu0 0.0
        %2852 = vmatprep.subr.mxu0 0.0
        %2853 = vmatpush1.msra.mxu0 0.0
        %2854 = vmatprep.subr.mxu0 0.0
        %2855 = vmatpush1.msra.mxu0 0.0
        %2856 = vmatprep.subr.mxu0 0.0
        %2857 = vmatpush1.msra.mxu0 0.0
        %2858 = vmatprep.subr.mxu0 0.0
        %2859 = vmatpush1.msra.mxu0 0.0
        %2860 = vmatprep.subr.mxu0 0.0
        %2861 = vmatpush1.msra.mxu0 0.0
        %2862 = vmatprep.subr.mxu0 0.0
        %2863 = vmatpush1.msra.mxu0 0.0
        %2864 = vmatprep.subr.mxu0 0.0
        %2865 = vmatpush1.msra.mxu0 0.0
        %2866 = vmatprep.subr.mxu0 0.0
        %2867 = vmatpush1.msra.mxu0 0.0
        %2868 = vmatprep.subr.mxu0 0.0
        %2869 = vmatpush1.msra.mxu0 0.0
        %2870 = vmatprep.subr.mxu0 0.0
        %2871 = vmatpush1.msra.mxu0 0.0
        %2872 = vmatprep.subr.mxu0 0.0
        %2873 = vmatpush1.msra.mxu0 0.0
        %2874 = vmatprep.subr.mxu0 0.0
        %2875 = vmatpush1.msra.mxu0 0.0
        %2876 = vmatprep.subr.mxu0 0.0
        %2877 = vmatpush1.msra.mxu0 0.0
        %2878 = vmatprep.subr.mxu0 0.0
        %2879 = vmatpush1.msra.mxu0 0.0
        %2880 = vmatprep.subr.mxu0 0.0
        %2881 = vmatpush1.msra.mxu0 0.0
        %2882 = vmatprep.mubr.f32.mxu0 0.0
        %v2883 = vand.u32 %v1695, 4294901760
        %v2884 = vsub.f32 %v1695, %v2883
        %v2885 = vand.u32 %v2884, 4294901760
        %2886 = vmatmul.mubr.f32.gmra.mrb[0].mxu0 %v2885
        %v2887 = vpop.f32.mrb[0].mxu0
        %v2888 = vadd.f32 %v2814, %v2887
        %v2889 = vpop.f32.mrb[0].mxu0
        %2890 = vdwg.mxu0
        %2891 = vmatprep.subr.mxu0 0.0
        %v2892 = vand.u32 %v343, 4294901760
        %v2893 = vsub.f32 %v343, %v2892
        %v2894 = vand.u32 %v2893, 4294901760
        %2895 = vmatpush1.msra.mxu0 %v2894
        %2896 = vmatprep.subr.mxu0 0.0
        %2897 = vmatpush1.msra.mxu0 0.0
        %2898 = vmatprep.subr.mxu0 0.0
        %2899 = vmatpush1.msra.mxu0 0.0
        %2900 = vmatprep.subr.mxu0 0.0
        %2901 = vmatpush1.msra.mxu0 0.0
        %2902 = vmatprep.subr.mxu0 0.0
        %2903 = vmatpush1.msra.mxu0 0.0
        %2904 = vmatprep.subr.mxu0 0.0
        %2905 = vmatpush1.msra.mxu0 0.0
        %2906 = vmatprep.subr.mxu0 0.0
        %2907 = vmatpush1.msra.mxu0 0.0
        %2908 = vmatprep.subr.mxu0 0.0
        %2909 = vmatpush1.msra.mxu0 0.0
        %2910 = vmatprep.subr.mxu0 0.0
        %2911 = vmatpush1.msra.mxu0 0.0
        %2912 = vmatprep.subr.mxu0 0.0
        %2913 = vmatpush1.msra.mxu0 0.0
        %2914 = vmatprep.subr.mxu0 0.0
        %2915 = vmatpush1.msra.mxu0 0.0
        %2916 = vmatprep.subr.mxu0 0.0
        %2917 = vmatpush1.msra.mxu0 0.0
        %2918 = vmatprep.subr.mxu0 0.0
        %2919 = vmatpush1.msra.mxu0 0.0
        %2920 = vmatprep.subr.mxu0 0.0
        %2921 = vmatpush1.msra.mxu0 0.0
        %2922 = vmatprep.subr.mxu0 0.0
        %2923 = vmatpush1.msra.mxu0 0.0
        %2924 = vmatprep.subr.mxu0 0.0
        %2925 = vmatpush1.msra.mxu0 0.0
        %2926 = vmatprep.subr.mxu0 0.0
        %2927 = vmatpush1.msra.mxu0 0.0
        %2928 = vmatprep.subr.mxu0 0.0
        %2929 = vmatpush1.msra.mxu0 0.0
        %2930 = vmatprep.subr.mxu0 0.0
        %2931 = vmatpush1.msra.mxu0 0.0
        %2932 = vmatprep.subr.mxu0 0.0
        %2933 = vmatpush1.msra.mxu0 0.0
        %2934 = vmatprep.subr.mxu0 0.0
        %2935 = vmatpush1.msra.mxu0 0.0
        %2936 = vmatprep.subr.mxu0 0.0
        %2937 = vmatpush1.msra.mxu0 0.0
        %2938 = vmatprep.subr.mxu0 0.0
        %2939 = vmatpush1.msra.mxu0 0.0
        %2940 = vmatprep.subr.mxu0 0.0
        %2941 = vmatpush1.msra.mxu0 0.0
        %2942 = vmatprep.subr.mxu0 0.0
        %2943 = vmatpush1.msra.mxu0 0.0
        %2944 = vmatprep.subr.mxu0 0.0
        %2945 = vmatpush1.msra.mxu0 0.0
        %2946 = vmatprep.subr.mxu0 0.0
        %2947 = vmatpush1.msra.mxu0 0.0
        %2948 = vmatprep.subr.mxu0 0.0
        %2949 = vmatpush1.msra.mxu0 0.0
        %2950 = vmatprep.subr.mxu0 0.0
        %2951 = vmatpush1.msra.mxu0 0.0
        %2952 = vmatprep.subr.mxu0 0.0
        %2953 = vmatpush1.msra.mxu0 0.0
        %2954 = vmatprep.subr.mxu0 0.0
        %2955 = vmatpush1.msra.mxu0 0.0
        %2956 = vmatprep.subr.mxu0 0.0
        %2957 = vmatpush1.msra.mxu0 0.0
        %2958 = vmatprep.mubr.f32.mxu0 0.0
        %v2959 = vand.u32 %v1695, 4294901760
        %2960 = vmatmul.mubr.f32.gmra.mrb[0].mxu0 %v2959
        %v2961 = vpop.f32.mrb[0].mxu0
        %v2962 = vadd.f32 %v2888, %v2961
        %v2963 = vpop.f32.mrb[0].mxu0
        %2964 = vdwg.mxu0
        %2965 = vmatprep.subr.mxu0 0.0
        %v2966 = vand.u32 %v343, 4294901760
        %2967 = vmatpush1.msra.mxu0 %v2966
        %2968 = vmatprep.subr.mxu0 0.0
        %2969 = vmatpush1.msra.mxu0 0.0
        %2970 = vmatprep.subr.mxu0 0.0
        %2971 = vmatpush1.msra.mxu0 0.0
        %2972 = vmatprep.subr.mxu0 0.0
        %2973 = vmatpush1.msra.mxu0 0.0
        %2974 = vmatprep.subr.mxu0 0.0
        %2975 = vmatpush1.msra.mxu0 0.0
        %2976 = vmatprep.subr.mxu0 0.0
        %2977 = vmatpush1.msra.mxu0 0.0
        %2978 = vmatprep.subr.mxu0 0.0
        %2979 = vmatpush1.msra.mxu0 0.0
        %2980 = vmatprep.subr.mxu0 0.0
        %2981 = vmatpush1.msra.mxu0 0.0
        %2982 = vmatprep.subr.mxu0 0.0
        %2983 = vmatpush1.msra.mxu0 0.0
        %2984 = vmatprep.subr.mxu0 0.0
        %2985 = vmatpush1.msra.mxu0 0.0
        %2986 = vmatprep.subr.mxu0 0.0
        %2987 = vmatpush1.msra.mxu0 0.0
        %2988 = vmatprep.subr.mxu0 0.0
        %2989 = vmatpush1.msra.mxu0 0.0
        %2990 = vmatprep.subr.mxu0 0.0
        %2991 = vmatpush1.msra.mxu0 0.0
        %2992 = vmatprep.subr.mxu0 0.0
        %2993 = vmatpush1.msra.mxu0 0.0
        %2994 = vmatprep.subr.mxu0 0.0
        %2995 = vmatpush1.msra.mxu0 0.0
        %2996 = vmatprep.subr.mxu0 0.0
        %2997 = vmatpush1.msra.mxu0 0.0
        %2998 = vmatprep.subr.mxu0 0.0
        %2999 = vmatpush1.msra.mxu0 0.0
        %3000 = vmatprep.subr.mxu0 0.0
        %3001 = vmatpush1.msra.mxu0 0.0
        %3002 = vmatprep.subr.mxu0 0.0
        %3003 = vmatpush1.msra.mxu0 0.0
        %3004 = vmatprep.subr.mxu0 0.0
        %3005 = vmatpush1.msra.mxu0 0.0
        %3006 = vmatprep.subr.mxu0 0.0
        %3007 = vmatpush1.msra.mxu0 0.0
        %3008 = vmatprep.subr.mxu0 0.0
        %3009 = vmatpush1.msra.mxu0 0.0
        %3010 = vmatprep.subr.mxu0 0.0
        %3011 = vmatpush1.msra.mxu0 0.0
        %3012 = vmatprep.subr.mxu0 0.0
        %3013 = vmatpush1.msra.mxu0 0.0
        %3014 = vmatprep.subr.mxu0 0.0
        %3015 = vmatpush1.msra.mxu0 0.0
        %3016 = vmatprep.subr.mxu0 0.0
        %3017 = vmatpush1.msra.mxu0 0.0
        %3018 = vmatprep.subr.mxu0 0.0
        %3019 = vmatpush1.msra.mxu0 0.0
        %3020 = vmatprep.subr.mxu0 0.0
        %3021 = vmatpush1.msra.mxu0 0.0
        %3022 = vmatprep.subr.mxu0 0.0
        %3023 = vmatpush1.msra.mxu0 0.0
        %3024 = vmatprep.subr.mxu0 0.0
        %3025 = vmatpush1.msra.mxu0 0.0
        %3026 = vmatprep.subr.mxu0 0.0
        %3027 = vmatpush1.msra.mxu0 0.0
        %3028 = vmatprep.subr.mxu0 0.0
        %3029 = vmatpush1.msra.mxu0 0.0
        %3030 = vmatprep.mubr.f32.mxu0 0.0
        %v3031 = vand.u32 %v1695, 4294901760
        %3032 = vmatmul.mubr.f32.gmra.mrb[0].mxu0 %v3031
        %v3033 = vpop.f32.mrb[0].mxu0
        %v3034 = vadd.f32 %v2962, %v3033
        %v3035 = vpop.f32.mrb[0].mxu0
        %3036 = vdwg.mxu0
        %3037 = vmatprep.subr.mxu0 0.0
        %v3038 = vand.u32 %v344, 4294901760
        %3039 = vmatpush1.msra.mxu0 %v3038
        %3040 = vmatprep.subr.mxu0 0.0
        %3041 = vmatpush1.msra.mxu0 0.0
        %3042 = vmatprep.subr.mxu0 0.0
        %3043 = vmatpush1.msra.mxu0 0.0
        %3044 = vmatprep.subr.mxu0 0.0
        %3045 = vmatpush1.msra.mxu0 0.0
        %3046 = vmatprep.subr.mxu0 0.0
        %3047 = vmatpush1.msra.mxu0 0.0
        %3048 = vmatprep.subr.mxu0 0.0
        %3049 = vmatpush1.msra.mxu0 0.0
        %3050 = vmatprep.subr.mxu0 0.0
        %3051 = vmatpush1.msra.mxu0 0.0
        %3052 = vmatprep.subr.mxu0 0.0
        %3053 = vmatpush1.msra.mxu0 0.0
        %3054 = vmatprep.subr.mxu0 0.0
        %3055 = vmatpush1.msra.mxu0 0.0
        %3056 = vmatprep.subr.mxu0 0.0
        %3057 = vmatpush1.msra.mxu0 0.0
        %3058 = vmatprep.subr.mxu0 0.0
        %3059 = vmatpush1.msra.mxu0 0.0
        %3060 = vmatprep.subr.mxu0 0.0
        %3061 = vmatpush1.msra.mxu0 0.0
        %3062 = vmatprep.subr.mxu0 0.0
        %3063 = vmatpush1.msra.mxu0 0.0
        %3064 = vmatprep.subr.mxu0 0.0
        %3065 = vmatpush1.msra.mxu0 0.0
        %3066 = vmatprep.subr.mxu0 0.0
        %3067 = vmatpush1.msra.mxu0 0.0
        %3068 = vmatprep.subr.mxu0 0.0
        %3069 = vmatpush1.msra.mxu0 0.0
        %3070 = vmatprep.subr.mxu0 0.0
        %3071 = vmatpush1.msra.mxu0 0.0
        %3072 = vmatprep.subr.mxu0 0.0
        %3073 = vmatpush1.msra.mxu0 0.0
        %3074 = vmatprep.subr.mxu0 0.0
        %3075 = vmatpush1.msra.mxu0 0.0
        %3076 = vmatprep.subr.mxu0 0.0
        %3077 = vmatpush1.msra.mxu0 0.0
        %3078 = vmatprep.subr.mxu0 0.0
        %3079 = vmatpush1.msra.mxu0 0.0
        %3080 = vmatprep.subr.mxu0 0.0
        %3081 = vmatpush1.msra.mxu0 0.0
        %3082 = vmatprep.subr.mxu0 0.0
        %3083 = vmatpush1.msra.mxu0 0.0
        %3084 = vmatprep.subr.mxu0 0.0
        %3085 = vmatpush1.msra.mxu0 0.0
        %3086 = vmatprep.subr.mxu0 0.0
        %3087 = vmatpush1.msra.mxu0 0.0
        %3088 = vmatprep.subr.mxu0 0.0
        %3089 = vmatpush1.msra.mxu0 0.0
        %3090 = vmatprep.subr.mxu0 0.0
        %3091 = vmatpush1.msra.mxu0 0.0
        %3092 = vmatprep.subr.mxu0 0.0
        %3093 = vmatpush1.msra.mxu0 0.0
        %3094 = vmatprep.subr.mxu0 0.0
        %3095 = vmatpush1.msra.mxu0 0.0
        %3096 = vmatprep.subr.mxu0 0.0
        %3097 = vmatpush1.msra.mxu0 0.0
        %3098 = vmatprep.subr.mxu0 0.0
        %3099 = vmatpush1.msra.mxu0 0.0
        %3100 = vmatprep.subr.mxu0 0.0
        %3101 = vmatpush1.msra.mxu0 0.0
        %3102 = vmatprep.mubr.f32.mxu0 0.0
        %v3103 = vand.u32 %v348, 4294901760
        %v3104 = vsub.f32 %v348, %v3103
        %v3105 = vand.u32 %v3104, 4294901760
        %v3106 = vsub.f32 %v3104, %v3105
        %v3107 = vand.u32 %v3106, 4294901760
        %3108 = vmatmul.mubr.f32.gmra.mrb[0].mxu0 %v3107
        %v3109 = vpop.f32.mrb[0].mxu0
        %v3110 = vadd.f32 %v2588, %v3109
        %v3111 = vpop.f32.mrb[0].mxu0
        %3112 = vdwg.mxu0
        %3113 = vmatprep.subr.mxu0 0.0
        %v3114 = vand.u32 %v344, 4294901760
        %v3115 = vsub.f32 %v344, %v3114
        %v3116 = vand.u32 %v3115, 4294901760
        %v3117 = vsub.f32 %v3115, %v3116
        %v3118 = vand.u32 %v3117, 4294901760
        %3119 = vmatpush1.msra.mxu0 %v3118
        %3120 = vmatprep.subr.mxu0 0.0
        %3121 = vmatpush1.msra.mxu0 0.0
        %3122 = vmatprep.subr.mxu0 0.0
        %3123 = vmatpush1.msra.mxu0 0.0
        %3124 = vmatprep.subr.mxu0 0.0
        %3125 = vmatpush1.msra.mxu0 0.0
        %3126 = vmatprep.subr.mxu0 0.0
        %3127 = vmatpush1.msra.mxu0 0.0
        %3128 = vmatprep.subr.mxu0 0.0
        %3129 = vmatpush1.msra.mxu0 0.0
        %3130 = vmatprep.subr.mxu0 0.0
        %3131 = vmatpush1.msra.mxu0 0.0
        %3132 = vmatprep.subr.mxu0 0.0
        %3133 = vmatpush1.msra.mxu0 0.0
        %3134 = vmatprep.subr.mxu0 0.0
        %3135 = vmatpush1.msra.mxu0 0.0
        %3136 = vmatprep.subr.mxu0 0.0
        %3137 = vmatpush1.msra.mxu0 0.0
        %3138 = vmatprep.subr.mxu0 0.0
        %3139 = vmatpush1.msra.mxu0 0.0
        %3140 = vmatprep.subr.mxu0 0.0
        %3141 = vmatpush1.msra.mxu0 0.0
        %3142 = vmatprep.subr.mxu0 0.0
        %3143 = vmatpush1.msra.mxu0 0.0
        %3144 = vmatprep.subr.mxu0 0.0
        %3145 = vmatpush1.msra.mxu0 0.0
        %3146 = vmatprep.subr.mxu0 0.0
        %3147 = vmatpush1.msra.mxu0 0.0
        %3148 = vmatprep.subr.mxu0 0.0
        %3149 = vmatpush1.msra.mxu0 0.0
        %3150 = vmatprep.subr.mxu0 0.0
        %3151 = vmatpush1.msra.mxu0 0.0
        %3152 = vmatprep.subr.mxu0 0.0
        %3153 = vmatpush1.msra.mxu0 0.0
        %3154 = vmatprep.subr.mxu0 0.0
        %3155 = vmatpush1.msra.mxu0 0.0
        %3156 = vmatprep.subr.mxu0 0.0
        %3157 = vmatpush1.msra.mxu0 0.0
        %3158 = vmatprep.subr.mxu0 0.0
        %3159 = vmatpush1.msra.mxu0 0.0
        %3160 = vmatprep.subr.mxu0 0.0
        %3161 = vmatpush1.msra.mxu0 0.0
        %3162 = vmatprep.subr.mxu0 0.0
        %3163 = vmatpush1.msra.mxu0 0.0
        %3164 = vmatprep.subr.mxu0 0.0
        %3165 = vmatpush1.msra.mxu0 0.0
        %3166 = vmatprep.subr.mxu0 0.0
        %3167 = vmatpush1.msra.mxu0 0.0
        %3168 = vmatprep.subr.mxu0 0.0
        %3169 = vmatpush1.msra.mxu0 0.0
        %3170 = vmatprep.subr.mxu0 0.0
        %3171 = vmatpush1.msra.mxu0 0.0
        %3172 = vmatprep.subr.mxu0 0.0
        %3173 = vmatpush1.msra.mxu0 0.0
        %3174 = vmatprep.subr.mxu0 0.0
        %3175 = vmatpush1.msra.mxu0 0.0
        %3176 = vmatprep.subr.mxu0 0.0
        %3177 = vmatpush1.msra.mxu0 0.0
        %3178 = vmatprep.subr.mxu0 0.0
        %3179 = vmatpush1.msra.mxu0 0.0
        %3180 = vmatprep.subr.mxu0 0.0
        %3181 = vmatpush1.msra.mxu0 0.0
        %3182 = vmatprep.mubr.f32.mxu0 0.0
        %v3183 = vand.u32 %v348, 4294901760
        %3184 = vmatmul.mubr.f32.gmra.mrb[0].mxu0 %v3183
        %v3185 = vpop.f32.mrb[0].mxu0
        %v3186 = vadd.f32 %v3110, %v3185
        %v3187 = vpop.f32.mrb[0].mxu0
        %3188 = vdwg.mxu0
        %3189 = vmatprep.subr.mxu0 0.0
        %v3190 = vand.u32 %v344, 4294901760
        %v3191 = vsub.f32 %v344, %v3190
        %3192 = vmatpush1.msra.mxu0 %v3191
        %3193 = vmatprep.subr.mxu0 0.0
        %3194 = vmatpush1.msra.mxu0 0.0
        %3195 = vmatprep.subr.mxu0 0.0
        %3196 = vmatpush1.msra.mxu0 0.0
        %3197 = vmatprep.subr.mxu0 0.0
        %3198 = vmatpush1.msra.mxu0 0.0
        %3199 = vmatprep.subr.mxu0 0.0
        %3200 = vmatpush1.msra.mxu0 0.0
        %3201 = vmatprep.subr.mxu0 0.0
        %3202 = vmatpush1.msra.mxu0 0.0
        %3203 = vmatprep.subr.mxu0 0.0
        %3204 = vmatpush1.msra.mxu0 0.0
        %3205 = vmatprep.subr.mxu0 0.0
        %3206 = vmatpush1.msra.mxu0 0.0
        %3207 = vmatprep.subr.mxu0 0.0
        %3208 = vmatpush1.msra.mxu0 0.0
        %3209 = vmatprep.subr.mxu0 0.0
        %3210 = vmatpush1.msra.mxu0 0.0
        %3211 = vmatprep.subr.mxu0 0.0
        %3212 = vmatpush1.msra.mxu0 0.0
        %3213 = vmatprep.subr.mxu0 0.0
        %3214 = vmatpush1.msra.mxu0 0.0
        %3215 = vmatprep.subr.mxu0 0.0
        %3216 = vmatpush1.msra.mxu0 0.0
        %3217 = vmatprep.subr.mxu0 0.0
        %3218 = vmatpush1.msra.mxu0 0.0
        %3219 = vmatprep.subr.mxu0 0.0
        %3220 = vmatpush1.msra.mxu0 0.0
        %3221 = vmatprep.subr.mxu0 0.0
        %3222 = vmatpush1.msra.mxu0 0.0
        %3223 = vmatprep.subr.mxu0 0.0
        %3224 = vmatpush1.msra.mxu0 0.0
        %3225 = vmatprep.subr.mxu0 0.0
        %3226 = vmatpush1.msra.mxu0 0.0
        %3227 = vmatprep.subr.mxu0 0.0
        %3228 = vmatpush1.msra.mxu0 0.0
        %3229 = vmatprep.subr.mxu0 0.0
        %3230 = vmatpush1.msra.mxu0 0.0
        %3231 = vmatprep.subr.mxu0 0.0
        %3232 = vmatpush1.msra.mxu0 0.0
        %3233 = vmatprep.subr.mxu0 0.0
        %3234 = vmatpush1.msra.mxu0 0.0
        %3235 = vmatprep.subr.mxu0 0.0
        %3236 = vmatpush1.msra.mxu0 0.0
        %3237 = vmatprep.subr.mxu0 0.0
        %3238 = vmatpush1.msra.mxu0 0.0
        %3239 = vmatprep.subr.mxu0 0.0
        %3240 = vmatpush1.msra.mxu0 0.0
        %3241 = vmatprep.subr.mxu0 0.0
        %3242 = vmatpush1.msra.mxu0 0.0
        %3243 = vmatprep.subr.mxu0 0.0
        %3244 = vmatpush1.msra.mxu0 0.0
        %3245 = vmatprep.subr.mxu0 0.0
        %3246 = vmatpush1.msra.mxu0 0.0
        %3247 = vmatprep.subr.mxu0 0.0
        %3248 = vmatpush1.msra.mxu0 0.0
        %3249 = vmatprep.subr.mxu0 0.0
        %3250 = vmatpush1.msra.mxu0 0.0
        %3251 = vmatprep.subr.mxu0 0.0
        %3252 = vmatpush1.msra.mxu0 0.0
        %3253 = vmatprep.subr.mxu0 0.0
        %3254 = vmatpush1.msra.mxu0 0.0
        %3255 = vmatprep.mubr.f32.mxu0 0.0
        %v3256 = vand.u32 %v348, 4294901760
        %v3257 = vsub.f32 %v348, %v3256
        %3258 = vmatmul.mubr.f32.gmra.mrb[0].mxu0 %v3257
        %v3259 = vpop.f32.mrb[0].mxu0
        %v3260 = vadd.f32 %v3186, %v3259
        %v3261 = vpop.f32.mrb[0].mxu0
        %3262 = vdwg.mxu0
        %3263 = vmatprep.subr.mxu0 0.0
        %v3264 = vand.u32 %v344, 4294901760
        %3265 = vmatpush1.msra.mxu0 %v3264
        %3266 = vmatprep.subr.mxu0 0.0
        %3267 = vmatpush1.msra.mxu0 0.0
        %3268 = vmatprep.subr.mxu0 0.0
        %3269 = vmatpush1.msra.mxu0 0.0
        %3270 = vmatprep.subr.mxu0 0.0
        %3271 = vmatpush1.msra.mxu0 0.0
        %3272 = vmatprep.subr.mxu0 0.0
        %3273 = vmatpush1.msra.mxu0 0.0
        %3274 = vmatprep.subr.mxu0 0.0
        %3275 = vmatpush1.msra.mxu0 0.0
        %3276 = vmatprep.subr.mxu0 0.0
        %3277 = vmatpush1.msra.mxu0 0.0
        %3278 = vmatprep.subr.mxu0 0.0
        %3279 = vmatpush1.msra.mxu0 0.0
        %3280 = vmatprep.subr.mxu0 0.0
        %3281 = vmatpush1.msra.mxu0 0.0
        %3282 = vmatprep.subr.mxu0 0.0
        %3283 = vmatpush1.msra.mxu0 0.0
        %3284 = vmatprep.subr.mxu0 0.0
        %3285 = vmatpush1.msra.mxu0 0.0
        %3286 = vmatprep.subr.mxu0 0.0
        %3287 = vmatpush1.msra.mxu0 0.0
        %3288 = vmatprep.subr.mxu0 0.0
        %3289 = vmatpush1.msra.mxu0 0.0
        %3290 = vmatprep.subr.mxu0 0.0
        %3291 = vmatpush1.msra.mxu0 0.0
        %3292 = vmatprep.subr.mxu0 0.0
        %3293 = vmatpush1.msra.mxu0 0.0
        %3294 = vmatprep.subr.mxu0 0.0
        %3295 = vmatpush1.msra.mxu0 0.0
        %3296 = vmatprep.subr.mxu0 0.0
        %3297 = vmatpush1.msra.mxu0 0.0
        %3298 = vmatprep.subr.mxu0 0.0
        %3299 = vmatpush1.msra.mxu0 0.0
        %3300 = vmatprep.subr.mxu0 0.0
        %3301 = vmatpush1.msra.mxu0 0.0
        %3302 = vmatprep.subr.mxu0 0.0
        %3303 = vmatpush1.msra.mxu0 0.0
        %3304 = vmatprep.subr.mxu0 0.0
        %3305 = vmatpush1.msra.mxu0 0.0
        %3306 = vmatprep.subr.mxu0 0.0
        %3307 = vmatpush1.msra.mxu0 0.0
        %3308 = vmatprep.subr.mxu0 0.0
        %3309 = vmatpush1.msra.mxu0 0.0
        %3310 = vmatprep.subr.mxu0 0.0
        %3311 = vmatpush1.msra.mxu0 0.0
        %3312 = vmatprep.subr.mxu0 0.0
        %3313 = vmatpush1.msra.mxu0 0.0
        %3314 = vmatprep.subr.mxu0 0.0
        %3315 = vmatpush1.msra.mxu0 0.0
        %3316 = vmatprep.subr.mxu0 0.0
        %3317 = vmatpush1.msra.mxu0 0.0
        %3318 = vmatprep.subr.mxu0 0.0
        %3319 = vmatpush1.msra.mxu0 0.0
        %3320 = vmatprep.subr.mxu0 0.0
        %3321 = vmatpush1.msra.mxu0 0.0
        %3322 = vmatprep.subr.mxu0 0.0
        %3323 = vmatpush1.msra.mxu0 0.0
        %3324 = vmatprep.subr.mxu0 0.0
        %3325 = vmatpush1.msra.mxu0 0.0
        %3326 = vmatprep.subr.mxu0 0.0
        %3327 = vmatpush1.msra.mxu0 0.0
        %3328 = vmatprep.mubr.f32.mxu0 0.0
        %v3329 = vand.u32 %v348, 4294901760
        %v3330 = vsub.f32 %v348, %v3329
        %v3331 = vand.u32 %v3330, 4294901760
        %3332 = vmatmul.mubr.f32.gmra.mrb[0].mxu0 %v3331
        %v3333 = vpop.f32.mrb[0].mxu0
        %v3334 = vadd.f32 %v3260, %v3333
        %v3335 = vpop.f32.mrb[0].mxu0
        %3336 = vdwg.mxu0
        %3337 = vmatprep.subr.mxu0 0.0
        %v3338 = vand.u32 %v344, 4294901760
        %v3339 = vsub.f32 %v344, %v3338
        %v3340 = vand.u32 %v3339, 4294901760
        %3341 = vmatpush1.msra.mxu0 %v3340
        %3342 = vmatprep.subr.mxu0 0.0
        %3343 = vmatpush1.msra.mxu0 0.0
        %3344 = vmatprep.subr.mxu0 0.0
        %3345 = vmatpush1.msra.mxu0 0.0
        %3346 = vmatprep.subr.mxu0 0.0
        %3347 = vmatpush1.msra.mxu0 0.0
        %3348 = vmatprep.subr.mxu0 0.0
        %3349 = vmatpush1.msra.mxu0 0.0
        %3350 = vmatprep.subr.mxu0 0.0
        %3351 = vmatpush1.msra.mxu0 0.0
        %3352 = vmatprep.subr.mxu0 0.0
        %3353 = vmatpush1.msra.mxu0 0.0
        %3354 = vmatprep.subr.mxu0 0.0
        %3355 = vmatpush1.msra.mxu0 0.0
        %3356 = vmatprep.subr.mxu0 0.0
        %3357 = vmatpush1.msra.mxu0 0.0
        %3358 = vmatprep.subr.mxu0 0.0
        %3359 = vmatpush1.msra.mxu0 0.0
        %3360 = vmatprep.subr.mxu0 0.0
        %3361 = vmatpush1.msra.mxu0 0.0
        %3362 = vmatprep.subr.mxu0 0.0
        %3363 = vmatpush1.msra.mxu0 0.0
        %3364 = vmatprep.subr.mxu0 0.0
        %3365 = vmatpush1.msra.mxu0 0.0
        %3366 = vmatprep.subr.mxu0 0.0
        %3367 = vmatpush1.msra.mxu0 0.0
        %3368 = vmatprep.subr.mxu0 0.0
        %3369 = vmatpush1.msra.mxu0 0.0
        %3370 = vmatprep.subr.mxu0 0.0
        %3371 = vmatpush1.msra.mxu0 0.0
        %3372 = vmatprep.subr.mxu0 0.0
        %3373 = vmatpush1.msra.mxu0 0.0
        %3374 = vmatprep.subr.mxu0 0.0
        %3375 = vmatpush1.msra.mxu0 0.0
        %3376 = vmatprep.subr.mxu0 0.0
        %3377 = vmatpush1.msra.mxu0 0.0
        %3378 = vmatprep.subr.mxu0 0.0
        %3379 = vmatpush1.msra.mxu0 0.0
        %3380 = vmatprep.subr.mxu0 0.0
        %3381 = vmatpush1.msra.mxu0 0.0
        %3382 = vmatprep.subr.mxu0 0.0
        %3383 = vmatpush1.msra.mxu0 0.0
        %3384 = vmatprep.subr.mxu0 0.0
        %3385 = vmatpush1.msra.mxu0 0.0
        %3386 = vmatprep.subr.mxu0 0.0
        %3387 = vmatpush1.msra.mxu0 0.0
        %3388 = vmatprep.subr.mxu0 0.0
        %3389 = vmatpush1.msra.mxu0 0.0
        %3390 = vmatprep.subr.mxu0 0.0
        %3391 = vmatpush1.msra.mxu0 0.0
        %3392 = vmatprep.subr.mxu0 0.0
        %3393 = vmatpush1.msra.mxu0 0.0
        %3394 = vmatprep.subr.mxu0 0.0
        %3395 = vmatpush1.msra.mxu0 0.0
        %3396 = vmatprep.subr.mxu0 0.0
        %3397 = vmatpush1.msra.mxu0 0.0
        %3398 = vmatprep.subr.mxu0 0.0
        %3399 = vmatpush1.msra.mxu0 0.0
        %3400 = vmatprep.subr.mxu0 0.0
        %3401 = vmatpush1.msra.mxu0 0.0
        %3402 = vmatprep.subr.mxu0 0.0
        %3403 = vmatpush1.msra.mxu0 0.0
        %3404 = vmatprep.mubr.f32.mxu0 0.0
        %v3405 = vand.u32 %v348, 4294901760
        %3406 = vmatmul.mubr.f32.gmra.mrb[0].mxu0 %v3405
        %v3407 = vpop.f32.mrb[0].mxu0
        %v3408 = vadd.f32 %v3334, %v3407
        %v3409 = vpop.f32.mrb[0].mxu0
        %3410 = vdwg.mxu0
        %3411 = vmatprep.subr.mxu0 0.0
        %v3412 = vand.u32 %v344, 4294901760
        %3413 = vmatpush1.msra.mxu0 %v3412
        %3414 = vmatprep.subr.mxu0 0.0
        %3415 = vmatpush1.msra.mxu0 0.0
        %3416 = vmatprep.subr.mxu0 0.0
        %3417 = vmatpush1.msra.mxu0 0.0
        %3418 = vmatprep.subr.mxu0 0.0
        %3419 = vmatpush1.msra.mxu0 0.0
        %3420 = vmatprep.subr.mxu0 0.0
        %3421 = vmatpush1.msra.mxu0 0.0
        %3422 = vmatprep.subr.mxu0 0.0
        %3423 = vmatpush1.msra.mxu0 0.0
        %3424 = vmatprep.subr.mxu0 0.0
        %3425 = vmatpush1.msra.mxu0 0.0
        %3426 = vmatprep.subr.mxu0 0.0
        %3427 = vmatpush1.msra.mxu0 0.0
        %3428 = vmatprep.subr.mxu0 0.0
        %3429 = vmatpush1.msra.mxu0 0.0
        %3430 = vmatprep.subr.mxu0 0.0
        %3431 = vmatpush1.msra.mxu0 0.0
        %3432 = vmatprep.subr.mxu0 0.0
        %3433 = vmatpush1.msra.mxu0 0.0
        %3434 = vmatprep.subr.mxu0 0.0
        %3435 = vmatpush1.msra.mxu0 0.0
        %3436 = vmatprep.subr.mxu0 0.0
        %3437 = vmatpush1.msra.mxu0 0.0
        %3438 = vmatprep.subr.mxu0 0.0
        %3439 = vmatpush1.msra.mxu0 0.0
        %3440 = vmatprep.subr.mxu0 0.0
        %3441 = vmatpush1.msra.mxu0 0.0
        %3442 = vmatprep.subr.mxu0 0.0
        %3443 = vmatpush1.msra.mxu0 0.0
        %3444 = vmatprep.subr.mxu0 0.0
        %3445 = vmatpush1.msra.mxu0 0.0
        %3446 = vmatprep.subr.mxu0 0.0
        %3447 = vmatpush1.msra.mxu0 0.0
        %3448 = vmatprep.subr.mxu0 0.0
        %3449 = vmatpush1.msra.mxu0 0.0
        %3450 = vmatprep.subr.mxu0 0.0
        %3451 = vmatpush1.msra.mxu0 0.0
        %3452 = vmatprep.subr.mxu0 0.0
        %3453 = vmatpush1.msra.mxu0 0.0
        %3454 = vmatprep.subr.mxu0 0.0
        %3455 = vmatpush1.msra.mxu0 0.0
        %3456 = vmatprep.subr.mxu0 0.0
        %3457 = vmatpush1.msra.mxu0 0.0
        %3458 = vmatprep.subr.mxu0 0.0
        %3459 = vmatpush1.msra.mxu0 0.0
        %3460 = vmatprep.subr.mxu0 0.0
        %3461 = vmatpush1.msra.mxu0 0.0
        %3462 = vmatprep.subr.mxu0 0.0
        %3463 = vmatpush1.msra.mxu0 0.0
        %3464 = vmatprep.subr.mxu0 0.0
        %3465 = vmatpush1.msra.mxu0 0.0
        %3466 = vmatprep.subr.mxu0 0.0
        %3467 = vmatpush1.msra.mxu0 0.0
        %3468 = vmatprep.subr.mxu0 0.0
        %3469 = vmatpush1.msra.mxu0 0.0
        %3470 = vmatprep.subr.mxu0 0.0
        %3471 = vmatpush1.msra.mxu0 0.0
        %3472 = vmatprep.subr.mxu0 0.0
        %3473 = vmatpush1.msra.mxu0 0.0
        %3474 = vmatprep.subr.mxu0 0.0
        %3475 = vmatpush1.msra.mxu0 0.0
        %3476 = vmatprep.mubr.f32.mxu0 0.0
        %v3477 = vand.u32 %v348, 4294901760
        %3478 = vmatmul.mubr.f32.gmra.mrb[0].mxu0 %v3477
        %v3479 = vpop.f32.mrb[0].mxu0
        %v3480 = vadd.f32 %v3408, %v3479
        %v3481 = vpop.f32.mrb[0].mxu0
        %3482 = vdwg.mxu0
        %3483 = vmatprep.subr.mxu0 0.0
        %v3484 = vand.u32 %v345, 4294901760
        %3485 = vmatpush1.msra.mxu0 %v3484
        %3486 = vmatprep.subr.mxu0 0.0
        %3487 = vmatpush1.msra.mxu0 0.0
        %3488 = vmatprep.subr.mxu0 0.0
        %3489 = vmatpush1.msra.mxu0 0.0
        %3490 = vmatprep.subr.mxu0 0.0
        %3491 = vmatpush1.msra.mxu0 0.0
        %3492 = vmatprep.subr.mxu0 0.0
        %3493 = vmatpush1.msra.mxu0 0.0
        %3494 = vmatprep.subr.mxu0 0.0
        %3495 = vmatpush1.msra.mxu0 0.0
        %3496 = vmatprep.subr.mxu0 0.0
        %3497 = vmatpush1.msra.mxu0 0.0
        %3498 = vmatprep.subr.mxu0 0.0
        %3499 = vmatpush1.msra.mxu0 0.0
        %3500 = vmatprep.subr.mxu0 0.0
        %3501 = vmatpush1.msra.mxu0 0.0
        %3502 = vmatprep.subr.mxu0 0.0
        %3503 = vmatpush1.msra.mxu0 0.0
        %3504 = vmatprep.subr.mxu0 0.0
        %3505 = vmatpush1.msra.mxu0 0.0
        %3506 = vmatprep.subr.mxu0 0.0
        %3507 = vmatpush1.msra.mxu0 0.0
        %3508 = vmatprep.subr.mxu0 0.0
        %3509 = vmatpush1.msra.mxu0 0.0
        %3510 = vmatprep.subr.mxu0 0.0
        %3511 = vmatpush1.msra.mxu0 0.0
        %3512 = vmatprep.subr.mxu0 0.0
        %3513 = vmatpush1.msra.mxu0 0.0
        %3514 = vmatprep.subr.mxu0 0.0
        %3515 = vmatpush1.msra.mxu0 0.0
        %3516 = vmatprep.subr.mxu0 0.0
        %3517 = vmatpush1.msra.mxu0 0.0
        %3518 = vmatprep.subr.mxu0 0.0
        %3519 = vmatpush1.msra.mxu0 0.0
        %3520 = vmatprep.subr.mxu0 0.0
        %3521 = vmatpush1.msra.mxu0 0.0
        %3522 = vmatprep.subr.mxu0 0.0
        %3523 = vmatpush1.msra.mxu0 0.0
        %3524 = vmatprep.subr.mxu0 0.0
        %3525 = vmatpush1.msra.mxu0 0.0
        %3526 = vmatprep.subr.mxu0 0.0
        %3527 = vmatpush1.msra.mxu0 0.0
        %3528 = vmatprep.subr.mxu0 0.0
        %3529 = vmatpush1.msra.mxu0 0.0
        %3530 = vmatprep.subr.mxu0 0.0
        %3531 = vmatpush1.msra.mxu0 0.0
        %3532 = vmatprep.subr.mxu0 0.0
        %3533 = vmatpush1.msra.mxu0 0.0
        %3534 = vmatprep.subr.mxu0 0.0
        %3535 = vmatpush1.msra.mxu0 0.0
        %3536 = vmatprep.subr.mxu0 0.0
        %3537 = vmatpush1.msra.mxu0 0.0
        %3538 = vmatprep.subr.mxu0 0.0
        %3539 = vmatpush1.msra.mxu0 0.0
        %3540 = vmatprep.subr.mxu0 0.0
        %3541 = vmatpush1.msra.mxu0 0.0
        %3542 = vmatprep.subr.mxu0 0.0
        %3543 = vmatpush1.msra.mxu0 0.0
        %3544 = vmatprep.subr.mxu0 0.0
        %3545 = vmatpush1.msra.mxu0 0.0
        %3546 = vmatprep.subr.mxu0 0.0
        %3547 = vmatpush1.msra.mxu0 0.0
        %3548 = vmatprep.mubr.f32.mxu0 0.0
        %v3549 = vand.u32 %v797, 4294901760
        %v3550 = vsub.f32 %v797, %v3549
        %v3551 = vand.u32 %v3550, 4294901760
        %v3552 = vsub.f32 %v3550, %v3551
        %v3553 = vand.u32 %v3552, 4294901760
        %3554 = vmatmul.mubr.f32.gmra.mrb[0].mxu0 %v3553
        %v3555 = vpop.f32.mrb[0].mxu0
        %v3556 = vadd.f32 %v3034, %v3555
        %v3557 = vpop.f32.mrb[0].mxu0
        %3558 = vdwg.mxu0
        %3559 = vmatprep.subr.mxu0 0.0
        %v3560 = vand.u32 %v345, 4294901760
        %v3561 = vsub.f32 %v345, %v3560
        %v3562 = vand.u32 %v3561, 4294901760
        %v3563 = vsub.f32 %v3561, %v3562
        %v3564 = vand.u32 %v3563, 4294901760
        %3565 = vmatpush1.msra.mxu0 %v3564
        %3566 = vmatprep.subr.mxu0 0.0
        %3567 = vmatpush1.msra.mxu0 0.0
        %3568 = vmatprep.subr.mxu0 0.0
        %3569 = vmatpush1.msra.mxu0 0.0
        %3570 = vmatprep.subr.mxu0 0.0
        %3571 = vmatpush1.msra.mxu0 0.0
        %3572 = vmatprep.subr.mxu0 0.0
        %3573 = vmatpush1.msra.mxu0 0.0
        %3574 = vmatprep.subr.mxu0 0.0
        %3575 = vmatpush1.msra.mxu0 0.0
        %3576 = vmatprep.subr.mxu0 0.0
        %3577 = vmatpush1.msra.mxu0 0.0
        %3578 = vmatprep.subr.mxu0 0.0
        %3579 = vmatpush1.msra.mxu0 0.0
        %3580 = vmatprep.subr.mxu0 0.0
        %3581 = vmatpush1.msra.mxu0 0.0
        %3582 = vmatprep.subr.mxu0 0.0
        %3583 = vmatpush1.msra.mxu0 0.0
        %3584 = vmatprep.subr.mxu0 0.0
        %3585 = vmatpush1.msra.mxu0 0.0
        %3586 = vmatprep.subr.mxu0 0.0
        %3587 = vmatpush1.msra.mxu0 0.0
        %3588 = vmatprep.subr.mxu0 0.0
        %3589 = vmatpush1.msra.mxu0 0.0
        %3590 = vmatprep.subr.mxu0 0.0
        %3591 = vmatpush1.msra.mxu0 0.0
        %3592 = vmatprep.subr.mxu0 0.0
        %3593 = vmatpush1.msra.mxu0 0.0
        %3594 = vmatprep.subr.mxu0 0.0
        %3595 = vmatpush1.msra.mxu0 0.0
        %3596 = vmatprep.subr.mxu0 0.0
        %3597 = vmatpush1.msra.mxu0 0.0
        %3598 = vmatprep.subr.mxu0 0.0
        %3599 = vmatpush1.msra.mxu0 0.0
        %3600 = vmatprep.subr.mxu0 0.0
        %3601 = vmatpush1.msra.mxu0 0.0
        %3602 = vmatprep.subr.mxu0 0.0
        %3603 = vmatpush1.msra.mxu0 0.0
        %3604 = vmatprep.subr.mxu0 0.0
        %3605 = vmatpush1.msra.mxu0 0.0
        %3606 = vmatprep.subr.mxu0 0.0
        %3607 = vmatpush1.msra.mxu0 0.0
        %3608 = vmatprep.subr.mxu0 0.0
        %3609 = vmatpush1.msra.mxu0 0.0
        %3610 = vmatprep.subr.mxu0 0.0
        %3611 = vmatpush1.msra.mxu0 0.0
        %3612 = vmatprep.subr.mxu0 0.0
        %3613 = vmatpush1.msra.mxu0 0.0
        %3614 = vmatprep.subr.mxu0 0.0
        %3615 = vmatpush1.msra.mxu0 0.0
        %3616 = vmatprep.subr.mxu0 0.0
        %3617 = vmatpush1.msra.mxu0 0.0
        %3618 = vmatprep.subr.mxu0 0.0
        %3619 = vmatpush1.msra.mxu0 0.0
        %3620 = vmatprep.subr.mxu0 0.0
        %3621 = vmatpush1.msra.mxu0 0.0
        %3622 = vmatprep.subr.mxu0 0.0
        %3623 = vmatpush1.msra.mxu0 0.0
        %3624 = vmatprep.subr.mxu0 0.0
        %3625 = vmatpush1.msra.mxu0 0.0
        %3626 = vmatprep.subr.mxu0 0.0
        %3627 = vmatpush1.msra.mxu0 0.0
        %3628 = vmatprep.mubr.f32.mxu0 0.0
        %v3629 = vand.u32 %v797, 4294901760
        %3630 = vmatmul.mubr.f32.gmra.mrb[0].mxu0 %v3629
        %v3631 = vpop.f32.mrb[0].mxu0
        %v3632 = vadd.f32 %v3556, %v3631
        %v3633 = vpop.f32.mrb[0].mxu0
        %3634 = vdwg.mxu0
        %3635 = vmatprep.subr.mxu0 0.0
        %v3636 = vand.u32 %v345, 4294901760
        %v3637 = vsub.f32 %v345, %v3636
        %3638 = vmatpush1.msra.mxu0 %v3637
        %3639 = vmatprep.subr.mxu0 0.0
        %3640 = vmatpush1.msra.mxu0 0.0
        %3641 = vmatprep.subr.mxu0 0.0
        %3642 = vmatpush1.msra.mxu0 0.0
        %3643 = vmatprep.subr.mxu0 0.0
        %3644 = vmatpush1.msra.mxu0 0.0
        %3645 = vmatprep.subr.mxu0 0.0
        %3646 = vmatpush1.msra.mxu0 0.0
        %3647 = vmatprep.subr.mxu0 0.0
        %3648 = vmatpush1.msra.mxu0 0.0
        %3649 = vmatprep.subr.mxu0 0.0
        %3650 = vmatpush1.msra.mxu0 0.0
        %3651 = vmatprep.subr.mxu0 0.0
        %3652 = vmatpush1.msra.mxu0 0.0
        %3653 = vmatprep.subr.mxu0 0.0
        %3654 = vmatpush1.msra.mxu0 0.0
        %3655 = vmatprep.subr.mxu0 0.0
        %3656 = vmatpush1.msra.mxu0 0.0
        %3657 = vmatprep.subr.mxu0 0.0
        %3658 = vmatpush1.msra.mxu0 0.0
        %3659 = vmatprep.subr.mxu0 0.0
        %3660 = vmatpush1.msra.mxu0 0.0
        %3661 = vmatprep.subr.mxu0 0.0
        %3662 = vmatpush1.msra.mxu0 0.0
        %3663 = vmatprep.subr.mxu0 0.0
        %3664 = vmatpush1.msra.mxu0 0.0
        %3665 = vmatprep.subr.mxu0 0.0
        %3666 = vmatpush1.msra.mxu0 0.0
        %3667 = vmatprep.subr.mxu0 0.0
        %3668 = vmatpush1.msra.mxu0 0.0
        %3669 = vmatprep.subr.mxu0 0.0
        %3670 = vmatpush1.msra.mxu0 0.0
        %3671 = vmatprep.subr.mxu0 0.0
        %3672 = vmatpush1.msra.mxu0 0.0
        %3673 = vmatprep.subr.mxu0 0.0
        %3674 = vmatpush1.msra.mxu0 0.0
        %3675 = vmatprep.subr.mxu0 0.0
        %3676 = vmatpush1.msra.mxu0 0.0
        %3677 = vmatprep.subr.mxu0 0.0
        %3678 = vmatpush1.msra.mxu0 0.0
        %3679 = vmatprep.subr.mxu0 0.0
        %3680 = vmatpush1.msra.mxu0 0.0
        %3681 = vmatprep.subr.mxu0 0.0
        %3682 = vmatpush1.msra.mxu0 0.0
        %3683 = vmatprep.subr.mxu0 0.0
        %3684 = vmatpush1.msra.mxu0 0.0
        %3685 = vmatprep.subr.mxu0 0.0
        %3686 = vmatpush1.msra.mxu0 0.0
        %3687 = vmatprep.subr.mxu0 0.0
        %3688 = vmatpush1.msra.mxu0 0.0
        %3689 = vmatprep.subr.mxu0 0.0
        %3690 = vmatpush1.msra.mxu0 0.0
        %3691 = vmatprep.subr.mxu0 0.0
        %3692 = vmatpush1.msra.mxu0 0.0
        %3693 = vmatprep.subr.mxu0 0.0
        %3694 = vmatpush1.msra.mxu0 0.0
        %3695 = vmatprep.subr.mxu0 0.0
        %3696 = vmatpush1.msra.mxu0 0.0
        %3697 = vmatprep.subr.mxu0 0.0
        %3698 = vmatpush1.msra.mxu0 0.0
        %3699 = vmatprep.subr.mxu0 0.0
        %3700 = vmatpush1.msra.mxu0 0.0
        %3701 = vmatprep.mubr.f32.mxu0 0.0
        %v3702 = vand.u32 %v797, 4294901760
        %v3703 = vsub.f32 %v797, %v3702
        %3704 = vmatmul.mubr.f32.gmra.mrb[0].mxu0 %v3703
        %v3705 = vpop.f32.mrb[0].mxu0
        %v3706 = vadd.f32 %v3632, %v3705
        %v3707 = vpop.f32.mrb[0].mxu0
        %3708 = vdwg.mxu0
        %3709 = vmatprep.subr.mxu0 0.0
        %v3710 = vand.u32 %v345, 4294901760
        %3711 = vmatpush1.msra.mxu0 %v3710
        %3712 = vmatprep.subr.mxu0 0.0
        %3713 = vmatpush1.msra.mxu0 0.0
        %3714 = vmatprep.subr.mxu0 0.0
        %3715 = vmatpush1.msra.mxu0 0.0
        %3716 = vmatprep.subr.mxu0 0.0
        %3717 = vmatpush1.msra.mxu0 0.0
        %3718 = vmatprep.subr.mxu0 0.0
        %3719 = vmatpush1.msra.mxu0 0.0
        %3720 = vmatprep.subr.mxu0 0.0
        %3721 = vmatpush1.msra.mxu0 0.0
        %3722 = vmatprep.subr.mxu0 0.0
        %3723 = vmatpush1.msra.mxu0 0.0
        %3724 = vmatprep.subr.mxu0 0.0
        %3725 = vmatpush1.msra.mxu0 0.0
        %3726 = vmatprep.subr.mxu0 0.0
        %3727 = vmatpush1.msra.mxu0 0.0
        %3728 = vmatprep.subr.mxu0 0.0
        %3729 = vmatpush1.msra.mxu0 0.0
        %3730 = vmatprep.subr.mxu0 0.0
        %3731 = vmatpush1.msra.mxu0 0.0
        %3732 = vmatprep.subr.mxu0 0.0
        %3733 = vmatpush1.msra.mxu0 0.0
        %3734 = vmatprep.subr.mxu0 0.0
        %3735 = vmatpush1.msra.mxu0 0.0
        %3736 = vmatprep.subr.mxu0 0.0
        %3737 = vmatpush1.msra.mxu0 0.0
        %3738 = vmatprep.subr.mxu0 0.0
        %3739 = vmatpush1.msra.mxu0 0.0
        %3740 = vmatprep.subr.mxu0 0.0
        %3741 = vmatpush1.msra.mxu0 0.0
        %3742 = vmatprep.subr.mxu0 0.0
        %3743 = vmatpush1.msra.mxu0 0.0
        %3744 = vmatprep.subr.mxu0 0.0
        %3745 = vmatpush1.msra.mxu0 0.0
        %3746 = vmatprep.subr.mxu0 0.0
        %3747 = vmatpush1.msra.mxu0 0.0
        %3748 = vmatprep.subr.mxu0 0.0
        %3749 = vmatpush1.msra.mxu0 0.0
        %3750 = vmatprep.subr.mxu0 0.0
        %3751 = vmatpush1.msra.mxu0 0.0
        %3752 = vmatprep.subr.mxu0 0.0
        %3753 = vmatpush1.msra.mxu0 0.0
        %3754 = vmatprep.subr.mxu0 0.0
        %3755 = vmatpush1.msra.mxu0 0.0
        %3756 = vmatprep.subr.mxu0 0.0
        %3757 = vmatpush1.msra.mxu0 0.0
        %3758 = vmatprep.subr.mxu0 0.0
        %3759 = vmatpush1.msra.mxu0 0.0
        %3760 = vmatprep.subr.mxu0 0.0
        %3761 = vmatpush1.msra.mxu0 0.0
        %3762 = vmatprep.subr.mxu0 0.0
        %3763 = vmatpush1.msra.mxu0 0.0
        %3764 = vmatprep.subr.mxu0 0.0
        %3765 = vmatpush1.msra.mxu0 0.0
        %3766 = vmatprep.subr.mxu0 0.0
        %3767 = vmatpush1.msra.mxu0 0.0
        %3768 = vmatprep.subr.mxu0 0.0
        %3769 = vmatpush1.msra.mxu0 0.0
        %3770 = vmatprep.subr.mxu0 0.0
        %3771 = vmatpush1.msra.mxu0 0.0
        %3772 = vmatprep.subr.mxu0 0.0
        %3773 = vmatpush1.msra.mxu0 0.0
        %3774 = vmatprep.mubr.f32.mxu0 0.0
        %v3775 = vand.u32 %v797, 4294901760
        %v3776 = vsub.f32 %v797, %v3775
        %v3777 = vand.u32 %v3776, 4294901760
        %3778 = vmatmul.mubr.f32.gmra.mrb[0].mxu0 %v3777
        %v3779 = vpop.f32.mrb[0].mxu0
        %v3780 = vadd.f32 %v3706, %v3779
        %v3781 = vpop.f32.mrb[0].mxu0
        %3782 = vdwg.mxu0
        %3783 = vmatprep.subr.mxu0 0.0
        %v3784 = vand.u32 %v345, 4294901760
        %v3785 = vsub.f32 %v345, %v3784
        %v3786 = vand.u32 %v3785, 4294901760
        %3787 = vmatpush1.msra.mxu0 %v3786
        %3788 = vmatprep.subr.mxu0 0.0
        %3789 = vmatpush1.msra.mxu0 0.0
        %3790 = vmatprep.subr.mxu0 0.0
        %3791 = vmatpush1.msra.mxu0 0.0
        %3792 = vmatprep.subr.mxu0 0.0
        %3793 = vmatpush1.msra.mxu0 0.0
        %3794 = vmatprep.subr.mxu0 0.0
        %3795 = vmatpush1.msra.mxu0 0.0
        %3796 = vmatprep.subr.mxu0 0.0
        %3797 = vmatpush1.msra.mxu0 0.0
        %3798 = vmatprep.subr.mxu0 0.0
        %3799 = vmatpush1.msra.mxu0 0.0
        %3800 = vmatprep.subr.mxu0 0.0
        %3801 = vmatpush1.msra.mxu0 0.0
        %3802 = vmatprep.subr.mxu0 0.0
        %3803 = vmatpush1.msra.mxu0 0.0
        %3804 = vmatprep.subr.mxu0 0.0
        %3805 = vmatpush1.msra.mxu0 0.0
        %3806 = vmatprep.subr.mxu0 0.0
        %3807 = vmatpush1.msra.mxu0 0.0
        %3808 = vmatprep.subr.mxu0 0.0
        %3809 = vmatpush1.msra.mxu0 0.0
        %3810 = vmatprep.subr.mxu0 0.0
        %3811 = vmatpush1.msra.mxu0 0.0
        %3812 = vmatprep.subr.mxu0 0.0
        %3813 = vmatpush1.msra.mxu0 0.0
        %3814 = vmatprep.subr.mxu0 0.0
        %3815 = vmatpush1.msra.mxu0 0.0
        %3816 = vmatprep.subr.mxu0 0.0
        %3817 = vmatpush1.msra.mxu0 0.0
        %3818 = vmatprep.subr.mxu0 0.0
        %3819 = vmatpush1.msra.mxu0 0.0
        %3820 = vmatprep.subr.mxu0 0.0
        %3821 = vmatpush1.msra.mxu0 0.0
        %3822 = vmatprep.subr.mxu0 0.0
        %3823 = vmatpush1.msra.mxu0 0.0
        %3824 = vmatprep.subr.mxu0 0.0
        %3825 = vmatpush1.msra.mxu0 0.0
        %3826 = vmatprep.subr.mxu0 0.0
        %3827 = vmatpush1.msra.mxu0 0.0
        %3828 = vmatprep.subr.mxu0 0.0
        %3829 = vmatpush1.msra.mxu0 0.0
        %3830 = vmatprep.subr.mxu0 0.0
        %3831 = vmatpush1.msra.mxu0 0.0
        %3832 = vmatprep.subr.mxu0 0.0
        %3833 = vmatpush1.msra.mxu0 0.0
        %3834 = vmatprep.subr.mxu0 0.0
        %3835 = vmatpush1.msra.mxu0 0.0
        %3836 = vmatprep.subr.mxu0 0.0
        %3837 = vmatpush1.msra.mxu0 0.0
        %3838 = vmatprep.subr.mxu0 0.0
        %3839 = vmatpush1.msra.mxu0 0.0
        %3840 = vmatprep.subr.mxu0 0.0
        %3841 = vmatpush1.msra.mxu0 0.0
        %3842 = vmatprep.subr.mxu0 0.0
        %3843 = vmatpush1.msra.mxu0 0.0
        %3844 = vmatprep.subr.mxu0 0.0
        %3845 = vmatpush1.msra.mxu0 0.0
        %3846 = vmatprep.subr.mxu0 0.0
        %3847 = vmatpush1.msra.mxu0 0.0
        %3848 = vmatprep.subr.mxu0 0.0
        %3849 = vmatpush1.msra.mxu0 0.0
        %3850 = vmatprep.mubr.f32.mxu0 0.0
        %v3851 = vand.u32 %v797, 4294901760
        %3852 = vmatmul.mubr.f32.gmra.mrb[0].mxu0 %v3851
        %v3853 = vpop.f32.mrb[0].mxu0
        %v3854 = vadd.f32 %v3780, %v3853
        %v3855 = vpop.f32.mrb[0].mxu0
        %3856 = vdwg.mxu0
        %3857 = vmatprep.subr.mxu0 0.0
        %v3858 = vand.u32 %v345, 4294901760
        %3859 = vmatpush1.msra.mxu0 %v3858
        %3860 = vmatprep.subr.mxu0 0.0
        %3861 = vmatpush1.msra.mxu0 0.0
        %3862 = vmatprep.subr.mxu0 0.0
        %3863 = vmatpush1.msra.mxu0 0.0
        %3864 = vmatprep.subr.mxu0 0.0
        %3865 = vmatpush1.msra.mxu0 0.0
        %3866 = vmatprep.subr.mxu0 0.0
        %3867 = vmatpush1.msra.mxu0 0.0
        %3868 = vmatprep.subr.mxu0 0.0
        %3869 = vmatpush1.msra.mxu0 0.0
        %3870 = vmatprep.subr.mxu0 0.0
        %3871 = vmatpush1.msra.mxu0 0.0
        %3872 = vmatprep.subr.mxu0 0.0
        %3873 = vmatpush1.msra.mxu0 0.0
        %3874 = vmatprep.subr.mxu0 0.0
        %3875 = vmatpush1.msra.mxu0 0.0
        %3876 = vmatprep.subr.mxu0 0.0
        %3877 = vmatpush1.msra.mxu0 0.0
        %3878 = vmatprep.subr.mxu0 0.0
        %3879 = vmatpush1.msra.mxu0 0.0
        %3880 = vmatprep.subr.mxu0 0.0
        %3881 = vmatpush1.msra.mxu0 0.0
        %3882 = vmatprep.subr.mxu0 0.0
        %3883 = vmatpush1.msra.mxu0 0.0
        %3884 = vmatprep.subr.mxu0 0.0
        %3885 = vmatpush1.msra.mxu0 0.0
        %3886 = vmatprep.subr.mxu0 0.0
        %3887 = vmatpush1.msra.mxu0 0.0
        %3888 = vmatprep.subr.mxu0 0.0
        %3889 = vmatpush1.msra.mxu0 0.0
        %3890 = vmatprep.subr.mxu0 0.0
        %3891 = vmatpush1.msra.mxu0 0.0
        %3892 = vmatprep.subr.mxu0 0.0
        %3893 = vmatpush1.msra.mxu0 0.0
        %3894 = vmatprep.subr.mxu0 0.0
        %3895 = vmatpush1.msra.mxu0 0.0
        %3896 = vmatprep.subr.mxu0 0.0
        %3897 = vmatpush1.msra.mxu0 0.0
        %3898 = vmatprep.subr.mxu0 0.0
        %3899 = vmatpush1.msra.mxu0 0.0
        %3900 = vmatprep.subr.mxu0 0.0
        %3901 = vmatpush1.msra.mxu0 0.0
        %3902 = vmatprep.subr.mxu0 0.0
        %3903 = vmatpush1.msra.mxu0 0.0
        %3904 = vmatprep.subr.mxu0 0.0
        %3905 = vmatpush1.msra.mxu0 0.0
        %3906 = vmatprep.subr.mxu0 0.0
        %3907 = vmatpush1.msra.mxu0 0.0
        %3908 = vmatprep.subr.mxu0 0.0
        %3909 = vmatpush1.msra.mxu0 0.0
        %3910 = vmatprep.subr.mxu0 0.0
        %3911 = vmatpush1.msra.mxu0 0.0
        %3912 = vmatprep.subr.mxu0 0.0
        %3913 = vmatpush1.msra.mxu0 0.0
        %3914 = vmatprep.subr.mxu0 0.0
        %3915 = vmatpush1.msra.mxu0 0.0
        %3916 = vmatprep.subr.mxu0 0.0
        %3917 = vmatpush1.msra.mxu0 0.0
        %3918 = vmatprep.subr.mxu0 0.0
        %3919 = vmatpush1.msra.mxu0 0.0
        %3920 = vmatprep.subr.mxu0 0.0
        %3921 = vmatpush1.msra.mxu0 0.0
        %3922 = vmatprep.mubr.f32.mxu0 0.0
        %v3923 = vand.u32 %v797, 4294901760
        %3924 = vmatmul.mubr.f32.gmra.mrb[0].mxu0 %v3923
        %v3925 = vpop.f32.mrb[0].mxu0
        %v3926 = vadd.f32 %v3854, %v3925
        %v3927 = vpop.f32.mrb[0].mxu0
        %3928 = vdwg.mxu0
        %3931 = vrot.lane.b32.xlu0 %v3480, 64
        %v3932 = vpop.permute.xlu0 %3931
        %3933 = vrot.lane.b32.xlu0 %v3926, 64
        %v3934 = vpop.permute.xlu0 %3933
        %vm3937 = vcmask 523264
        %v3938 = vsel %vm3937, %v2143, %v3932
        %v3939 = vsel %vm3937, %v2144, %v3934
        %3940 = vst [vmem:[%s332] sm:$0xff] %v3938
        %3941 = vst [vmem:[%s332 + $0x8] sm:$0xff] %v3939
        %s3942 = sand.u32 %s139, 1
        %s3943 = scalar_lea.sflag [#allocation4], %s3942
        %s3944 = sand.u32 %s139, 1
        %s3945 = smul.addr %s3944, 16
        %s3946 = scalar_lea.vmem [#allocation10], %s3945
        // Predicated region
        $region53: #{tpu_custom_call.1} parent=35 // pred_check
          %p3947 = pneg %p149
        $region54: #{tpu_custom_call.1} parent=35 // pred_check_branch
          %3949 = sbr.rel (%p3947) target = $region56
        $region55: #{tpu_custom_call.1} parent=35 // pred_region
          %s3950 = smul.u32 2, %s27
          %s3952 = ssub.s32 256, 256
          %3953 = vsyncadd %s3943, %s3952
          %s3954 = smul.addr %s3950, 128
          %s3955 = scalar_lea.hbm %s4, %s3954
          %s3956 = sshll.u32 %s3946, 4
          %s3957 = int_to_ptr.vmem [resolvable:$true] %s3956
          %3962 = dma.vmem_to_hbm [thread:$0]  %s3957, 256, %s3955, %s3943, 128, 128, 8
        $region56: #{tpu_custom_call.1} parent=35 // pred_fallthru
          _
      $region36: #{tpu_custom_call.1} parent=5 // pred_fallthru
        _
      %p3963 = scmp.le.s32.totalorder 2, %s22
      // Predicated region
      $region57: #{tpu_custom_call.1} parent=5 // pred_check
        %p3964 = pneg %p3963
      $region58: #{tpu_custom_call.1} parent=5 // pred_check_branch
        %3966 = sbr.rel (%p3964) target = $region60
      $region59: #{tpu_custom_call.1} parent=5 // pred_region
        %s3967 = ssub.s32 %s22, 2
        // Predicated region
        $region61: #{tpu_custom_call.1} parent=59 // pred_check
          %p3968 = pneg %p155
        $region62: #{tpu_custom_call.1} parent=59 // pred_check_branch
          %3970 = sbr.rel (%p3968) target = $region64
        $region63: #{tpu_custom_call.1} parent=59 // pred_region
          %s3971 = sand.u32 %s140, 1
          %s3972 = scalar_lea.sflag [#allocation4], %s3971
          %s3973 = sand.u32 %s140, 1
          %s3974 = smul.addr %s3973, 16
          %s3975 = scalar_lea.vmem [#allocation10], %s3974
          %3976 = dma.done %s3972, 256
        $region64: #{tpu_custom_call.1} parent=59 // pred_fallthru
          _
      $region60: #{tpu_custom_call.1} parent=5 // pred_fallthru
        _
    $region6: #{tpu_custom_call.1} parent=1 // loop_footer
      %s26 = sadd.s32 1, %s22
    $region7: #{tpu_custom_call.1} parent=1 // loop_footer_branch
      %21 = sbr.rel target = $region3
    $region8: #{tpu_custom_call.1} parent=1 // loop_exit
      _
    %3977 = vsyncpa [#allocation3], 1
    %s3978 = scalar_lea.sflag [#allocation3], 1
    %3979 = vsyncpa %s3978, 1
    %3980 = vsyncpa [#allocation6], 1
    %s3981 = scalar_lea.sflag [#allocation6], 1
    %3982 = vsyncpa %s3981, 1
    %3983 = vsyncpa [#allocation9], 1
    %s3984 = scalar_lea.sflag [#allocation9], 1
    %3985 = vsyncpa %s3984, 1
    %3986 = vsyncpa [#allocation4], 1
    %s3987 = scalar_lea.sflag [#allocation4], 1
    %3988 = vsyncpa %s3987, 1

</llo_original>
